<compile_context>
chip_gen: v7x
topology: tpu7x:2x2x1
jax: 0.10.0
libtpu: 0.0.40
codegen_flags: <defaults>
</compile_context>

<pallas_src>
import math

import jax
import jax.numpy as jnp
import numpy as np
from jax import lax
from jax.experimental import pallas as pl
from jax.experimental.pallas import tpu as pltpu

EPS = 1e-6


# ----------------------------------------------------------------------------
# helpers shared by kernels and the pure-JAX reference
# ----------------------------------------------------------------------------
def _rmsnorm(x, w, eps=EPS):
    var = jnp.mean(x * x, axis=-1, keepdims=True)
    return (x * lax.rsqrt(var + eps)) * w


def _gelu_tanh(x):
    c = math.sqrt(2.0 / math.pi)
    return 0.5 * x * (1.0 + jnp.tanh(c * (x + 0.044715 * x * x * x)))


def _pick_head_group(num_heads, head_dim, target_width=256):
    hg = max(1, min(num_heads, target_width // max(head_dim, 1)))
    while num_heads % hg:
        hg -= 1
    return hg


def _pick_divisor_tile(n, target):
    t = min(n, target)
    while n % t:
        t -= 1
    return t


def _nbytes(shape, dtype):
    return int(np.prod(shape)) * jnp.dtype(dtype).itemsize


def _vmem_limit(block_bytes, scratch_bytes):
    # double-buffered blocks + scratch, ~30% headroom, clamped to sane bounds
    need = int((2 * block_bytes + scratch_bytes) * 1.3) + (1 << 20)
    return int(min(max(need, 32 * 1024 * 1024), 100 * 1024 * 1024))


# ----------------------------------------------------------------------------
# Kernel 1: fused input-RMSNorm + pos_emb + proj_cond + joint build (VMEM)
#           + grouped-head causal attention (image queries only)
#           + single fused o-projection
# grid = (B//BB, num_heads//HG);  batch-block parallel, head-group arbitrary
# ----------------------------------------------------------------------------
def attn_kernel(hid_ref, tc_ref, mask_ref, pos_ref, lnw_ref,
                wc_ref, bc_ref,
                wq_ref, bq_ref, wk_ref, bk_ref, wv_ref, bv_ref,
                wo_ref, bo_ref, qn_ref, kn_ref,
                o_ref,
                joint_scr, bias_scr, ctx_scr):
    f32, bf16 = jnp.float32, jnp.bfloat16
    g = pl.program_id(1)
    bb, s_img, d = hid_ref.shape
    s_txt = tc_ref.shape[1]            # padded to a multiple of 16 by the wrapper
    s_tot = s_txt + s_img
    hd = qn_ref.shape[1]
    gw = wq_ref.shape[2]
    hg = gw // hd
    n_groups = ctx_scr.shape[1]
    scale = 1.0 / math.sqrt(hd)

    # ---- per-batch-block one-time setup (first head group only) ----
    @pl.when(g == 0)
    def _init():
        col = lax.broadcasted_iota(jnp.int32, (s_img, s_tot), 1)
        row = lax.broadcasted_iota(jnp.int32, (s_img, s_tot), 0) + s_txt
        causal = col <= row
        for b in range(bb):
            norm_h = _rmsnorm(hid_ref[b], lnw_ref[...]) + pos_ref[0]        # (S_img, D) f32
            tc_p = (jnp.dot(tc_ref[b].astype(bf16), wc_ref[...],
                            preferred_element_type=f32) + bc_ref[...])      # (S_txt, D) f32
            # two aligned slab stores instead of a concatenate
            joint_scr[b, :s_txt, :] = tc_p.astype(bf16)
            joint_scr[b, s_txt:, :] = norm_h.astype(bf16)
            allowed = causal & (mask_ref[b] > 0.5)
            bias_scr[b] = jnp.where(allowed, 0.0, -1e30).astype(bf16)

    # ---- per head-group QKV projection + attention (bf16 MXU, f32 stats) ----
    wq = wq_ref[0]                      # (D, GW) bf16
    wk = wk_ref[0]
    wv = wv_ref[0]
    bq = bq_ref[0]                      # (1, GW) f32
    bk = bk_ref[0]
    bv = bv_ref[0]
    for b in range(bb):
        joint = joint_scr[b]                                   # (S_tot, D) bf16
        x_img = joint_scr[b, s_txt:, :]                        # (S_img, D) bf16, aligned
        q_all = jnp.dot(x_img, wq, preferred_element_type=f32) + bq   # (S_img, GW)
        k_all = jnp.dot(joint, wk, preferred_element_type=f32) + bk   # (S_tot, GW)
        v_all = jnp.dot(joint, wv, preferred_element_type=f32) + bv   # (S_tot, GW)
        bias = bias_scr[b].astype(f32)
        ctx_heads = []
        for i in range(hg):                                    # unrolled over heads in group
            sl = slice(i * hd, (i + 1) * hd)
            qh = (_rmsnorm(q_all[:, sl], qn_ref[...]) * scale).astype(bf16)
            kh = _rmsnorm(k_all[:, sl], kn_ref[...]).astype(bf16)
            s = lax.dot_general(qh, kh, (((1,), (1,)), ((), ())),
                                preferred_element_type=f32) + bias      # (S_img, S_tot)
            m = jnp.max(s, axis=-1, keepdims=True)
            p = jnp.exp(s - m)
            inv_l = pl.reciprocal(jnp.sum(p, axis=-1, keepdims=True), approx=True)
            p = (p * inv_l).astype(bf16)
            ctx_heads.append(jnp.dot(p, v_all[:, sl].astype(bf16),
                                     preferred_element_type=f32))       # (S_img, hd)
        ctx_scr[b, g] = jnp.concatenate(ctx_heads, axis=-1).astype(bf16)  # (S_img, GW)

    # ---- single fused o-projection at the last head group ----
    @pl.when(g == pl.num_programs(1) - 1)
    def _finish():
        for b in range(bb):
            acc = jnp.zeros((s_img, d), f32)
            for gi in range(n_groups):                         # static unroll, K = GW each
                acc = acc + jnp.dot(ctx_scr[b, gi], wo_ref[gi],
                                    preferred_element_type=f32)
            o_ref[b] = acc + bo_ref[...]


# ----------------------------------------------------------------------------
# Kernel 2: residual + post RMSNorm + GELU(tanh) MLP (Dh tiled) + residual
# grid = (B//BB, n_dh);  batch-block parallel, Dh reduction arbitrary
# ----------------------------------------------------------------------------
def mlp_kernel(attn_ref, res_ref, nw_ref, w1_ref, b1_ref, w2_ref, b2_ref,
               o_ref, h_scr, xn_scr, acc_scr):
    f32, bf16 = jnp.float32, jnp.bfloat16
    k = pl.program_id(1)
    bb, s_img, d = attn_ref.shape

    @pl.when(k == 0)
    def _init():
        h = (attn_ref[...] + res_ref[...]).reshape(bb * s_img, d)      # (BB*S, D) f32
        h_scr[...] = h
        xn_scr[...] = _rmsnorm(h, nw_ref[...]).astype(bf16)
        acc_scr[...] = jnp.zeros_like(acc_scr)

    y = jnp.dot(xn_scr[...], w1_ref[...], preferred_element_type=f32) + b1_ref[...]
    y = _gelu_tanh(y)                                                  # f32 VPU math
    acc_scr[...] += jnp.dot(y.astype(bf16), w2_ref[...], preferred_element_type=f32)

    @pl.when(k == pl.num_programs(1) - 1)
    def _finish():
        o_ref[...] = (acc_scr[...] + b2_ref[...] + h_scr[...]).reshape(bb, s_img, d)
        # NOTE: torch fp16 clip(-65504, 65504) branch is a no-op here (float32).


# ----------------------------------------------------------------------------
# One-time parameter preparation (outside the per-step forward path):
# pre-transpose, pre-split heads into groups of HG, cast MXU operands to bf16.
# ----------------------------------------------------------------------------
def prepare_params(params, num_heads, head_group=None):
    f32, bf16 = jnp.float32, jnp.bfloat16
    D = params["wq"].shape[0]
    hd = D // num_heads
    if head_group is None:
        head_group = _pick_head_group(num_heads, hd)
    hg = head_group
    assert num_heads % hg == 0
    ng = num_heads // hg
    gw = hg * hd

    def split_groups(w):   # torch (out, in) -> (ng, in, gw); out cols grouped per head group
        wt = w.T                                              # (in, out)
        return jnp.transpose(wt.reshape(wt.shape[0], ng, gw), (1, 0, 2)).astype(bf16)

    return dict(
        input_ln_w=params["input_ln_w"].reshape(1, D).astype(f32),
        post_ln_w=params["post_ln_w"].reshape(1, D).astype(f32),
        pos_emb=params["pos_emb"].astype(f32),
        wc=params["proj_cond_w"].T.astype(bf16),                          # (Dc, D)
        bc=params["proj_cond_b"].reshape(1, D).astype(f32),
        wq=split_groups(params["wq"]), bq=params["bq"].reshape(ng, 1, gw).astype(f32),
        wk=split_groups(params["wk"]), bk=params["bk"].reshape(ng, 1, gw).astype(f32),
        wv=split_groups(params["wv"]), bv=params["bv"].reshape(ng, 1, gw).astype(f32),
        wo=params["wo"].T.reshape(ng, gw, D).astype(bf16),                # rows grouped
        bo=params["bo"].reshape(1, D).astype(f32),
        qn=params["q_norm_w"].reshape(1, hd).astype(f32),
        kn=params["k_norm_w"].reshape(1, hd).astype(f32),
        mlp_w1=params["mlp_w1"].T.astype(bf16),                           # (D, Dh)
        mlp_b1=params["mlp_b1"].reshape(1, -1).astype(f32),
        mlp_w2=params["mlp_w2"].T.astype(bf16),                           # (Dh, D)
        mlp_b2=params["mlp_b2"].reshape(1, D).astype(f32),
    )


# ----------------------------------------------------------------------------
# Wrapper: full BasicTransformerBlock forward
# ----------------------------------------------------------------------------
def basic_transformer_block(hidden_states, text_cond, text_mask, prep, batch_block=None):
    f32, bf16 = jnp.float32, jnp.bfloat16
    B, S_img, D = hidden_states.shape
    _, S_txt, Dc = text_cond.shape
    n_groups, _, GW = prep["wq"].shape
    hd = prep["qn"].shape[1]
    Dh = prep["mlp_w1"].shape[1]

    # Pad text length to a multiple of 16 (bf16 sublane packing) so the image
    # slab of the joint scratch starts on an aligned row.  Padded tokens are
    # masked out via the key-padding mask, so the result is unchanged.
    S_txt_p = ((S_txt + 15) // 16) * 16
    tmask = text_mask.astype(f32)
    if S_txt_p != S_txt:
        text_cond = jnp.pad(text_cond, ((0, 0), (0, S_txt_p - S_txt), (0, 0)))
        tmask = jnp.pad(tmask, ((0, 0), (0, S_txt_p - S_txt)))
    S_tot = S_txt_p + S_img

    BB = batch_block if batch_block is not None else _pick_divisor_tile(B, 2)
    assert B % BB == 0

    joint_mask = jnp.concatenate([tmask, jnp.ones((B, S_img), f32)], axis=1)
    joint_mask = joint_mask.reshape(B, 1, S_tot)
    pos = prep["pos_emb"][:, :S_img, :]

    attn_blocks = (
        2 * _nbytes((BB, S_img, D), f32) + _nbytes((BB, S_txt_p, Dc), f32)
        + _nbytes((BB, 1, S_tot), f32) + _nbytes((1, S_img, D), f32)
        + _nbytes((Dc, D), bf16) + 3 * _nbytes((1, D, GW), bf16)
        + _nbytes((n_groups, GW, D), bf16) + 8 * _nbytes((1, D), f32)
    )
    attn_scratch = (
        _nbytes((BB, S_tot, D), bf16) + _nbytes((BB, S_img, S_tot), bf16)
        + _nbytes((BB, n_groups, S_img, GW), bf16)
    )

    # --- Kernel 1: fused norm/pos/proj_cond/joint-build/attention/o-proj ---
    attn_img = pl.pallas_call(
        attn_kernel,
        out_shape=jax.ShapeDtypeStruct((B, S_img, D), f32),
        grid=(B // BB, n_groups),
        in_specs=[
            pl.BlockSpec((BB, S_img, D), lambda b, g: (b, 0, 0)),    # hidden_states
            pl.BlockSpec((BB, S_txt_p, Dc), lambda b, g: (b, 0, 0)), # text_cond (padded)
            pl.BlockSpec((BB, 1, S_tot), lambda b, g: (b, 0, 0)),    # joint key mask
            pl.BlockSpec((1, S_img, D), lambda b, g: (0, 0, 0)),     # pos emb
            pl.BlockSpec((1, D), lambda b, g: (0, 0)),               # input_ln_w
            pl.BlockSpec((Dc, D), lambda b, g: (0, 0)),              # proj_cond W
            pl.BlockSpec((1, D), lambda b, g: (0, 0)),               # proj_cond b
            pl.BlockSpec((1, D, GW), lambda b, g: (g, 0, 0)),        # wq (per head group)
            pl.BlockSpec((1, 1, GW), lambda b, g: (g, 0, 0)),        # bq
            pl.BlockSpec((1, D, GW), lambda b, g: (g, 0, 0)),        # wk
            pl.BlockSpec((1, 1, GW), lambda b, g: (g, 0, 0)),        # bk
            pl.BlockSpec((1, D, GW), lambda b, g: (g, 0, 0)),        # wv
            pl.BlockSpec((1, 1, GW), lambda b, g: (g, 0, 0)),        # bv
            pl.BlockSpec((n_groups, GW, D), lambda b, g: (0, 0, 0)), # wo (full, invariant)
            pl.BlockSpec((1, D), lambda b, g: (0, 0)),               # bo
            pl.BlockSpec((1, hd), lambda b, g: (0, 0)),              # q_norm_w
            pl.BlockSpec((1, hd), lambda b, g: (0, 0)),              # k_norm_w
        ],
        out_specs=pl.BlockSpec((BB, S_img, D), lambda b, g: (b, 0, 0)),
        scratch_shapes=[
            pltpu.VMEM((BB, S_tot, D), bf16),             # joint sequence (keys/values)
            pltpu.VMEM((BB, S_img, S_tot), bf16),         # additive causal+padding bias
            pltpu.VMEM((BB, n_groups, S_img, GW), bf16),  # per-group attention context
        ],
        compiler_params=pltpu.CompilerParams(
            dimension_semantics=("parallel", "arbitrary"),
            vmem_limit_bytes=_vmem_limit(attn_blocks, attn_scratch)),
    )(
        hidden_states, text_cond, joint_mask, pos,
        prep["input_ln_w"], prep["wc"], prep["bc"],
        prep["wq"], prep["bq"], prep["wk"], prep["bk"], prep["wv"], prep["bv"],
        prep["wo"], prep["bo"], prep["qn"], prep["kn"],
    )

    # --- Kernel 2: residual + post RMSNorm + MLP (Dh tiled) + residual ---
    t_dh = _pick_divisor_tile(Dh, 1024)
    n_dh = Dh // t_dh
    mlp_blocks = (
        3 * _nbytes((BB, S_img, D), f32) + _nbytes((D, t_dh), bf16)
        + _nbytes((t_dh, D), bf16) + 3 * _nbytes((1, D), f32) + _nbytes((1, t_dh), f32)
    )
    mlp_scratch = 2 * _nbytes((BB * S_img, D), jnp.float32) + _nbytes((BB * S_img, D), bf16)

    out = pl.pallas_call(
        mlp_kernel,
        out_shape=jax.ShapeDtypeStruct((B, S_img, D), f32),
        grid=(B // BB, n_dh),
        in_specs=[
            pl.BlockSpec((BB, S_img, D), lambda b, k: (b, 0, 0)),    # attention out
            pl.BlockSpec((BB, S_img, D), lambda b, k: (b, 0, 0)),    # residual (hidden)
            pl.BlockSpec((1, D), lambda b, k: (0, 0)),               # post_ln_w
            pl.BlockSpec((D, t_dh), lambda b, k: (0, k)),            # w1 tile
            pl.BlockSpec((1, t_dh), lambda b, k: (0, k)),            # b1 tile
            pl.BlockSpec((t_dh, D), lambda b, k: (k, 0)),            # w2 tile
            pl.BlockSpec((1, D), lambda b, k: (0, 0)),               # b2
        ],
        out_specs=pl.BlockSpec((BB, S_img, D), lambda b, k: (b, 0, 0)),
        scratch_shapes=[
            pltpu.VMEM((BB * S_img, D), jnp.float32),     # h = attn + residual
            pltpu.VMEM((BB * S_img, D), bf16),            # rmsnorm(h) (MXU input)
            pltpu.VMEM((BB * S_img, D), jnp.float32),     # 2nd-matmul accumulator
        ],
        compiler_params=pltpu.CompilerParams(
            dimension_semantics=("parallel", "arbitrary"),
            vmem_limit_bytes=_vmem_limit(mlp_blocks, mlp_scratch)),
    )(attn_img, hidden_states, prep["post_ln_w"],
      prep["mlp_w1"], prep["mlp_b1"], prep["mlp_w2"], prep["mlp_b2"])

    return out


# ----------------------------------------------------------------------------
# Pure-JAX reference (mirrors the kernel's bf16-MXU / f32-stats precision)
# ----------------------------------------------------------------------------
def reference_forward(hidden, text_cond, text_mask, params, num_heads):
    f32, bf16 = jnp.float32, jnp.bfloat16
    B, S_img, D = hidden.shape
    S_txt = text_cond.shape[1]
    hd = D // num_heads
    S_tot = S_txt + S_img

    def mm(a, b):  # bf16 matmul, f32 accumulation (matches kernel)
        return jnp.einsum("...ij,jk->...ik", a.astype(bf16), b.astype(bf16),
                          preferred_element_type=f32)

    norm_h = _rmsnorm(hidden, params["input_ln_w"]) + params["pos_emb"][:, :S_img, :]
    tc_p = mm(text_cond, params["proj_cond_w"].T) + params["proj_cond_b"]
    joint = jnp.concatenate([tc_p, norm_h], axis=1).astype(bf16)       # (B, S_tot, D)
    x_img = joint[:, S_txt:, :]

    q = (mm(x_img, params["wq"].T) + params["bq"]).reshape(B, S_img, num_heads, hd)
    k = (mm(joint, params["wk"].T) + params["bk"]).reshape(B, S_tot, num_heads, hd)
    v = (mm(joint, params["wv"].T) + params["bv"]).reshape(B, S_tot, num_heads, hd)

    scale = 1.0 / math.sqrt(hd)
    q = (_rmsnorm(q, params["q_norm_w"]) * scale).astype(bf16)
    k = _rmsnorm(k, params["k_norm_w"]).astype(bf16)

    s = jnp.einsum("bqhd,bkhd->bhqk", q, k, preferred_element_type=f32)
    jmask = jnp.concatenate([text_mask.astype(f32), jnp.ones((B, S_img), f32)], axis=1)
    row = jnp.arange(S_img)[:, None] + S_txt
    col = jnp.arange(S_tot)[None, :]
    allowed = (col <= row)[None, None] & (jmask[:, None, None, :] > 0.5)
    s = s + jnp.where(allowed, 0.0, -1e30)
    p = jnp.exp(s - jnp.max(s, axis=-1, keepdims=True))
    p = p / jnp.sum(p, axis=-1, keepdims=True)
    ctx = jnp.einsum("bhqk,bkhd->bqhd", p.astype(bf16), v.astype(bf16),
                     preferred_element_type=f32)
    attn = mm(ctx.reshape(B, S_img, D), params["wo"].T) + params["bo"]

    h = attn + hidden
    xn = _rmsnorm(h, params["post_ln_w"])
    y = mm(xn, params["mlp_w1"].T) + params["mlp_b1"]
    y = _gelu_tanh(y)
    y = mm(y, params["mlp_w2"].T) + params["mlp_b2"]
    return y + h


# ----------------------------------------------------------------------------
if __name__ == "__main__":
    key = jax.random.PRNGKey(0)
    B, S_img, D = 2, 16, 32
    num_heads = 4
    head_dim = D // num_heads
    S_txt, Dc = 8, 48
    num_img_tkns = 16
    Dh = int(4.0 * D)

    keys = jax.random.split(key, 20)

    def init(k, shape, scale=0.05):
        return (scale * jax.random.normal(k, shape)).astype(jnp.float32)

    params = dict(
        input_ln_w=jnp.ones((D,), jnp.float32) + init(keys[0], (D,)),
        post_ln_w=jnp.ones((D,), jnp.float32) + init(keys[1], (D,)),
        pos_emb=init(keys[2], (1, num_img_tkns + 1, D)),
        proj_cond_w=init(keys[3], (D, Dc)),
        proj_cond_b=init(keys[4], (D,)),
        wq=init(keys[5], (D, D)), bq=init(keys[6], (D,)),
        wk=init(keys[7], (D, D)), bk=init(keys[8], (D,)),
        wv=init(keys[9], (D, D)), bv=init(keys[10], (D,)),
        wo=init(keys[11], (D, D)), bo=init(keys[12], (D,)),
        q_norm_w=jnp.ones((head_dim,), jnp.float32),
        k_norm_w=jnp.ones((head_dim,), jnp.float32),
        mlp_w1=init(keys[13], (Dh, D)), mlp_b1=init(keys[14], (Dh,)),
        mlp_w2=init(keys[15], (D, Dh)), mlp_b2=init(keys[16], (D,)),
    )

    hidden = jax.random.normal(keys[17], (B, S_img, D), jnp.float32)
    text_cond = jax.random.normal(keys[18], (B, S_txt, Dc), jnp.float32)
    # last two text tokens are padding
    text_mask = jnp.concatenate(
        [jnp.ones((B, S_txt - 2), jnp.float32), jnp.zeros((B, 2), jnp.float32)],
        axis=1,
    )

    prep = prepare_params(params, num_heads)          # one-time weight prep
    fwd = jax.jit(basic_transformer_block)
    out = fwd(hidden, text_cond, text_mask, prep)
    out = jax.block_until_ready(out)

    ref = reference_forward(hidden, text_cond, text_mask, params, num_heads)
    ref = jax.block_until_ready(ref)

    assert out.shape == (B, S_img, D)
    assert np.allclose(np.asarray(out), np.asarray(ref), atol=5e-3, rtol=5e-3), (
        "mismatch vs reference"
    )
    print("KERNEL_OK")
</pallas_src>

<mosaic_0001>
module attributes {stable_mosaic.version = 11 : i64} {
  func.func @attn_kernel(%arg0: i32, %arg1: i32, %arg2: memref<2x16x32xf32, #tpu.memory_space<vmem>>, %arg3: memref<2x16x48xf32, #tpu.memory_space<vmem>>, %arg4: memref<2x1x32xf32, #tpu.memory_space<vmem>>, %arg5: memref<1x16x32xf32, #tpu.memory_space<vmem>>, %arg6: memref<1x32xf32, #tpu.memory_space<vmem>>, %arg7: memref<48x32xbf16, #tpu.memory_space<vmem>>, %arg8: memref<1x32xf32, #tpu.memory_space<vmem>>, %arg9: memref<1x32x32xbf16, #tpu.memory_space<vmem>>, %arg10: memref<1x1x32xf32, #tpu.memory_space<vmem>>, %arg11: memref<1x32x32xbf16, #tpu.memory_space<vmem>>, %arg12: memref<1x1x32xf32, #tpu.memory_space<vmem>>, %arg13: memref<1x32x32xbf16, #tpu.memory_space<vmem>>, %arg14: memref<1x1x32xf32, #tpu.memory_space<vmem>>, %arg15: memref<1x32x32xbf16, #tpu.memory_space<vmem>>, %arg16: memref<1x32xf32, #tpu.memory_space<vmem>>, %arg17: memref<1x8xf32, #tpu.memory_space<vmem>>, %arg18: memref<1x8xf32, #tpu.memory_space<vmem>>, %arg19: memref<2x16x32xf32, #tpu.memory_space<vmem>>, %arg20: memref<2x32x32xbf16, #tpu.memory_space<vmem>>, %arg21: memref<2x16x32xbf16, #tpu.memory_space<vmem>>, %arg22: memref<2x1x16x32xbf16, #tpu.memory_space<vmem>>) attributes {dimension_semantics = [#tpu.dimension_semantics<parallel>, #tpu.dimension_semantics<arbitrary>], iteration_bounds = array<i64: 1, 1>, scalar_prefetch = 0 : i64, scratch_operands = 3 : i64, tpu.core_type = #tpu.core_type<tc>, window_params = [{transform_indices = @transform_0, window_bounds = array<i64: 2, 16, 32>}, {transform_indices = @transform_1, window_bounds = array<i64: 2, 16, 48>}, {transform_indices = @transform_2, window_bounds = array<i64: 2, 1, 32>}, {pipeline_mode = #tpu.pipeline_mode<synchronous>, transform_indices = @transform_3, window_bounds = array<i64: 1, 16, 32>}, {pipeline_mode = #tpu.pipeline_mode<synchronous>, transform_indices = @transform_4, window_bounds = array<i64: 1, 32>}, {pipeline_mode = #tpu.pipeline_mode<synchronous>, transform_indices = @transform_5, window_bounds = array<i64: 48, 32>}, {pipeline_mode = #tpu.pipeline_mode<synchronous>, transform_indices = @transform_6, window_bounds = array<i64: 1, 32>}, {transform_indices = @transform_7, window_bounds = array<i64: 1, 32, 32>}, {transform_indices = @transform_8, window_bounds = array<i64: 1, 1, 32>}, {transform_indices = @transform_9, window_bounds = array<i64: 1, 32, 32>}, {transform_indices = @transform_10, window_bounds = array<i64: 1, 1, 32>}, {transform_indices = @transform_11, window_bounds = array<i64: 1, 32, 32>}, {transform_indices = @transform_12, window_bounds = array<i64: 1, 1, 32>}, {pipeline_mode = #tpu.pipeline_mode<synchronous>, transform_indices = @transform_13, window_bounds = array<i64: 1, 32, 32>}, {pipeline_mode = #tpu.pipeline_mode<synchronous>, transform_indices = @transform_14, window_bounds = array<i64: 1, 32>}, {pipeline_mode = #tpu.pipeline_mode<synchronous>, transform_indices = @transform_15, window_bounds = array<i64: 1, 8>}, {pipeline_mode = #tpu.pipeline_mode<synchronous>, transform_indices = @transform_16, window_bounds = array<i64: 1, 8>}, {transform_indices = @transform_17, window_bounds = array<i64: 2, 16, 32>}]} {
    %c0_i32 = arith.constant 0 : i32
    %0 = arith.cmpi eq, %arg1, %c0_i32 : i32
    %1 = arith.extui %0 : i1 to i32
    %c0_i32_0 = arith.constant 0 : i32
    %2 = arith.cmpi ne, %1, %c0_i32_0 : i32
    scf.if %2 {
      %446 = tpu.iota {dimensions = array<i32: 1>} : vector<16x32xi32>
      %447 = tpu.iota {dimensions = array<i32: 0>} : vector<16x32xi32>
      %c16_i32 = arith.constant 16 : i32
      %448 = vector.broadcast %c16_i32 : i32 to vector<16x32xi32>
      %449 = arith.addi %447, %448 : vector<16x32xi32>
      %450 = arith.cmpi sle, %446, %449 : vector<16x32xi32>
      %c0_167 = arith.constant 0 : index
      %c0_168 = arith.constant 0 : index
      %c0_169 = arith.constant 0 : index
      %451 = vector.load %arg2[%c0_167, %c0_168, %c0_169] : memref<2x16x32xf32, #tpu.memory_space<vmem>>, vector<1x16x32xf32>
      %452 = vector.shape_cast %451 : vector<1x16x32xf32> to vector<16x32xf32>
      %c0_170 = arith.constant 0 : index
      %c0_171 = arith.constant 0 : index
      %453 = vector.load %arg6[%c0_170, %c0_171] : memref<1x32xf32, #tpu.memory_space<vmem>>, vector<1x32xf32>
      %454 = arith.mulf %452, %452 : vector<16x32xf32>
      %cst_172 = arith.constant dense<0.000000e+00> : vector<16xf32>
      %455 = vector.multi_reduction <add>, %454, %cst_172 [1] : vector<16x32xf32> to vector<16xf32>
      %456 = vector.shape_cast %455 : vector<16xf32> to vector<16x1xf32>
      %cst_173 = arith.constant 3.200000e+01 : f32
      %457 = vector.broadcast %cst_173 : f32 to vector<16x1xf32>
      %458 = arith.divf %456, %457 : vector<16x1xf32>
      %cst_174 = arith.constant 9.99999997E-7 : f32
      %459 = vector.broadcast %cst_174 : f32 to vector<16x1xf32>
      %460 = arith.addf %458, %459 : vector<16x1xf32>
      %461 = math.rsqrt %460 : vector<16x1xf32>
      %462 = vector.broadcast %461 : vector<16x1xf32> to vector<16x32xf32>
      %463 = arith.mulf %452, %462 : vector<16x32xf32>
      %464 = vector.broadcast %453 : vector<1x32xf32> to vector<16x32xf32>
      %465 = arith.mulf %463, %464 : vector<16x32xf32>
      %c0_175 = arith.constant 0 : index
      %c0_176 = arith.constant 0 : index
      %c0_177 = arith.constant 0 : index
      %466 = vector.load %arg5[%c0_175, %c0_176, %c0_177] : memref<1x16x32xf32, #tpu.memory_space<vmem>>, vector<1x16x32xf32>
      %467 = vector.shape_cast %466 : vector<1x16x32xf32> to vector<16x32xf32>
      %468 = arith.addf %465, %467 : vector<16x32xf32>
      %c0_178 = arith.constant 0 : index
      %c0_179 = arith.constant 0 : index
      %c0_180 = arith.constant 0 : index
      %469 = vector.load %arg3[%c0_178, %c0_179, %c0_180] : memref<2x16x48xf32, #tpu.memory_space<vmem>>, vector<1x16x48xf32>
      %470 = vector.shape_cast %469 : vector<1x16x48xf32> to vector<16x48xf32>
      %471 = arith.truncf %470 : vector<16x48xf32> to vector<16x48xbf16>
      %c0_181 = arith.constant 0 : index
      %c0_182 = arith.constant 0 : index
      %472 = vector.load %arg7[%c0_181, %c0_182] : memref<48x32xbf16, #tpu.memory_space<vmem>>, vector<48x32xbf16>
      %cst_183 = arith.constant dense<0.000000e+00> : vector<16x32xf32>
      %473 = tpu.matmul %471, %472, %cst_183 {dimension_numbers = #tpu.dot_dimension_numbers<[1], [0], [0], [1], [0, 0, 1, 1], [], []>} : vector<16x48xbf16>, vector<48x32xbf16>, vector<16x32xf32> -> vector<16x32xf32>
      %c0_184 = arith.constant 0 : index
      %c0_185 = arith.constant 0 : index
      %474 = vector.load %arg8[%c0_184, %c0_185] : memref<1x32xf32, #tpu.memory_space<vmem>>, vector<1x32xf32>
      %475 = vector.broadcast %474 : vector<1x32xf32> to vector<16x32xf32>
      %476 = arith.addf %473, %475 : vector<16x32xf32>
      %477 = arith.truncf %476 : vector<16x32xf32> to vector<16x32xbf16>
      %c0_186 = arith.constant 0 : index
      %c0_187 = arith.constant 0 : index
      %c0_188 = arith.constant 0 : index
      %478 = vector.load %arg20[%c0_186, %c0_187, %c0_188] : memref<2x32x32xbf16, #tpu.memory_space<vmem>>, vector<1x16x32xbf16>
      %479 = vector.shape_cast %478 : vector<1x16x32xbf16> to vector<16x32xbf16>
      %480 = vector.shape_cast %477 : vector<16x32xbf16> to vector<1x16x32xbf16>
      tpu.vector_store %arg20[%c0_186, %c0_187, %c0_188], %480 {strides = array<i32>} : memref<2x32x32xbf16, #tpu.memory_space<vmem>>, vector<1x16x32xbf16>,
      %481 = arith.truncf %468 : vector<16x32xf32> to vector<16x32xbf16>
      %c0_189 = arith.constant 0 : index
      %c16_190 = arith.constant 16 : index
      %c0_191 = arith.constant 0 : index
      %482 = vector.load %arg20[%c0_189, %c16_190, %c0_191] : memref<2x32x32xbf16, #tpu.memory_space<vmem>>, vector<1x16x32xbf16>
      %483 = vector.shape_cast %482 : vector<1x16x32xbf16> to vector<16x32xbf16>
      %484 = vector.shape_cast %481 : vector<16x32xbf16> to vector<1x16x32xbf16>
      tpu.vector_store %arg20[%c0_189, %c16_190, %c0_191], %484 {strides = array<i32>} : memref<2x32x32xbf16, #tpu.memory_space<vmem>>, vector<1x16x32xbf16>,
      %c0_192 = arith.constant 0 : index
      %c0_193 = arith.constant 0 : index
      %c0_194 = arith.constant 0 : index
      %485 = vector.load %arg4[%c0_192, %c0_193, %c0_194] : memref<2x1x32xf32, #tpu.memory_space<vmem>>, vector<1x1x32xf32>
      %486 = vector.shape_cast %485 : vector<1x1x32xf32> to vector<1x32xf32>
      %cst_195 = arith.constant 5.000000e-01 : f32
      %487 = vector.broadcast %cst_195 : f32 to vector<1x32xf32>
      %488 = arith.cmpf ogt, %486, %487 : vector<1x32xf32>
      %489 = vector.broadcast %488 : vector<1x32xi1> to vector<16x32xi1>
      %490 = arith.andi %450, %489 : vector<16x32xi1>
      %cst_196 = arith.constant 0.000000e+00 : f32
      %cst_197 = arith.constant -1.000000e+30 : f32
      %491 = vector.broadcast %cst_196 : f32 to vector<16x32xf32>
      %492 = vector.broadcast %cst_197 : f32 to vector<16x32xf32>
      %493 = arith.select %490, %491, %492 : vector<16x32xi1>, vector<16x32xf32>
      %494 = arith.truncf %493 : vector<16x32xf32> to vector<16x32xbf16>
      %c0_198 = arith.constant 0 : index
      %c0_199 = arith.constant 0 : index
      %c0_200 = arith.constant 0 : index
      %495 = vector.load %arg21[%c0_198, %c0_199, %c0_200] : memref<2x16x32xbf16, #tpu.memory_space<vmem>>, vector<1x16x32xbf16>
      %496 = vector.shape_cast %495 : vector<1x16x32xbf16> to vector<16x32xbf16>
      %497 = vector.shape_cast %494 : vector<16x32xbf16> to vector<1x16x32xbf16>
      tpu.vector_store %arg21[%c0_198, %c0_199, %c0_200], %497 {strides = array<i32>} : memref<2x16x32xbf16, #tpu.memory_space<vmem>>, vector<1x16x32xbf16>,
      %c1_201 = arith.constant 1 : index
      %c0_202 = arith.constant 0 : index
      %c0_203 = arith.constant 0 : index
      %498 = vector.load %arg2[%c1_201, %c0_202, %c0_203] : memref<2x16x32xf32, #tpu.memory_space<vmem>>, vector<1x16x32xf32>
      %499 = vector.shape_cast %498 : vector<1x16x32xf32> to vector<16x32xf32>
      %c0_204 = arith.constant 0 : index
      %c0_205 = arith.constant 0 : index
      %500 = vector.load %arg6[%c0_204, %c0_205] : memref<1x32xf32, #tpu.memory_space<vmem>>, vector<1x32xf32>
      %501 = arith.mulf %499, %499 : vector<16x32xf32>
      %cst_206 = arith.constant dense<0.000000e+00> : vector<16xf32>
      %502 = vector.multi_reduction <add>, %501, %cst_206 [1] : vector<16x32xf32> to vector<16xf32>
      %503 = vector.shape_cast %502 : vector<16xf32> to vector<16x1xf32>
      %cst_207 = arith.constant 3.200000e+01 : f32
      %504 = vector.broadcast %cst_207 : f32 to vector<16x1xf32>
      %505 = arith.divf %503, %504 : vector<16x1xf32>
      %cst_208 = arith.constant 9.99999997E-7 : f32
      %506 = vector.broadcast %cst_208 : f32 to vector<16x1xf32>
      %507 = arith.addf %505, %506 : vector<16x1xf32>
      %508 = math.rsqrt %507 : vector<16x1xf32>
      %509 = vector.broadcast %508 : vector<16x1xf32> to vector<16x32xf32>
      %510 = arith.mulf %499, %509 : vector<16x32xf32>
      %511 = vector.broadcast %500 : vector<1x32xf32> to vector<16x32xf32>
      %512 = arith.mulf %510, %511 : vector<16x32xf32>
      %c0_209 = arith.constant 0 : index
      %c0_210 = arith.constant 0 : index
      %c0_211 = arith.constant 0 : index
      %513 = vector.load %arg5[%c0_209, %c0_210, %c0_211] : memref<1x16x32xf32, #tpu.memory_space<vmem>>, vector<1x16x32xf32>
      %514 = vector.shape_cast %513 : vector<1x16x32xf32> to vector<16x32xf32>
      %515 = arith.addf %512, %514 : vector<16x32xf32>
      %c1_212 = arith.constant 1 : index
      %c0_213 = arith.constant 0 : index
      %c0_214 = arith.constant 0 : index
      %516 = vector.load %arg3[%c1_212, %c0_213, %c0_214] : memref<2x16x48xf32, #tpu.memory_space<vmem>>, vector<1x16x48xf32>
      %517 = vector.shape_cast %516 : vector<1x16x48xf32> to vector<16x48xf32>
      %518 = arith.truncf %517 : vector<16x48xf32> to vector<16x48xbf16>
      %c0_215 = arith.constant 0 : index
      %c0_216 = arith.constant 0 : index
      %519 = vector.load %arg7[%c0_215, %c0_216] : memref<48x32xbf16, #tpu.memory_space<vmem>>, vector<48x32xbf16>
      %cst_217 = arith.constant dense<0.000000e+00> : vector<16x32xf32>
      %520 = tpu.matmul %518, %519, %cst_217 {dimension_numbers = #tpu.dot_dimension_numbers<[1], [0], [0], [1], [0, 0, 1, 1], [], []>} : vector<16x48xbf16>, vector<48x32xbf16>, vector<16x32xf32> -> vector<16x32xf32>
      %c0_218 = arith.constant 0 : index
      %c0_219 = arith.constant 0 : index
      %521 = vector.load %arg8[%c0_218, %c0_219] : memref<1x32xf32, #tpu.memory_space<vmem>>, vector<1x32xf32>
      %522 = vector.broadcast %521 : vector<1x32xf32> to vector<16x32xf32>
      %523 = arith.addf %520, %522 : vector<16x32xf32>
      %524 = arith.truncf %523 : vector<16x32xf32> to vector<16x32xbf16>
      %c1_220 = arith.constant 1 : index
      %c0_221 = arith.constant 0 : index
      %c0_222 = arith.constant 0 : index
      %525 = vector.load %arg20[%c1_220, %c0_221, %c0_222] : memref<2x32x32xbf16, #tpu.memory_space<vmem>>, vector<1x16x32xbf16>
      %526 = vector.shape_cast %525 : vector<1x16x32xbf16> to vector<16x32xbf16>
      %527 = vector.shape_cast %524 : vector<16x32xbf16> to vector<1x16x32xbf16>
      tpu.vector_store %arg20[%c1_220, %c0_221, %c0_222], %527 {strides = array<i32>} : memref<2x32x32xbf16, #tpu.memory_space<vmem>>, vector<1x16x32xbf16>,
      %528 = arith.truncf %515 : vector<16x32xf32> to vector<16x32xbf16>
      %c1_223 = arith.constant 1 : index
      %c16_224 = arith.constant 16 : index
      %c0_225 = arith.constant 0 : index
      %529 = vector.load %arg20[%c1_223, %c16_224, %c0_225] : memref<2x32x32xbf16, #tpu.memory_space<vmem>>, vector<1x16x32xbf16>
      %530 = vector.shape_cast %529 : vector<1x16x32xbf16> to vector<16x32xbf16>
      %531 = vector.shape_cast %528 : vector<16x32xbf16> to vector<1x16x32xbf16>
      tpu.vector_store %arg20[%c1_223, %c16_224, %c0_225], %531 {strides = array<i32>} : memref<2x32x32xbf16, #tpu.memory_space<vmem>>, vector<1x16x32xbf16>,
      %c1_226 = arith.constant 1 : index
      %c0_227 = arith.constant 0 : index
      %c0_228 = arith.constant 0 : index
      %532 = vector.load %arg4[%c1_226, %c0_227, %c0_228] : memref<2x1x32xf32, #tpu.memory_space<vmem>>, vector<1x1x32xf32>
      %533 = vector.shape_cast %532 : vector<1x1x32xf32> to vector<1x32xf32>
      %cst_229 = arith.constant 5.000000e-01 : f32
      %534 = vector.broadcast %cst_229 : f32 to vector<1x32xf32>
      %535 = arith.cmpf ogt, %533, %534 : vector<1x32xf32>
      %536 = vector.broadcast %535 : vector<1x32xi1> to vector<16x32xi1>
      %537 = arith.andi %450, %536 : vector<16x32xi1>
      %cst_230 = arith.constant 0.000000e+00 : f32
      %cst_231 = arith.constant -1.000000e+30 : f32
      %538 = vector.broadcast %cst_230 : f32 to vector<16x32xf32>
      %539 = vector.broadcast %cst_231 : f32 to vector<16x32xf32>
      %540 = arith.select %537, %538, %539 : vector<16x32xi1>, vector<16x32xf32>
      %541 = arith.truncf %540 : vector<16x32xf32> to vector<16x32xbf16>
      %c1_232 = arith.constant 1 : index
      %c0_233 = arith.constant 0 : index
      %c0_234 = arith.constant 0 : index
      %542 = vector.load %arg21[%c1_232, %c0_233, %c0_234] : memref<2x16x32xbf16, #tpu.memory_space<vmem>>, vector<1x16x32xbf16>
      %543 = vector.shape_cast %542 : vector<1x16x32xbf16> to vector<16x32xbf16>
      %544 = vector.shape_cast %541 : vector<16x32xbf16> to vector<1x16x32xbf16>
      tpu.vector_store %arg21[%c1_232, %c0_233, %c0_234], %544 {strides = array<i32>} : memref<2x16x32xbf16, #tpu.memory_space<vmem>>, vector<1x16x32xbf16>,
    } else {
    }
    %c0 = arith.constant 0 : index
    %c0_1 = arith.constant 0 : index
    %c0_2 = arith.constant 0 : index
    %3 = vector.load %arg9[%c0, %c0_1, %c0_2] : memref<1x32x32xbf16, #tpu.memory_space<vmem>>, vector<1x32x32xbf16>
    %4 = vector.shape_cast %3 : vector<1x32x32xbf16> to vector<32x32xbf16>
    %c0_3 = arith.constant 0 : index
    %c0_4 = arith.constant 0 : index
    %c0_5 = arith.constant 0 : index
    %5 = vector.load %arg11[%c0_3, %c0_4, %c0_5] : memref<1x32x32xbf16, #tpu.memory_space<vmem>>, vector<1x32x32xbf16>
    %6 = vector.shape_cast %5 : vector<1x32x32xbf16> to vector<32x32xbf16>
    %c0_6 = arith.constant 0 : index
    %c0_7 = arith.constant 0 : index
    %c0_8 = arith.constant 0 : index
    %7 = vector.load %arg13[%c0_6, %c0_7, %c0_8] : memref<1x32x32xbf16, #tpu.memory_space<vmem>>, vector<1x32x32xbf16>
    %8 = vector.shape_cast %7 : vector<1x32x32xbf16> to vector<32x32xbf16>
    %c0_9 = arith.constant 0 : index
    %c0_10 = arith.constant 0 : index
    %c0_11 = arith.constant 0 : index
    %9 = vector.load %arg10[%c0_9, %c0_10, %c0_11] : memref<1x1x32xf32, #tpu.memory_space<vmem>>, vector<1x1x32xf32>
    %10 = vector.shape_cast %9 : vector<1x1x32xf32> to vector<1x32xf32>
    %c0_12 = arith.constant 0 : index
    %c0_13 = arith.constant 0 : index
    %c0_14 = arith.constant 0 : index
    %11 = vector.load %arg12[%c0_12, %c0_13, %c0_14] : memref<1x1x32xf32, #tpu.memory_space<vmem>>, vector<1x1x32xf32>
    %12 = vector.shape_cast %11 : vector<1x1x32xf32> to vector<1x32xf32>
    %c0_15 = arith.constant 0 : index
    %c0_16 = arith.constant 0 : index
    %c0_17 = arith.constant 0 : index
    %13 = vector.load %arg14[%c0_15, %c0_16, %c0_17] : memref<1x1x32xf32, #tpu.memory_space<vmem>>, vector<1x1x32xf32>
    %14 = vector.shape_cast %13 : vector<1x1x32xf32> to vector<1x32xf32>
    %c0_18 = arith.constant 0 : index
    %c0_19 = arith.constant 0 : index
    %c0_20 = arith.constant 0 : index
    %15 = vector.load %arg20[%c0_18, %c0_19, %c0_20] : memref<2x32x32xbf16, #tpu.memory_space<vmem>>, vector<1x32x32xbf16>
    %16 = vector.shape_cast %15 : vector<1x32x32xbf16> to vector<32x32xbf16>
    %c0_21 = arith.constant 0 : index
    %c16 = arith.constant 16 : index
    %c0_22 = arith.constant 0 : index
    %17 = vector.load %arg20[%c0_21, %c16, %c0_22] : memref<2x32x32xbf16, #tpu.memory_space<vmem>>, vector<1x16x32xbf16>
    %18 = vector.shape_cast %17 : vector<1x16x32xbf16> to vector<16x32xbf16>
    %cst = arith.constant dense<0.000000e+00> : vector<16x32xf32>
    %19 = tpu.matmul %18, %4, %cst {dimension_numbers = #tpu.dot_dimension_numbers<[1], [0], [0], [1], [0, 0, 1, 1], [], []>} : vector<16x32xbf16>, vector<32x32xbf16>, vector<16x32xf32> -> vector<16x32xf32>
    %20 = vector.broadcast %10 : vector<1x32xf32> to vector<16x32xf32>
    %21 = arith.addf %19, %20 : vector<16x32xf32>
    %cst_23 = arith.constant dense<0.000000e+00> : vector<32x32xf32>
    %22 = tpu.matmul %16, %6, %cst_23 {dimension_numbers = #tpu.dot_dimension_numbers<[1], [0], [0], [1], [0, 0, 1, 1], [], []>} : vector<32x32xbf16>, vector<32x32xbf16>, vector<32x32xf32> -> vector<32x32xf32>
    %23 = vector.broadcast %12 : vector<1x32xf32> to vector<32x32xf32>
    %24 = arith.addf %22, %23 : vector<32x32xf32>
    %cst_24 = arith.constant dense<0.000000e+00> : vector<32x32xf32>
    %25 = tpu.matmul %16, %8, %cst_24 {dimension_numbers = #tpu.dot_dimension_numbers<[1], [0], [0], [1], [0, 0, 1, 1], [], []>} : vector<32x32xbf16>, vector<32x32xbf16>, vector<32x32xf32> -> vector<32x32xf32>
    %26 = vector.broadcast %14 : vector<1x32xf32> to vector<32x32xf32>
    %27 = arith.addf %25, %26 : vector<32x32xf32>
    %c0_25 = arith.constant 0 : index
    %c0_26 = arith.constant 0 : index
    %c0_27 = arith.constant 0 : index
    %28 = vector.load %arg21[%c0_25, %c0_26, %c0_27] : memref<2x16x32xbf16, #tpu.memory_space<vmem>>, vector<1x16x32xbf16>
    %29 = vector.shape_cast %28 : vector<1x16x32xbf16> to vector<16x32xbf16>
    %30 = arith.extf %29 : vector<16x32xbf16> to vector<16x32xf32>
    %31 = vector.extract_strided_slice %21 {offsets = [0, 0], sizes = [16, 8], strides = [1, 1]} : vector<16x32xf32> to vector<16x8xf32>
    %c0_28 = arith.constant 0 : index
    %c0_29 = arith.constant 0 : index
    %32 = vector.load %arg17[%c0_28, %c0_29] : memref<1x8xf32, #tpu.memory_space<vmem>>, vector<1x8xf32>
    %33 = arith.mulf %31, %31 : vector<16x8xf32>
    %cst_30 = arith.constant dense<0.000000e+00> : vector<16xf32>
    %34 = vector.multi_reduction <add>, %33, %cst_30 [1] : vector<16x8xf32> to vector<16xf32>
    %35 = vector.shape_cast %34 : vector<16xf32> to vector<16x1xf32>
    %cst_31 = arith.constant 8.000000e+00 : f32
    %36 = vector.broadcast %cst_31 : f32 to vector<16x1xf32>
    %37 = arith.divf %35, %36 : vector<16x1xf32>
    %cst_32 = arith.constant 9.99999997E-7 : f32
    %38 = vector.broadcast %cst_32 : f32 to vector<16x1xf32>
    %39 = arith.addf %37, %38 : vector<16x1xf32>
    %40 = math.rsqrt %39 : vector<16x1xf32>
    %41 = vector.broadcast %40 : vector<16x1xf32> to vector<16x8xf32>
    %42 = arith.mulf %31, %41 : vector<16x8xf32>
    %43 = vector.broadcast %32 : vector<1x8xf32> to vector<16x8xf32>
    %44 = arith.mulf %42, %43 : vector<16x8xf32>
    %cst_33 = arith.constant 0.353553385 : f32
    %45 = vector.broadcast %cst_33 : f32 to vector<16x8xf32>
    %46 = arith.mulf %44, %45 : vector<16x8xf32>
    %47 = arith.truncf %46 : vector<16x8xf32> to vector<16x8xbf16>
    %48 = vector.extract_strided_slice %24 {offsets = [0, 0], sizes = [32, 8], strides = [1, 1]} : vector<32x32xf32> to vector<32x8xf32>
    %c0_34 = arith.constant 0 : index
    %c0_35 = arith.constant 0 : index
    %49 = vector.load %arg18[%c0_34, %c0_35] : memref<1x8xf32, #tpu.memory_space<vmem>>, vector<1x8xf32>
    %50 = arith.mulf %48, %48 : vector<32x8xf32>
    %cst_36 = arith.constant dense<0.000000e+00> : vector<32xf32>
    %51 = vector.multi_reduction <add>, %50, %cst_36 [1] : vector<32x8xf32> to vector<32xf32>
    %52 = vector.shape_cast %51 : vector<32xf32> to vector<32x1xf32>
    %cst_37 = arith.constant 8.000000e+00 : f32
    %53 = vector.broadcast %cst_37 : f32 to vector<32x1xf32>
    %54 = arith.divf %52, %53 : vector<32x1xf32>
    %cst_38 = arith.constant 9.99999997E-7 : f32
    %55 = vector.broadcast %cst_38 : f32 to vector<32x1xf32>
    %56 = arith.addf %54, %55 : vector<32x1xf32>
    %57 = math.rsqrt %56 : vector<32x1xf32>
    %58 = vector.broadcast %57 : vector<32x1xf32> to vector<32x8xf32>
    %59 = arith.mulf %48, %58 : vector<32x8xf32>
    %60 = vector.broadcast %49 : vector<1x8xf32> to vector<32x8xf32>
    %61 = arith.mulf %59, %60 : vector<32x8xf32>
    %62 = arith.truncf %61 : vector<32x8xf32> to vector<32x8xbf16>
    %cst_39 = arith.constant dense<0.000000e+00> : vector<16x32xf32>
    %63 = tpu.matmul %47, %62, %cst_39 {dimension_numbers = #tpu.dot_dimension_numbers<[1], [1], [0], [0], [0, 0, 1, 0], [], []>} : vector<16x8xbf16>, vector<32x8xbf16>, vector<16x32xf32> -> vector<16x32xf32>
    %64 = arith.addf %63, %30 : vector<16x32xf32>
    %cst_40 = arith.constant dense<0xFF800000> : vector<16xf32>
    %65 = vector.multi_reduction <maximumf>, %64, %cst_40 [1] : vector<16x32xf32> to vector<16xf32>
    %66 = vector.shape_cast %65 : vector<16xf32> to vector<16x1xf32>
    %67 = vector.broadcast %66 : vector<16x1xf32> to vector<16x32xf32>
    %68 = arith.subf %64, %67 : vector<16x32xf32>
    %69 = math.exp %68 : vector<16x32xf32>
    %cst_41 = arith.constant dense<0.000000e+00> : vector<16xf32>
    %70 = vector.multi_reduction <add>, %69, %cst_41 [1] : vector<16x32xf32> to vector<16xf32>
    %71 = vector.shape_cast %70 : vector<16xf32> to vector<16x1xf32>
    %72 = tpu.reciprocal %71 {approx = true} : vector<16x1xf32> -> vector<16x1xf32>
    %73 = vector.broadcast %72 : vector<16x1xf32> to vector<16x32xf32>
    %74 = arith.mulf %69, %73 : vector<16x32xf32>
    %75 = arith.truncf %74 : vector<16x32xf32> to vector<16x32xbf16>
    %76 = vector.extract_strided_slice %27 {offsets = [0, 0], sizes = [32, 8], strides = [1, 1]} : vector<32x32xf32> to vector<32x8xf32>
    %77 = arith.truncf %76 : vector<32x8xf32> to vector<32x8xbf16>
    %cst_42 = arith.constant dense<0.000000e+00> : vector<16x8xf32>
    %78 = tpu.matmul %75, %77, %cst_42 {dimension_numbers = #tpu.dot_dimension_numbers<[1], [0], [0], [1], [0, 0, 1, 1], [], []>} : vector<16x32xbf16>, vector<32x8xbf16>, vector<16x8xf32> -> vector<16x8xf32>
    %79 = vector.extract_strided_slice %21 {offsets = [0, 8], sizes = [16, 8], strides = [1, 1]} : vector<16x32xf32> to vector<16x8xf32>
    %c0_43 = arith.constant 0 : index
    %c0_44 = arith.constant 0 : index
    %80 = vector.load %arg17[%c0_43, %c0_44] : memref<1x8xf32, #tpu.memory_space<vmem>>, vector<1x8xf32>
    %81 = arith.mulf %79, %79 : vector<16x8xf32>
    %cst_45 = arith.constant dense<0.000000e+00> : vector<16xf32>
    %82 = vector.multi_reduction <add>, %81, %cst_45 [1] : vector<16x8xf32> to vector<16xf32>
    %83 = vector.shape_cast %82 : vector<16xf32> to vector<16x1xf32>
    %cst_46 = arith.constant 8.000000e+00 : f32
    %84 = vector.broadcast %cst_46 : f32 to vector<16x1xf32>
    %85 = arith.divf %83, %84 : vector<16x1xf32>
    %cst_47 = arith.constant 9.99999997E-7 : f32
    %86 = vector.broadcast %cst_47 : f32 to vector<16x1xf32>
    %87 = arith.addf %85, %86 : vector<16x1xf32>
    %88 = math.rsqrt %87 : vector<16x1xf32>
    %89 = vector.broadcast %88 : vector<16x1xf32> to vector<16x8xf32>
    %90 = arith.mulf %79, %89 : vector<16x8xf32>
    %91 = vector.broadcast %80 : vector<1x8xf32> to vector<16x8xf32>
    %92 = arith.mulf %90, %91 : vector<16x8xf32>
    %cst_48 = arith.constant 0.353553385 : f32
    %93 = vector.broadcast %cst_48 : f32 to vector<16x8xf32>
    %94 = arith.mulf %92, %93 : vector<16x8xf32>
    %95 = arith.truncf %94 : vector<16x8xf32> to vector<16x8xbf16>
    %96 = vector.extract_strided_slice %24 {offsets = [0, 8], sizes = [32, 8], strides = [1, 1]} : vector<32x32xf32> to vector<32x8xf32>
    %c0_49 = arith.constant 0 : index
    %c0_50 = arith.constant 0 : index
    %97 = vector.load %arg18[%c0_49, %c0_50] : memref<1x8xf32, #tpu.memory_space<vmem>>, vector<1x8xf32>
    %98 = arith.mulf %96, %96 : vector<32x8xf32>
    %cst_51 = arith.constant dense<0.000000e+00> : vector<32xf32>
    %99 = vector.multi_reduction <add>, %98, %cst_51 [1] : vector<32x8xf32> to vector<32xf32>
    %100 = vector.shape_cast %99 : vector<32xf32> to vector<32x1xf32>
    %cst_52 = arith.constant 8.000000e+00 : f32
    %101 = vector.broadcast %cst_52 : f32 to vector<32x1xf32>
    %102 = arith.divf %100, %101 : vector<32x1xf32>
    %cst_53 = arith.constant 9.99999997E-7 : f32
    %103 = vector.broadcast %cst_53 : f32 to vector<32x1xf32>
    %104 = arith.addf %102, %103 : vector<32x1xf32>
    %105 = math.rsqrt %104 : vector<32x1xf32>
    %106 = vector.broadcast %105 : vector<32x1xf32> to vector<32x8xf32>
    %107 = arith.mulf %96, %106 : vector<32x8xf32>
    %108 = vector.broadcast %97 : vector<1x8xf32> to vector<32x8xf32>
    %109 = arith.mulf %107, %108 : vector<32x8xf32>
    %110 = arith.truncf %109 : vector<32x8xf32> to vector<32x8xbf16>
    %cst_54 = arith.constant dense<0.000000e+00> : vector<16x32xf32>
    %111 = tpu.matmul %95, %110, %cst_54 {dimension_numbers = #tpu.dot_dimension_numbers<[1], [1], [0], [0], [0, 0, 1, 0], [], []>} : vector<16x8xbf16>, vector<32x8xbf16>, vector<16x32xf32> -> vector<16x32xf32>
    %112 = arith.addf %111, %30 : vector<16x32xf32>
    %cst_55 = arith.constant dense<0xFF800000> : vector<16xf32>
    %113 = vector.multi_reduction <maximumf>, %112, %cst_55 [1] : vector<16x32xf32> to vector<16xf32>
    %114 = vector.shape_cast %113 : vector<16xf32> to vector<16x1xf32>
    %115 = vector.broadcast %114 : vector<16x1xf32> to vector<16x32xf32>
    %116 = arith.subf %112, %115 : vector<16x32xf32>
    %117 = math.exp %116 : vector<16x32xf32>
    %cst_56 = arith.constant dense<0.000000e+00> : vector<16xf32>
    %118 = vector.multi_reduction <add>, %117, %cst_56 [1] : vector<16x32xf32> to vector<16xf32>
    %119 = vector.shape_cast %118 : vector<16xf32> to vector<16x1xf32>
    %120 = tpu.reciprocal %119 {approx = true} : vector<16x1xf32> -> vector<16x1xf32>
    %121 = vector.broadcast %120 : vector<16x1xf32> to vector<16x32xf32>
    %122 = arith.mulf %117, %121 : vector<16x32xf32>
    %123 = arith.truncf %122 : vector<16x32xf32> to vector<16x32xbf16>
    %124 = vector.extract_strided_slice %27 {offsets = [0, 8], sizes = [32, 8], strides = [1, 1]} : vector<32x32xf32> to vector<32x8xf32>
    %125 = arith.truncf %124 : vector<32x8xf32> to vector<32x8xbf16>
    %cst_57 = arith.constant dense<0.000000e+00> : vector<16x8xf32>
    %126 = tpu.matmul %123, %125, %cst_57 {dimension_numbers = #tpu.dot_dimension_numbers<[1], [0], [0], [1], [0, 0, 1, 1], [], []>} : vector<16x32xbf16>, vector<32x8xbf16>, vector<16x8xf32> -> vector<16x8xf32>
    %127 = vector.extract_strided_slice %21 {offsets = [0, 16], sizes = [16, 8], strides = [1, 1]} : vector<16x32xf32> to vector<16x8xf32>
    %c0_58 = arith.constant 0 : index
    %c0_59 = arith.constant 0 : index
    %128 = vector.load %arg17[%c0_58, %c0_59] : memref<1x8xf32, #tpu.memory_space<vmem>>, vector<1x8xf32>
    %129 = arith.mulf %127, %127 : vector<16x8xf32>
    %cst_60 = arith.constant dense<0.000000e+00> : vector<16xf32>
    %130 = vector.multi_reduction <add>, %129, %cst_60 [1] : vector<16x8xf32> to vector<16xf32>
    %131 = vector.shape_cast %130 : vector<16xf32> to vector<16x1xf32>
    %cst_61 = arith.constant 8.000000e+00 : f32
    %132 = vector.broadcast %cst_61 : f32 to vector<16x1xf32>
    %133 = arith.divf %131, %132 : vector<16x1xf32>
    %cst_62 = arith.constant 9.99999997E-7 : f32
    %134 = vector.broadcast %cst_62 : f32 to vector<16x1xf32>
    %135 = arith.addf %133, %134 : vector<16x1xf32>
    %136 = math.rsqrt %135 : vector<16x1xf32>
    %137 = vector.broadcast %136 : vector<16x1xf32> to vector<16x8xf32>
    %138 = arith.mulf %127, %137 : vector<16x8xf32>
    %139 = vector.broadcast %128 : vector<1x8xf32> to vector<16x8xf32>
    %140 = arith.mulf %138, %139 : vector<16x8xf32>
    %cst_63 = arith.constant 0.353553385 : f32
    %141 = vector.broadcast %cst_63 : f32 to vector<16x8xf32>
    %142 = arith.mulf %140, %141 : vector<16x8xf32>
    %143 = arith.truncf %142 : vector<16x8xf32> to vector<16x8xbf16>
    %144 = vector.extract_strided_slice %24 {offsets = [0, 16], sizes = [32, 8], strides = [1, 1]} : vector<32x32xf32> to vector<32x8xf32>
    %c0_64 = arith.constant 0 : index
    %c0_65 = arith.constant 0 : index
    %145 = vector.load %arg18[%c0_64, %c0_65] : memref<1x8xf32, #tpu.memory_space<vmem>>, vector<1x8xf32>
    %146 = arith.mulf %144, %144 : vector<32x8xf32>
    %cst_66 = arith.constant dense<0.000000e+00> : vector<32xf32>
    %147 = vector.multi_reduction <add>, %146, %cst_66 [1] : vector<32x8xf32> to vector<32xf32>
    %148 = vector.shape_cast %147 : vector<32xf32> to vector<32x1xf32>
    %cst_67 = arith.constant 8.000000e+00 : f32
    %149 = vector.broadcast %cst_67 : f32 to vector<32x1xf32>
    %150 = arith.divf %148, %149 : vector<32x1xf32>
    %cst_68 = arith.constant 9.99999997E-7 : f32
    %151 = vector.broadcast %cst_68 : f32 to vector<32x1xf32>
    %152 = arith.addf %150, %151 : vector<32x1xf32>
    %153 = math.rsqrt %152 : vector<32x1xf32>
    %154 = vector.broadcast %153 : vector<32x1xf32> to vector<32x8xf32>
    %155 = arith.mulf %144, %154 : vector<32x8xf32>
    %156 = vector.broadcast %145 : vector<1x8xf32> to vector<32x8xf32>
    %157 = arith.mulf %155, %156 : vector<32x8xf32>
    %158 = arith.truncf %157 : vector<32x8xf32> to vector<32x8xbf16>
    %cst_69 = arith.constant dense<0.000000e+00> : vector<16x32xf32>
    %159 = tpu.matmul %143, %158, %cst_69 {dimension_numbers = #tpu.dot_dimension_numbers<[1], [1], [0], [0], [0, 0, 1, 0], [], []>} : vector<16x8xbf16>, vector<32x8xbf16>, vector<16x32xf32> -> vector<16x32xf32>
    %160 = arith.addf %159, %30 : vector<16x32xf32>
    %cst_70 = arith.constant dense<0xFF800000> : vector<16xf32>
    %161 = vector.multi_reduction <maximumf>, %160, %cst_70 [1] : vector<16x32xf32> to vector<16xf32>
    %162 = vector.shape_cast %161 : vector<16xf32> to vector<16x1xf32>
    %163 = vector.broadcast %162 : vector<16x1xf32> to vector<16x32xf32>
    %164 = arith.subf %160, %163 : vector<16x32xf32>
    %165 = math.exp %164 : vector<16x32xf32>
    %cst_71 = arith.constant dense<0.000000e+00> : vector<16xf32>
    %166 = vector.multi_reduction <add>, %165, %cst_71 [1] : vector<16x32xf32> to vector<16xf32>
    %167 = vector.shape_cast %166 : vector<16xf32> to vector<16x1xf32>
    %168 = tpu.reciprocal %167 {approx = true} : vector<16x1xf32> -> vector<16x1xf32>
    %169 = vector.broadcast %168 : vector<16x1xf32> to vector<16x32xf32>
    %170 = arith.mulf %165, %169 : vector<16x32xf32>
    %171 = arith.truncf %170 : vector<16x32xf32> to vector<16x32xbf16>
    %172 = vector.extract_strided_slice %27 {offsets = [0, 16], sizes = [32, 8], strides = [1, 1]} : vector<32x32xf32> to vector<32x8xf32>
    %173 = arith.truncf %172 : vector<32x8xf32> to vector<32x8xbf16>
    %cst_72 = arith.constant dense<0.000000e+00> : vector<16x8xf32>
    %174 = tpu.matmul %171, %173, %cst_72 {dimension_numbers = #tpu.dot_dimension_numbers<[1], [0], [0], [1], [0, 0, 1, 1], [], []>} : vector<16x32xbf16>, vector<32x8xbf16>, vector<16x8xf32> -> vector<16x8xf32>
    %175 = vector.extract_strided_slice %21 {offsets = [0, 24], sizes = [16, 8], strides = [1, 1]} : vector<16x32xf32> to vector<16x8xf32>
    %c0_73 = arith.constant 0 : index
    %c0_74 = arith.constant 0 : index
    %176 = vector.load %arg17[%c0_73, %c0_74] : memref<1x8xf32, #tpu.memory_space<vmem>>, vector<1x8xf32>
    %177 = arith.mulf %175, %175 : vector<16x8xf32>
    %cst_75 = arith.constant dense<0.000000e+00> : vector<16xf32>
    %178 = vector.multi_reduction <add>, %177, %cst_75 [1] : vector<16x8xf32> to vector<16xf32>
    %179 = vector.shape_cast %178 : vector<16xf32> to vector<16x1xf32>
    %cst_76 = arith.constant 8.000000e+00 : f32
    %180 = vector.broadcast %cst_76 : f32 to vector<16x1xf32>
    %181 = arith.divf %179, %180 : vector<16x1xf32>
    %cst_77 = arith.constant 9.99999997E-7 : f32
    %182 = vector.broadcast %cst_77 : f32 to vector<16x1xf32>
    %183 = arith.addf %181, %182 : vector<16x1xf32>
    %184 = math.rsqrt %183 : vector<16x1xf32>
    %185 = vector.broadcast %184 : vector<16x1xf32> to vector<16x8xf32>
    %186 = arith.mulf %175, %185 : vector<16x8xf32>
    %187 = vector.broadcast %176 : vector<1x8xf32> to vector<16x8xf32>
    %188 = arith.mulf %186, %187 : vector<16x8xf32>
    %cst_78 = arith.constant 0.353553385 : f32
    %189 = vector.broadcast %cst_78 : f32 to vector<16x8xf32>
    %190 = arith.mulf %188, %189 : vector<16x8xf32>
    %191 = arith.truncf %190 : vector<16x8xf32> to vector<16x8xbf16>
    %192 = vector.extract_strided_slice %24 {offsets = [0, 24], sizes = [32, 8], strides = [1, 1]} : vector<32x32xf32> to vector<32x8xf32>
    %c0_79 = arith.constant 0 : index
    %c0_80 = arith.constant 0 : index
    %193 = vector.load %arg18[%c0_79, %c0_80] : memref<1x8xf32, #tpu.memory_space<vmem>>, vector<1x8xf32>
    %194 = arith.mulf %192, %192 : vector<32x8xf32>
    %cst_81 = arith.constant dense<0.000000e+00> : vector<32xf32>
    %195 = vector.multi_reduction <add>, %194, %cst_81 [1] : vector<32x8xf32> to vector<32xf32>
    %196 = vector.shape_cast %195 : vector<32xf32> to vector<32x1xf32>
    %cst_82 = arith.constant 8.000000e+00 : f32
    %197 = vector.broadcast %cst_82 : f32 to vector<32x1xf32>
    %198 = arith.divf %196, %197 : vector<32x1xf32>
    %cst_83 = arith.constant 9.99999997E-7 : f32
    %199 = vector.broadcast %cst_83 : f32 to vector<32x1xf32>
    %200 = arith.addf %198, %199 : vector<32x1xf32>
    %201 = math.rsqrt %200 : vector<32x1xf32>
    %202 = vector.broadcast %201 : vector<32x1xf32> to vector<32x8xf32>
    %203 = arith.mulf %192, %202 : vector<32x8xf32>
    %204 = vector.broadcast %193 : vector<1x8xf32> to vector<32x8xf32>
    %205 = arith.mulf %203, %204 : vector<32x8xf32>
    %206 = arith.truncf %205 : vector<32x8xf32> to vector<32x8xbf16>
    %cst_84 = arith.constant dense<0.000000e+00> : vector<16x32xf32>
    %207 = tpu.matmul %191, %206, %cst_84 {dimension_numbers = #tpu.dot_dimension_numbers<[1], [1], [0], [0], [0, 0, 1, 0], [], []>} : vector<16x8xbf16>, vector<32x8xbf16>, vector<16x32xf32> -> vector<16x32xf32>
    %208 = arith.addf %207, %30 : vector<16x32xf32>
    %cst_85 = arith.constant dense<0xFF800000> : vector<16xf32>
    %209 = vector.multi_reduction <maximumf>, %208, %cst_85 [1] : vector<16x32xf32> to vector<16xf32>
    %210 = vector.shape_cast %209 : vector<16xf32> to vector<16x1xf32>
    %211 = vector.broadcast %210 : vector<16x1xf32> to vector<16x32xf32>
    %212 = arith.subf %208, %211 : vector<16x32xf32>
    %213 = math.exp %212 : vector<16x32xf32>
    %cst_86 = arith.constant dense<0.000000e+00> : vector<16xf32>
    %214 = vector.multi_reduction <add>, %213, %cst_86 [1] : vector<16x32xf32> to vector<16xf32>
    %215 = vector.shape_cast %214 : vector<16xf32> to vector<16x1xf32>
    %216 = tpu.reciprocal %215 {approx = true} : vector<16x1xf32> -> vector<16x1xf32>
    %217 = vector.broadcast %216 : vector<16x1xf32> to vector<16x32xf32>
    %218 = arith.mulf %213, %217 : vector<16x32xf32>
    %219 = arith.truncf %218 : vector<16x32xf32> to vector<16x32xbf16>
    %220 = vector.extract_strided_slice %27 {offsets = [0, 24], sizes = [32, 8], strides = [1, 1]} : vector<32x32xf32> to vector<32x8xf32>
    %221 = arith.truncf %220 : vector<32x8xf32> to vector<32x8xbf16>
    %cst_87 = arith.constant dense<0.000000e+00> : vector<16x8xf32>
    %222 = tpu.matmul %219, %221, %cst_87 {dimension_numbers = #tpu.dot_dimension_numbers<[1], [0], [0], [1], [0, 0, 1, 1], [], []>} : vector<16x32xbf16>, vector<32x8xbf16>, vector<16x8xf32> -> vector<16x8xf32>
    %223 = tpu.concatenate %78, %126, %174, %222 in 1 : vector<16x8xf32>, vector<16x8xf32>, vector<16x8xf32>, vector<16x8xf32> -> vector<16x32xf32>
    %224 = arith.truncf %223 : vector<16x32xf32> to vector<16x32xbf16>
    %c0_88 = arith.constant 0 : index
    %225 = arith.index_cast %arg1 : i32 to index
    %c0_89 = arith.constant 0 : index
    %c0_90 = arith.constant 0 : index
    %226 = vector.load %arg22[%c0_88, %225, %c0_89, %c0_90] : memref<2x1x16x32xbf16, #tpu.memory_space<vmem>>, vector<1x1x16x32xbf16>
    %227 = vector.shape_cast %226 : vector<1x1x16x32xbf16> to vector<16x32xbf16>
    %228 = vector.shape_cast %224 : vector<16x32xbf16> to vector<1x1x16x32xbf16>
    tpu.vector_store %arg22[%c0_88, %225, %c0_89, %c0_90], %228 {strides = array<i32>} : memref<2x1x16x32xbf16, #tpu.memory_space<vmem>>, vector<1x1x16x32xbf16>,
    %c1 = arith.constant 1 : index
    %c0_91 = arith.constant 0 : index
    %c0_92 = arith.constant 0 : index
    %229 = vector.load %arg20[%c1, %c0_91, %c0_92] : memref<2x32x32xbf16, #tpu.memory_space<vmem>>, vector<1x32x32xbf16>
    %230 = vector.shape_cast %229 : vector<1x32x32xbf16> to vector<32x32xbf16>
    %c1_93 = arith.constant 1 : index
    %c16_94 = arith.constant 16 : index
    %c0_95 = arith.constant 0 : index
    %231 = vector.load %arg20[%c1_93, %c16_94, %c0_95] : memref<2x32x32xbf16, #tpu.memory_space<vmem>>, vector<1x16x32xbf16>
    %232 = vector.shape_cast %231 : vector<1x16x32xbf16> to vector<16x32xbf16>
    %cst_96 = arith.constant dense<0.000000e+00> : vector<16x32xf32>
    %233 = tpu.matmul %232, %4, %cst_96 {dimension_numbers = #tpu.dot_dimension_numbers<[1], [0], [0], [1], [0, 0, 1, 1], [], []>} : vector<16x32xbf16>, vector<32x32xbf16>, vector<16x32xf32> -> vector<16x32xf32>
    %234 = vector.broadcast %10 : vector<1x32xf32> to vector<16x32xf32>
    %235 = arith.addf %233, %234 : vector<16x32xf32>
    %cst_97 = arith.constant dense<0.000000e+00> : vector<32x32xf32>
    %236 = tpu.matmul %230, %6, %cst_97 {dimension_numbers = #tpu.dot_dimension_numbers<[1], [0], [0], [1], [0, 0, 1, 1], [], []>} : vector<32x32xbf16>, vector<32x32xbf16>, vector<32x32xf32> -> vector<32x32xf32>
    %237 = vector.broadcast %12 : vector<1x32xf32> to vector<32x32xf32>
    %238 = arith.addf %236, %237 : vector<32x32xf32>
    %cst_98 = arith.constant dense<0.000000e+00> : vector<32x32xf32>
    %239 = tpu.matmul %230, %8, %cst_98 {dimension_numbers = #tpu.dot_dimension_numbers<[1], [0], [0], [1], [0, 0, 1, 1], [], []>} : vector<32x32xbf16>, vector<32x32xbf16>, vector<32x32xf32> -> vector<32x32xf32>
    %240 = vector.broadcast %14 : vector<1x32xf32> to vector<32x32xf32>
    %241 = arith.addf %239, %240 : vector<32x32xf32>
    %c1_99 = arith.constant 1 : index
    %c0_100 = arith.constant 0 : index
    %c0_101 = arith.constant 0 : index
    %242 = vector.load %arg21[%c1_99, %c0_100, %c0_101] : memref<2x16x32xbf16, #tpu.memory_space<vmem>>, vector<1x16x32xbf16>
    %243 = vector.shape_cast %242 : vector<1x16x32xbf16> to vector<16x32xbf16>
    %244 = arith.extf %243 : vector<16x32xbf16> to vector<16x32xf32>
    %245 = vector.extract_strided_slice %235 {offsets = [0, 0], sizes = [16, 8], strides = [1, 1]} : vector<16x32xf32> to vector<16x8xf32>
    %c0_102 = arith.constant 0 : index
    %c0_103 = arith.constant 0 : index
    %246 = vector.load %arg17[%c0_102, %c0_103] : memref<1x8xf32, #tpu.memory_space<vmem>>, vector<1x8xf32>
    %247 = arith.mulf %245, %245 : vector<16x8xf32>
    %cst_104 = arith.constant dense<0.000000e+00> : vector<16xf32>
    %248 = vector.multi_reduction <add>, %247, %cst_104 [1] : vector<16x8xf32> to vector<16xf32>
    %249 = vector.shape_cast %248 : vector<16xf32> to vector<16x1xf32>
    %cst_105 = arith.constant 8.000000e+00 : f32
    %250 = vector.broadcast %cst_105 : f32 to vector<16x1xf32>
    %251 = arith.divf %249, %250 : vector<16x1xf32>
    %cst_106 = arith.constant 9.99999997E-7 : f32
    %252 = vector.broadcast %cst_106 : f32 to vector<16x1xf32>
    %253 = arith.addf %251, %252 : vector<16x1xf32>
    %254 = math.rsqrt %253 : vector<16x1xf32>
    %255 = vector.broadcast %254 : vector<16x1xf32> to vector<16x8xf32>
    %256 = arith.mulf %245, %255 : vector<16x8xf32>
    %257 = vector.broadcast %246 : vector<1x8xf32> to vector<16x8xf32>
    %258 = arith.mulf %256, %257 : vector<16x8xf32>
    %cst_107 = arith.constant 0.353553385 : f32
    %259 = vector.broadcast %cst_107 : f32 to vector<16x8xf32>
    %260 = arith.mulf %258, %259 : vector<16x8xf32>
    %261 = arith.truncf %260 : vector<16x8xf32> to vector<16x8xbf16>
    %262 = vector.extract_strided_slice %238 {offsets = [0, 0], sizes = [32, 8], strides = [1, 1]} : vector<32x32xf32> to vector<32x8xf32>
    %c0_108 = arith.constant 0 : index
    %c0_109 = arith.constant 0 : index
    %263 = vector.load %arg18[%c0_108, %c0_109] : memref<1x8xf32, #tpu.memory_space<vmem>>, vector<1x8xf32>
    %264 = arith.mulf %262, %262 : vector<32x8xf32>
    %cst_110 = arith.constant dense<0.000000e+00> : vector<32xf32>
    %265 = vector.multi_reduction <add>, %264, %cst_110 [1] : vector<32x8xf32> to vector<32xf32>
    %266 = vector.shape_cast %265 : vector<32xf32> to vector<32x1xf32>
    %cst_111 = arith.constant 8.000000e+00 : f32
    %267 = vector.broadcast %cst_111 : f32 to vector<32x1xf32>
    %268 = arith.divf %266, %267 : vector<32x1xf32>
    %cst_112 = arith.constant 9.99999997E-7 : f32
    %269 = vector.broadcast %cst_112 : f32 to vector<32x1xf32>
    %270 = arith.addf %268, %269 : vector<32x1xf32>
    %271 = math.rsqrt %270 : vector<32x1xf32>
    %272 = vector.broadcast %271 : vector<32x1xf32> to vector<32x8xf32>
    %273 = arith.mulf %262, %272 : vector<32x8xf32>
    %274 = vector.broadcast %263 : vector<1x8xf32> to vector<32x8xf32>
    %275 = arith.mulf %273, %274 : vector<32x8xf32>
    %276 = arith.truncf %275 : vector<32x8xf32> to vector<32x8xbf16>
    %cst_113 = arith.constant dense<0.000000e+00> : vector<16x32xf32>
    %277 = tpu.matmul %261, %276, %cst_113 {dimension_numbers = #tpu.dot_dimension_numbers<[1], [1], [0], [0], [0, 0, 1, 0], [], []>} : vector<16x8xbf16>, vector<32x8xbf16>, vector<16x32xf32> -> vector<16x32xf32>
    %278 = arith.addf %277, %244 : vector<16x32xf32>
    %cst_114 = arith.constant dense<0xFF800000> : vector<16xf32>
    %279 = vector.multi_reduction <maximumf>, %278, %cst_114 [1] : vector<16x32xf32> to vector<16xf32>
    %280 = vector.shape_cast %279 : vector<16xf32> to vector<16x1xf32>
    %281 = vector.broadcast %280 : vector<16x1xf32> to vector<16x32xf32>
    %282 = arith.subf %278, %281 : vector<16x32xf32>
    %283 = math.exp %282 : vector<16x32xf32>
    %cst_115 = arith.constant dense<0.000000e+00> : vector<16xf32>
    %284 = vector.multi_reduction <add>, %283, %cst_115 [1] : vector<16x32xf32> to vector<16xf32>
    %285 = vector.shape_cast %284 : vector<16xf32> to vector<16x1xf32>
    %286 = tpu.reciprocal %285 {approx = true} : vector<16x1xf32> -> vector<16x1xf32>
    %287 = vector.broadcast %286 : vector<16x1xf32> to vector<16x32xf32>
    %288 = arith.mulf %283, %287 : vector<16x32xf32>
    %289 = arith.truncf %288 : vector<16x32xf32> to vector<16x32xbf16>
    %290 = vector.extract_strided_slice %241 {offsets = [0, 0], sizes = [32, 8], strides = [1, 1]} : vector<32x32xf32> to vector<32x8xf32>
    %291 = arith.truncf %290 : vector<32x8xf32> to vector<32x8xbf16>
    %cst_116 = arith.constant dense<0.000000e+00> : vector<16x8xf32>
    %292 = tpu.matmul %289, %291, %cst_116 {dimension_numbers = #tpu.dot_dimension_numbers<[1], [0], [0], [1], [0, 0, 1, 1], [], []>} : vector<16x32xbf16>, vector<32x8xbf16>, vector<16x8xf32> -> vector<16x8xf32>
    %293 = vector.extract_strided_slice %235 {offsets = [0, 8], sizes = [16, 8], strides = [1, 1]} : vector<16x32xf32> to vector<16x8xf32>
    %c0_117 = arith.constant 0 : index
    %c0_118 = arith.constant 0 : index
    %294 = vector.load %arg17[%c0_117, %c0_118] : memref<1x8xf32, #tpu.memory_space<vmem>>, vector<1x8xf32>
    %295 = arith.mulf %293, %293 : vector<16x8xf32>
    %cst_119 = arith.constant dense<0.000000e+00> : vector<16xf32>
    %296 = vector.multi_reduction <add>, %295, %cst_119 [1] : vector<16x8xf32> to vector<16xf32>
    %297 = vector.shape_cast %296 : vector<16xf32> to vector<16x1xf32>
    %cst_120 = arith.constant 8.000000e+00 : f32
    %298 = vector.broadcast %cst_120 : f32 to vector<16x1xf32>
    %299 = arith.divf %297, %298 : vector<16x1xf32>
    %cst_121 = arith.constant 9.99999997E-7 : f32
    %300 = vector.broadcast %cst_121 : f32 to vector<16x1xf32>
    %301 = arith.addf %299, %300 : vector<16x1xf32>
    %302 = math.rsqrt %301 : vector<16x1xf32>
    %303 = vector.broadcast %302 : vector<16x1xf32> to vector<16x8xf32>
    %304 = arith.mulf %293, %303 : vector<16x8xf32>
    %305 = vector.broadcast %294 : vector<1x8xf32> to vector<16x8xf32>
    %306 = arith.mulf %304, %305 : vector<16x8xf32>
    %cst_122 = arith.constant 0.353553385 : f32
    %307 = vector.broadcast %cst_122 : f32 to vector<16x8xf32>
    %308 = arith.mulf %306, %307 : vector<16x8xf32>
    %309 = arith.truncf %308 : vector<16x8xf32> to vector<16x8xbf16>
    %310 = vector.extract_strided_slice %238 {offsets = [0, 8], sizes = [32, 8], strides = [1, 1]} : vector<32x32xf32> to vector<32x8xf32>
    %c0_123 = arith.constant 0 : index
    %c0_124 = arith.constant 0 : index
    %311 = vector.load %arg18[%c0_123, %c0_124] : memref<1x8xf32, #tpu.memory_space<vmem>>, vector<1x8xf32>
    %312 = arith.mulf %310, %310 : vector<32x8xf32>
    %cst_125 = arith.constant dense<0.000000e+00> : vector<32xf32>
    %313 = vector.multi_reduction <add>, %312, %cst_125 [1] : vector<32x8xf32> to vector<32xf32>
    %314 = vector.shape_cast %313 : vector<32xf32> to vector<32x1xf32>
    %cst_126 = arith.constant 8.000000e+00 : f32
    %315 = vector.broadcast %cst_126 : f32 to vector<32x1xf32>
    %316 = arith.divf %314, %315 : vector<32x1xf32>
    %cst_127 = arith.constant 9.99999997E-7 : f32
    %317 = vector.broadcast %cst_127 : f32 to vector<32x1xf32>
    %318 = arith.addf %316, %317 : vector<32x1xf32>
    %319 = math.rsqrt %318 : vector<32x1xf32>
    %320 = vector.broadcast %319 : vector<32x1xf32> to vector<32x8xf32>
    %321 = arith.mulf %310, %320 : vector<32x8xf32>
    %322 = vector.broadcast %311 : vector<1x8xf32> to vector<32x8xf32>
    %323 = arith.mulf %321, %322 : vector<32x8xf32>
    %324 = arith.truncf %323 : vector<32x8xf32> to vector<32x8xbf16>
    %cst_128 = arith.constant dense<0.000000e+00> : vector<16x32xf32>
    %325 = tpu.matmul %309, %324, %cst_128 {dimension_numbers = #tpu.dot_dimension_numbers<[1], [1], [0], [0], [0, 0, 1, 0], [], []>} : vector<16x8xbf16>, vector<32x8xbf16>, vector<16x32xf32> -> vector<16x32xf32>
    %326 = arith.addf %325, %244 : vector<16x32xf32>
    %cst_129 = arith.constant dense<0xFF800000> : vector<16xf32>
    %327 = vector.multi_reduction <maximumf>, %326, %cst_129 [1] : vector<16x32xf32> to vector<16xf32>
    %328 = vector.shape_cast %327 : vector<16xf32> to vector<16x1xf32>
    %329 = vector.broadcast %328 : vector<16x1xf32> to vector<16x32xf32>
    %330 = arith.subf %326, %329 : vector<16x32xf32>
    %331 = math.exp %330 : vector<16x32xf32>
    %cst_130 = arith.constant dense<0.000000e+00> : vector<16xf32>
    %332 = vector.multi_reduction <add>, %331, %cst_130 [1] : vector<16x32xf32> to vector<16xf32>
    %333 = vector.shape_cast %332 : vector<16xf32> to vector<16x1xf32>
    %334 = tpu.reciprocal %333 {approx = true} : vector<16x1xf32> -> vector<16x1xf32>
    %335 = vector.broadcast %334 : vector<16x1xf32> to vector<16x32xf32>
    %336 = arith.mulf %331, %335 : vector<16x32xf32>
    %337 = arith.truncf %336 : vector<16x32xf32> to vector<16x32xbf16>
    %338 = vector.extract_strided_slice %241 {offsets = [0, 8], sizes = [32, 8], strides = [1, 1]} : vector<32x32xf32> to vector<32x8xf32>
    %339 = arith.truncf %338 : vector<32x8xf32> to vector<32x8xbf16>
    %cst_131 = arith.constant dense<0.000000e+00> : vector<16x8xf32>
    %340 = tpu.matmul %337, %339, %cst_131 {dimension_numbers = #tpu.dot_dimension_numbers<[1], [0], [0], [1], [0, 0, 1, 1], [], []>} : vector<16x32xbf16>, vector<32x8xbf16>, vector<16x8xf32> -> vector<16x8xf32>
    %341 = vector.extract_strided_slice %235 {offsets = [0, 16], sizes = [16, 8], strides = [1, 1]} : vector<16x32xf32> to vector<16x8xf32>
    %c0_132 = arith.constant 0 : index
    %c0_133 = arith.constant 0 : index
    %342 = vector.load %arg17[%c0_132, %c0_133] : memref<1x8xf32, #tpu.memory_space<vmem>>, vector<1x8xf32>
    %343 = arith.mulf %341, %341 : vector<16x8xf32>
    %cst_134 = arith.constant dense<0.000000e+00> : vector<16xf32>
    %344 = vector.multi_reduction <add>, %343, %cst_134 [1] : vector<16x8xf32> to vector<16xf32>
    %345 = vector.shape_cast %344 : vector<16xf32> to vector<16x1xf32>
    %cst_135 = arith.constant 8.000000e+00 : f32
    %346 = vector.broadcast %cst_135 : f32 to vector<16x1xf32>
    %347 = arith.divf %345, %346 : vector<16x1xf32>
    %cst_136 = arith.constant 9.99999997E-7 : f32
    %348 = vector.broadcast %cst_136 : f32 to vector<16x1xf32>
    %349 = arith.addf %347, %348 : vector<16x1xf32>
    %350 = math.rsqrt %349 : vector<16x1xf32>
    %351 = vector.broadcast %350 : vector<16x1xf32> to vector<16x8xf32>
    %352 = arith.mulf %341, %351 : vector<16x8xf32>
    %353 = vector.broadcast %342 : vector<1x8xf32> to vector<16x8xf32>
    %354 = arith.mulf %352, %353 : vector<16x8xf32>
    %cst_137 = arith.constant 0.353553385 : f32
    %355 = vector.broadcast %cst_137 : f32 to vector<16x8xf32>
    %356 = arith.mulf %354, %355 : vector<16x8xf32>
    %357 = arith.truncf %356 : vector<16x8xf32> to vector<16x8xbf16>
    %358 = vector.extract_strided_slice %238 {offsets = [0, 16], sizes = [32, 8], strides = [1, 1]} : vector<32x32xf32> to vector<32x8xf32>
    %c0_138 = arith.constant 0 : index
    %c0_139 = arith.constant 0 : index
    %359 = vector.load %arg18[%c0_138, %c0_139] : memref<1x8xf32, #tpu.memory_space<vmem>>, vector<1x8xf32>
    %360 = arith.mulf %358, %358 : vector<32x8xf32>
    %cst_140 = arith.constant dense<0.000000e+00> : vector<32xf32>
    %361 = vector.multi_reduction <add>, %360, %cst_140 [1] : vector<32x8xf32> to vector<32xf32>
    %362 = vector.shape_cast %361 : vector<32xf32> to vector<32x1xf32>
    %cst_141 = arith.constant 8.000000e+00 : f32
    %363 = vector.broadcast %cst_141 : f32 to vector<32x1xf32>
    %364 = arith.divf %362, %363 : vector<32x1xf32>
    %cst_142 = arith.constant 9.99999997E-7 : f32
    %365 = vector.broadcast %cst_142 : f32 to vector<32x1xf32>
    %366 = arith.addf %364, %365 : vector<32x1xf32>
    %367 = math.rsqrt %366 : vector<32x1xf32>
    %368 = vector.broadcast %367 : vector<32x1xf32> to vector<32x8xf32>
    %369 = arith.mulf %358, %368 : vector<32x8xf32>
    %370 = vector.broadcast %359 : vector<1x8xf32> to vector<32x8xf32>
    %371 = arith.mulf %369, %370 : vector<32x8xf32>
    %372 = arith.truncf %371 : vector<32x8xf32> to vector<32x8xbf16>
    %cst_143 = arith.constant dense<0.000000e+00> : vector<16x32xf32>
    %373 = tpu.matmul %357, %372, %cst_143 {dimension_numbers = #tpu.dot_dimension_numbers<[1], [1], [0], [0], [0, 0, 1, 0], [], []>} : vector<16x8xbf16>, vector<32x8xbf16>, vector<16x32xf32> -> vector<16x32xf32>
    %374 = arith.addf %373, %244 : vector<16x32xf32>
    %cst_144 = arith.constant dense<0xFF800000> : vector<16xf32>
    %375 = vector.multi_reduction <maximumf>, %374, %cst_144 [1] : vector<16x32xf32> to vector<16xf32>
    %376 = vector.shape_cast %375 : vector<16xf32> to vector<16x1xf32>
    %377 = vector.broadcast %376 : vector<16x1xf32> to vector<16x32xf32>
    %378 = arith.subf %374, %377 : vector<16x32xf32>
    %379 = math.exp %378 : vector<16x32xf32>
    %cst_145 = arith.constant dense<0.000000e+00> : vector<16xf32>
    %380 = vector.multi_reduction <add>, %379, %cst_145 [1] : vector<16x32xf32> to vector<16xf32>
    %381 = vector.shape_cast %380 : vector<16xf32> to vector<16x1xf32>
    %382 = tpu.reciprocal %381 {approx = true} : vector<16x1xf32> -> vector<16x1xf32>
    %383 = vector.broadcast %382 : vector<16x1xf32> to vector<16x32xf32>
    %384 = arith.mulf %379, %383 : vector<16x32xf32>
    %385 = arith.truncf %384 : vector<16x32xf32> to vector<16x32xbf16>
    %386 = vector.extract_strided_slice %241 {offsets = [0, 16], sizes = [32, 8], strides = [1, 1]} : vector<32x32xf32> to vector<32x8xf32>
    %387 = arith.truncf %386 : vector<32x8xf32> to vector<32x8xbf16>
    %cst_146 = arith.constant dense<0.000000e+00> : vector<16x8xf32>
    %388 = tpu.matmul %385, %387, %cst_146 {dimension_numbers = #tpu.dot_dimension_numbers<[1], [0], [0], [1], [0, 0, 1, 1], [], []>} : vector<16x32xbf16>, vector<32x8xbf16>, vector<16x8xf32> -> vector<16x8xf32>
    %389 = vector.extract_strided_slice %235 {offsets = [0, 24], sizes = [16, 8], strides = [1, 1]} : vector<16x32xf32> to vector<16x8xf32>
    %c0_147 = arith.constant 0 : index
    %c0_148 = arith.constant 0 : index
    %390 = vector.load %arg17[%c0_147, %c0_148] : memref<1x8xf32, #tpu.memory_space<vmem>>, vector<1x8xf32>
    %391 = arith.mulf %389, %389 : vector<16x8xf32>
    %cst_149 = arith.constant dense<0.000000e+00> : vector<16xf32>
    %392 = vector.multi_reduction <add>, %391, %cst_149 [1] : vector<16x8xf32> to vector<16xf32>
    %393 = vector.shape_cast %392 : vector<16xf32> to vector<16x1xf32>
    %cst_150 = arith.constant 8.000000e+00 : f32
    %394 = vector.broadcast %cst_150 : f32 to vector<16x1xf32>
    %395 = arith.divf %393, %394 : vector<16x1xf32>
    %cst_151 = arith.constant 9.99999997E-7 : f32
    %396 = vector.broadcast %cst_151 : f32 to vector<16x1xf32>
    %397 = arith.addf %395, %396 : vector<16x1xf32>
    %398 = math.rsqrt %397 : vector<16x1xf32>
    %399 = vector.broadcast %398 : vector<16x1xf32> to vector<16x8xf32>
    %400 = arith.mulf %389, %399 : vector<16x8xf32>
    %401 = vector.broadcast %390 : vector<1x8xf32> to vector<16x8xf32>
    %402 = arith.mulf %400, %401 : vector<16x8xf32>
    %cst_152 = arith.constant 0.353553385 : f32
    %403 = vector.broadcast %cst_152 : f32 to vector<16x8xf32>
    %404 = arith.mulf %402, %403 : vector<16x8xf32>
    %405 = arith.truncf %404 : vector<16x8xf32> to vector<16x8xbf16>
    %406 = vector.extract_strided_slice %238 {offsets = [0, 24], sizes = [32, 8], strides = [1, 1]} : vector<32x32xf32> to vector<32x8xf32>
    %c0_153 = arith.constant 0 : index
    %c0_154 = arith.constant 0 : index
    %407 = vector.load %arg18[%c0_153, %c0_154] : memref<1x8xf32, #tpu.memory_space<vmem>>, vector<1x8xf32>
    %408 = arith.mulf %406, %406 : vector<32x8xf32>
    %cst_155 = arith.constant dense<0.000000e+00> : vector<32xf32>
    %409 = vector.multi_reduction <add>, %408, %cst_155 [1] : vector<32x8xf32> to vector<32xf32>
    %410 = vector.shape_cast %409 : vector<32xf32> to vector<32x1xf32>
    %cst_156 = arith.constant 8.000000e+00 : f32
    %411 = vector.broadcast %cst_156 : f32 to vector<32x1xf32>
    %412 = arith.divf %410, %411 : vector<32x1xf32>
    %cst_157 = arith.constant 9.99999997E-7 : f32
    %413 = vector.broadcast %cst_157 : f32 to vector<32x1xf32>
    %414 = arith.addf %412, %413 : vector<32x1xf32>
    %415 = math.rsqrt %414 : vector<32x1xf32>
    %416 = vector.broadcast %415 : vector<32x1xf32> to vector<32x8xf32>
    %417 = arith.mulf %406, %416 : vector<32x8xf32>
    %418 = vector.broadcast %407 : vector<1x8xf32> to vector<32x8xf32>
    %419 = arith.mulf %417, %418 : vector<32x8xf32>
    %420 = arith.truncf %419 : vector<32x8xf32> to vector<32x8xbf16>
    %cst_158 = arith.constant dense<0.000000e+00> : vector<16x32xf32>
    %421 = tpu.matmul %405, %420, %cst_158 {dimension_numbers = #tpu.dot_dimension_numbers<[1], [1], [0], [0], [0, 0, 1, 0], [], []>} : vector<16x8xbf16>, vector<32x8xbf16>, vector<16x32xf32> -> vector<16x32xf32>
    %422 = arith.addf %421, %244 : vector<16x32xf32>
    %cst_159 = arith.constant dense<0xFF800000> : vector<16xf32>
    %423 = vector.multi_reduction <maximumf>, %422, %cst_159 [1] : vector<16x32xf32> to vector<16xf32>
    %424 = vector.shape_cast %423 : vector<16xf32> to vector<16x1xf32>
    %425 = vector.broadcast %424 : vector<16x1xf32> to vector<16x32xf32>
    %426 = arith.subf %422, %425 : vector<16x32xf32>
    %427 = math.exp %426 : vector<16x32xf32>
    %cst_160 = arith.constant dense<0.000000e+00> : vector<16xf32>
    %428 = vector.multi_reduction <add>, %427, %cst_160 [1] : vector<16x32xf32> to vector<16xf32>
    %429 = vector.shape_cast %428 : vector<16xf32> to vector<16x1xf32>
    %430 = tpu.reciprocal %429 {approx = true} : vector<16x1xf32> -> vector<16x1xf32>
    %431 = vector.broadcast %430 : vector<16x1xf32> to vector<16x32xf32>
    %432 = arith.mulf %427, %431 : vector<16x32xf32>
    %433 = arith.truncf %432 : vector<16x32xf32> to vector<16x32xbf16>
    %434 = vector.extract_strided_slice %241 {offsets = [0, 24], sizes = [32, 8], strides = [1, 1]} : vector<32x32xf32> to vector<32x8xf32>
    %435 = arith.truncf %434 : vector<32x8xf32> to vector<32x8xbf16>
    %cst_161 = arith.constant dense<0.000000e+00> : vector<16x8xf32>
    %436 = tpu.matmul %433, %435, %cst_161 {dimension_numbers = #tpu.dot_dimension_numbers<[1], [0], [0], [1], [0, 0, 1, 1], [], []>} : vector<16x32xbf16>, vector<32x8xbf16>, vector<16x8xf32> -> vector<16x8xf32>
    %437 = tpu.concatenate %292, %340, %388, %436 in 1 : vector<16x8xf32>, vector<16x8xf32>, vector<16x8xf32>, vector<16x8xf32> -> vector<16x32xf32>
    %438 = arith.truncf %437 : vector<16x32xf32> to vector<16x32xbf16>
    %c1_162 = arith.constant 1 : index
    %439 = arith.index_cast %arg1 : i32 to index
    %c0_163 = arith.constant 0 : index
    %c0_164 = arith.constant 0 : index
    %440 = vector.load %arg22[%c1_162, %439, %c0_163, %c0_164] : memref<2x1x16x32xbf16, #tpu.memory_space<vmem>>, vector<1x1x16x32xbf16>
    %441 = vector.shape_cast %440 : vector<1x1x16x32xbf16> to vector<16x32xbf16>
    %442 = vector.shape_cast %438 : vector<16x32xbf16> to vector<1x1x16x32xbf16>
    tpu.vector_store %arg22[%c1_162, %439, %c0_163, %c0_164], %442 {strides = array<i32>} : memref<2x1x16x32xbf16, #tpu.memory_space<vmem>>, vector<1x1x16x32xbf16>,
    %c0_i32_165 = arith.constant 0 : i32
    %443 = arith.cmpi eq, %arg1, %c0_i32_165 : i32
    %444 = arith.extui %443 : i1 to i32
    %c0_i32_166 = arith.constant 0 : i32
    %445 = arith.cmpi ne, %444, %c0_i32_166 : i32
    scf.if %445 {
      %cst_167 = arith.constant 0.000000e+00 : f32
      %446 = vector.broadcast %cst_167 : f32 to vector<16x32xf32>
      %c0_168 = arith.constant 0 : index
      %c0_169 = arith.constant 0 : index
      %c0_170 = arith.constant 0 : index
      %c0_171 = arith.constant 0 : index
      %447 = vector.load %arg22[%c0_168, %c0_169, %c0_170, %c0_171] : memref<2x1x16x32xbf16, #tpu.memory_space<vmem>>, vector<1x1x16x32xbf16>
      %448 = vector.shape_cast %447 : vector<1x1x16x32xbf16> to vector<16x32xbf16>
      %c0_172 = arith.constant 0 : index
      %c0_173 = arith.constant 0 : index
      %c0_174 = arith.constant 0 : index
      %449 = vector.load %arg15[%c0_172, %c0_173, %c0_174] : memref<1x32x32xbf16, #tpu.memory_space<vmem>>, vector<1x32x32xbf16>
      %450 = vector.shape_cast %449 : vector<1x32x32xbf16> to vector<32x32xbf16>
      %cst_175 = arith.constant dense<0.000000e+00> : vector<16x32xf32>
      %451 = tpu.matmul %448, %450, %cst_175 {dimension_numbers = #tpu.dot_dimension_numbers<[1], [0], [0], [1], [0, 0, 1, 1], [], []>} : vector<16x32xbf16>, vector<32x32xbf16>, vector<16x32xf32> -> vector<16x32xf32>
      %452 = arith.addf %446, %451 : vector<16x32xf32>
      %c0_176 = arith.constant 0 : index
      %c0_177 = arith.constant 0 : index
      %453 = vector.load %arg16[%c0_176, %c0_177] : memref<1x32xf32, #tpu.memory_space<vmem>>, vector<1x32xf32>
      %454 = vector.broadcast %453 : vector<1x32xf32> to vector<16x32xf32>
      %455 = arith.addf %452, %454 : vector<16x32xf32>
      %c0_178 = arith.constant 0 : index
      %c0_179 = arith.constant 0 : index
      %c0_180 = arith.constant 0 : index
      %456 = vector.load %arg19[%c0_178, %c0_179, %c0_180] : memref<2x16x32xf32, #tpu.memory_space<vmem>>, vector<1x16x32xf32>
      %457 = vector.shape_cast %456 : vector<1x16x32xf32> to vector<16x32xf32>
      %458 = vector.shape_cast %455 : vector<16x32xf32> to vector<1x16x32xf32>
      tpu.vector_store %arg19[%c0_178, %c0_179, %c0_180], %458 {strides = array<i32>} : memref<2x16x32xf32, #tpu.memory_space<vmem>>, vector<1x16x32xf32>,
      %cst_181 = arith.constant 0.000000e+00 : f32
      %459 = vector.broadcast %cst_181 : f32 to vector<16x32xf32>
      %c1_182 = arith.constant 1 : index
      %c0_183 = arith.constant 0 : index
      %c0_184 = arith.constant 0 : index
      %c0_185 = arith.constant 0 : index
      %460 = vector.load %arg22[%c1_182, %c0_183, %c0_184, %c0_185] : memref<2x1x16x32xbf16, #tpu.memory_space<vmem>>, vector<1x1x16x32xbf16>
      %461 = vector.shape_cast %460 : vector<1x1x16x32xbf16> to vector<16x32xbf16>
      %c0_186 = arith.constant 0 : index
      %c0_187 = arith.constant 0 : index
      %c0_188 = arith.constant 0 : index
      %462 = vector.load %arg15[%c0_186, %c0_187, %c0_188] : memref<1x32x32xbf16, #tpu.memory_space<vmem>>, vector<1x32x32xbf16>
      %463 = vector.shape_cast %462 : vector<1x32x32xbf16> to vector<32x32xbf16>
      %cst_189 = arith.constant dense<0.000000e+00> : vector<16x32xf32>
      %464 = tpu.matmul %461, %463, %cst_189 {dimension_numbers = #tpu.dot_dimension_numbers<[1], [0], [0], [1], [0, 0, 1, 1], [], []>} : vector<16x32xbf16>, vector<32x32xbf16>, vector<16x32xf32> -> vector<16x32xf32>
      %465 = arith.addf %459, %464 : vector<16x32xf32>
      %c0_190 = arith.constant 0 : index
      %c0_191 = arith.constant 0 : index
      %466 = vector.load %arg16[%c0_190, %c0_191] : memref<1x32xf32, #tpu.memory_space<vmem>>, vector<1x32xf32>
      %467 = vector.broadcast %466 : vector<1x32xf32> to vector<16x32xf32>
      %468 = arith.addf %465, %467 : vector<16x32xf32>
      %c1_192 = arith.constant 1 : index
      %c0_193 = arith.constant 0 : index
      %c0_194 = arith.constant 0 : index
      %469 = vector.load %arg19[%c1_192, %c0_193, %c0_194] : memref<2x16x32xf32, #tpu.memory_space<vmem>>, vector<1x16x32xf32>
      %470 = vector.shape_cast %469 : vector<1x16x32xf32> to vector<16x32xf32>
      %471 = vector.shape_cast %468 : vector<16x32xf32> to vector<1x16x32xf32>
      tpu.vector_store %arg19[%c1_192, %c0_193, %c0_194], %471 {strides = array<i32>} : memref<2x16x32xf32, #tpu.memory_space<vmem>>, vector<1x16x32xf32>,
    } else {
    }
    return
  }
  func.func @transform_0(%arg0: i32, %arg1: i32) -> (i32, i32, i32) {
    %c0_i32 = arith.constant 0 : i32
    %c0_i32_0 = arith.constant 0 : i32
    %c0_i32_1 = arith.constant 0 : i32
    return %arg0, %c0_i32, %c0_i32_0 : i32, i32, i32
  }
  func.func @transform_1(%arg0: i32, %arg1: i32) -> (i32, i32, i32) {
    %c0_i32 = arith.constant 0 : i32
    %c0_i32_0 = arith.constant 0 : i32
    %c0_i32_1 = arith.constant 0 : i32
    return %arg0, %c0_i32, %c0_i32_0 : i32, i32, i32
  }
  func.func @transform_2(%arg0: i32, %arg1: i32) -> (i32, i32, i32) {
    %c0_i32 = arith.constant 0 : i32
    %c0_i32_0 = arith.constant 0 : i32
    %c0_i32_1 = arith.constant 0 : i32
    return %arg0, %c0_i32, %c0_i32_0 : i32, i32, i32
  }
  func.func @transform_3(%arg0: i32, %arg1: i32) -> (i32, i32, i32) {
    %c0_i32 = arith.constant 0 : i32
    %c0_i32_0 = arith.constant 0 : i32
    %c0_i32_1 = arith.constant 0 : i32
    %c0_i32_2 = arith.constant 0 : i32
    return %c0_i32, %c0_i32_0, %c0_i32_1 : i32, i32, i32
  }
  func.func @transform_4(%arg0: i32, %arg1: i32) -> (i32, i32) {
    %c0_i32 = arith.constant 0 : i32
    %c0_i32_0 = arith.constant 0 : i32
    %c0_i32_1 = arith.constant 0 : i32
    return %c0_i32, %c0_i32_0 : i32, i32
  }
  func.func @transform_5(%arg0: i32, %arg1: i32) -> (i32, i32) {
    %c0_i32 = arith.constant 0 : i32
    %c0_i32_0 = arith.constant 0 : i32
    %c0_i32_1 = arith.constant 0 : i32
    return %c0_i32, %c0_i32_0 : i32, i32
  }
  func.func @transform_6(%arg0: i32, %arg1: i32) -> (i32, i32) {
    %c0_i32 = arith.constant 0 : i32
    %c0_i32_0 = arith.constant 0 : i32
    %c0_i32_1 = arith.constant 0 : i32
    return %c0_i32, %c0_i32_0 : i32, i32
  }
  func.func @transform_7(%arg0: i32, %arg1: i32) -> (i32, i32, i32) {
    %c0_i32 = arith.constant 0 : i32
    %c0_i32_0 = arith.constant 0 : i32
    %c0_i32_1 = arith.constant 0 : i32
    return %arg1, %c0_i32, %c0_i32_0 : i32, i32, i32
  }
  func.func @transform_8(%arg0: i32, %arg1: i32) -> (i32, i32, i32) {
    %c0_i32 = arith.constant 0 : i32
    %c0_i32_0 = arith.constant 0 : i32
    %c0_i32_1 = arith.constant 0 : i32
    return %arg1, %c0_i32, %c0_i32_0 : i32, i32, i32
  }
  func.func @transform_9(%arg0: i32, %arg1: i32) -> (i32, i32, i32) {
    %c0_i32 = arith.constant 0 : i32
    %c0_i32_0 = arith.constant 0 : i32
    %c0_i32_1 = arith.constant 0 : i32
    return %arg1, %c0_i32, %c0_i32_0 : i32, i32, i32
  }
  func.func @transform_10(%arg0: i32, %arg1: i32) -> (i32, i32, i32) {
    %c0_i32 = arith.constant 0 : i32
    %c0_i32_0 = arith.constant 0 : i32
    %c0_i32_1 = arith.constant 0 : i32
    return %arg1, %c0_i32, %c0_i32_0 : i32, i32, i32
  }
  func.func @transform_11(%arg0: i32, %arg1: i32) -> (i32, i32, i32) {
    %c0_i32 = arith.constant 0 : i32
    %c0_i32_0 = arith.constant 0 : i32
    %c0_i32_1 = arith.constant 0 : i32
    return %arg1, %c0_i32, %c0_i32_0 : i32, i32, i32
  }
  func.func @transform_12(%arg0: i32, %arg1: i32) -> (i32, i32, i32) {
    %c0_i32 = arith.constant 0 : i32
    %c0_i32_0 = arith.constant 0 : i32
    %c0_i32_1 = arith.constant 0 : i32
    return %arg1, %c0_i32, %c0_i32_0 : i32, i32, i32
  }
  func.func @transform_13(%arg0: i32, %arg1: i32) -> (i32, i32, i32) {
    %c0_i32 = arith.constant 0 : i32
    %c0_i32_0 = arith.constant 0 : i32
    %c0_i32_1 = arith.constant 0 : i32
    %c0_i32_2 = arith.constant 0 : i32
    return %c0_i32, %c0_i32_0, %c0_i32_1 : i32, i32, i32
  }
  func.func @transform_14(%arg0: i32, %arg1: i32) -> (i32, i32) {
    %c0_i32 = arith.constant 0 : i32
    %c0_i32_0 = arith.constant 0 : i32
    %c0_i32_1 = arith.constant 0 : i32
    return %c0_i32, %c0_i32_0 : i32, i32
  }
  func.func @transform_15(%arg0: i32, %arg1: i32) -> (i32, i32) {
    %c0_i32 = arith.constant 0 : i32
    %c0_i32_0 = arith.constant 0 : i32
    %c0_i32_1 = arith.constant 0 : i32
    return %c0_i32, %c0_i32_0 : i32, i32
  }
  func.func @transform_16(%arg0: i32, %arg1: i32) -> (i32, i32) {
    %c0_i32 = arith.constant 0 : i32
    %c0_i32_0 = arith.constant 0 : i32
    %c0_i32_1 = arith.constant 0 : i32
    return %c0_i32, %c0_i32_0 : i32, i32
  }
  func.func @transform_17(%arg0: i32, %arg1: i32) -> (i32, i32, i32) {
    %c0_i32 = arith.constant 0 : i32
    %c0_i32_0 = arith.constant 0 : i32
    %c0_i32_1 = arith.constant 0 : i32
    return %arg0, %c0_i32, %c0_i32_0 : i32, i32, i32
  }
}

module attributes {stable_mosaic.version = 11 : i64} {
  func.func @mlp_kernel(%arg0: i32, %arg1: i32, %arg2: memref<2x16x32xf32, #tpu.memory_space<vmem>>, %arg3: memref<2x16x32xf32, #tpu.memory_space<vmem>>, %arg4: memref<1x32xf32, #tpu.memory_space<vmem>>, %arg5: memref<32x128xbf16, #tpu.memory_space<vmem>>, %arg6: memref<1x128xf32, #tpu.memory_space<vmem>>, %arg7: memref<128x32xbf16, #tpu.memory_space<vmem>>, %arg8: memref<1x32xf32, #tpu.memory_space<vmem>>, %arg9: memref<2x16x32xf32, #tpu.memory_space<vmem>>, %arg10: memref<32x32xf32, #tpu.memory_space<vmem>>, %arg11: memref<32x32xbf16, #tpu.memory_space<vmem>>, %arg12: memref<32x32xf32, #tpu.memory_space<vmem>>) attributes {dimension_semantics = [#tpu.dimension_semantics<parallel>, #tpu.dimension_semantics<arbitrary>], iteration_bounds = array<i64: 1, 1>, scalar_prefetch = 0 : i64, scratch_operands = 3 : i64, tpu.core_type = #tpu.core_type<tc>, window_params = [{transform_indices = @transform_0, window_bounds = array<i64: 2, 16, 32>}, {transform_indices = @transform_1, window_bounds = array<i64: 2, 16, 32>}, {pipeline_mode = #tpu.pipeline_mode<synchronous>, transform_indices = @transform_2, window_bounds = array<i64: 1, 32>}, {transform_indices = @transform_3, window_bounds = array<i64: 32, 128>}, {transform_indices = @transform_4, window_bounds = array<i64: 1, 128>}, {transform_indices = @transform_5, window_bounds = array<i64: 128, 32>}, {pipeline_mode = #tpu.pipeline_mode<synchronous>, transform_indices = @transform_6, window_bounds = array<i64: 1, 32>}, {transform_indices = @transform_7, window_bounds = array<i64: 2, 16, 32>}]} {
    %c0_i32 = arith.constant 0 : i32
    %0 = arith.cmpi eq, %arg1, %c0_i32 : i32
    %1 = arith.extui %0 : i1 to i32
    %c0_i32_0 = arith.constant 0 : i32
    %2 = arith.cmpi ne, %1, %c0_i32_0 : i32
    scf.if %2 {
      %c0_19 = arith.constant 0 : index
      %c0_20 = arith.constant 0 : index
      %c0_21 = arith.constant 0 : index
      %31 = vector.load %arg2[%c0_19, %c0_20, %c0_21] : memref<2x16x32xf32, #tpu.memory_space<vmem>>, vector<2x16x32xf32>
      %c0_22 = arith.constant 0 : index
      %c0_23 = arith.constant 0 : index
      %c0_24 = arith.constant 0 : index
      %32 = vector.load %arg3[%c0_22, %c0_23, %c0_24] : memref<2x16x32xf32, #tpu.memory_space<vmem>>, vector<2x16x32xf32>
      %33 = arith.addf %31, %32 : vector<2x16x32xf32>
      %34 = vector.shape_cast %33 : vector<2x16x32xf32> to vector<32x32xf32>
      %c0_25 = arith.constant 0 : index
      %c0_26 = arith.constant 0 : index
      %35 = vector.load %arg10[%c0_25, %c0_26] : memref<32x32xf32, #tpu.memory_space<vmem>>, vector<32x32xf32>
      tpu.vector_store %arg10[%c0_25, %c0_26], %34 {strides = array<i32>} : memref<32x32xf32, #tpu.memory_space<vmem>>, vector<32x32xf32>,
      %c0_27 = arith.constant 0 : index
      %c0_28 = arith.constant 0 : index
      %36 = vector.load %arg4[%c0_27, %c0_28] : memref<1x32xf32, #tpu.memory_space<vmem>>, vector<1x32xf32>
      %37 = arith.mulf %34, %34 : vector<32x32xf32>
      %cst_29 = arith.constant dense<0.000000e+00> : vector<32xf32>
      %38 = vector.multi_reduction <add>, %37, %cst_29 [1] : vector<32x32xf32> to vector<32xf32>
      %39 = vector.shape_cast %38 : vector<32xf32> to vector<32x1xf32>
      %cst_30 = arith.constant 3.200000e+01 : f32
      %40 = vector.broadcast %cst_30 : f32 to vector<32x1xf32>
      %41 = arith.divf %39, %40 : vector<32x1xf32>
      %cst_31 = arith.constant 9.99999997E-7 : f32
      %42 = vector.broadcast %cst_31 : f32 to vector<32x1xf32>
      %43 = arith.addf %41, %42 : vector<32x1xf32>
      %44 = math.rsqrt %43 : vector<32x1xf32>
      %45 = vector.broadcast %44 : vector<32x1xf32> to vector<32x32xf32>
      %46 = arith.mulf %34, %45 : vector<32x32xf32>
      %47 = vector.broadcast %36 : vector<1x32xf32> to vector<32x32xf32>
      %48 = arith.mulf %46, %47 : vector<32x32xf32>
      %49 = arith.truncf %48 : vector<32x32xf32> to vector<32x32xbf16>
      %c0_32 = arith.constant 0 : index
      %c0_33 = arith.constant 0 : index
      %50 = vector.load %arg11[%c0_32, %c0_33] : memref<32x32xbf16, #tpu.memory_space<vmem>>, vector<32x32xbf16>
      tpu.vector_store %arg11[%c0_32, %c0_33], %49 {strides = array<i32>} : memref<32x32xbf16, #tpu.memory_space<vmem>>, vector<32x32xbf16>,
      %cst_34 = arith.constant 0.000000e+00 : f32
      %51 = vector.broadcast %cst_34 : f32 to vector<32x32xf32>
      %c0_35 = arith.constant 0 : index
      %c0_36 = arith.constant 0 : index
      %52 = vector.load %arg12[%c0_35, %c0_36] : memref<32x32xf32, #tpu.memory_space<vmem>>, vector<32x32xf32>
      tpu.vector_store %arg12[%c0_35, %c0_36], %51 {strides = array<i32>} : memref<32x32xf32, #tpu.memory_space<vmem>>, vector<32x32xf32>,
    } else {
    }
    %c0 = arith.constant 0 : index
    %c0_1 = arith.constant 0 : index
    %3 = vector.load %arg11[%c0, %c0_1] : memref<32x32xbf16, #tpu.memory_space<vmem>>, vector<32x32xbf16>
    %c0_2 = arith.constant 0 : index
    %c0_3 = arith.constant 0 : index
    %4 = vector.load %arg5[%c0_2, %c0_3] : memref<32x128xbf16, #tpu.memory_space<vmem>>, vector<32x128xbf16>
    %cst = arith.constant dense<0.000000e+00> : vector<32x128xf32>
    %5 = tpu.matmul %3, %4, %cst {dimension_numbers = #tpu.dot_dimension_numbers<[1], [0], [0], [1], [0, 0, 1, 1], [], []>} : vector<32x32xbf16>, vector<32x128xbf16>, vector<32x128xf32> -> vector<32x128xf32>
    %c0_4 = arith.constant 0 : index
    %c0_5 = arith.constant 0 : index
    %6 = vector.load %arg6[%c0_4, %c0_5] : memref<1x128xf32, #tpu.memory_space<vmem>>, vector<1x128xf32>
    %7 = vector.broadcast %6 : vector<1x128xf32> to vector<32x128xf32>
    %8 = arith.addf %5, %7 : vector<32x128xf32>
    %cst_6 = arith.constant 5.000000e-01 : f32
    %9 = vector.broadcast %cst_6 : f32 to vector<32x128xf32>
    %10 = arith.mulf %9, %8 : vector<32x128xf32>
    %cst_7 = arith.constant 4.471500e-02 : f32
    %11 = vector.broadcast %cst_7 : f32 to vector<32x128xf32>
    %12 = arith.mulf %11, %8 : vector<32x128xf32>
    %13 = arith.mulf %12, %8 : vector<32x128xf32>
    %14 = arith.mulf %13, %8 : vector<32x128xf32>
    %15 = arith.addf %8, %14 : vector<32x128xf32>
    %cst_8 = arith.constant 0.797884583 : f32
    %16 = vector.broadcast %cst_8 : f32 to vector<32x128xf32>
    %17 = arith.mulf %16, %15 : vector<32x128xf32>
    %18 = math.tanh %17 : vector<32x128xf32>
    %cst_9 = arith.constant 1.000000e+00 : f32
    %19 = vector.broadcast %cst_9 : f32 to vector<32x128xf32>
    %20 = arith.addf %19, %18 : vector<32x128xf32>
    %21 = arith.mulf %10, %20 : vector<32x128xf32>
    %c0_10 = arith.constant 0 : index
    %c0_11 = arith.constant 0 : index
    %22 = vector.load %arg12[%c0_10, %c0_11] : memref<32x32xf32, #tpu.memory_space<vmem>>, vector<32x32xf32>
    %23 = arith.truncf %21 : vector<32x128xf32> to vector<32x128xbf16>
    %c0_12 = arith.constant 0 : index
    %c0_13 = arith.constant 0 : index
    %24 = vector.load %arg7[%c0_12, %c0_13] : memref<128x32xbf16, #tpu.memory_space<vmem>>, vector<128x32xbf16>
    %cst_14 = arith.constant dense<0.000000e+00> : vector<32x32xf32>
    %25 = tpu.matmul %23, %24, %cst_14 {dimension_numbers = #tpu.dot_dimension_numbers<[1], [0], [0], [1], [0, 0, 1, 1], [], []>} : vector<32x128xbf16>, vector<128x32xbf16>, vector<32x32xf32> -> vector<32x32xf32>
    %26 = arith.addf %22, %25 : vector<32x32xf32>
    %c0_15 = arith.constant 0 : index
    %c0_16 = arith.constant 0 : index
    %27 = vector.load %arg12[%c0_15, %c0_16] : memref<32x32xf32, #tpu.memory_space<vmem>>, vector<32x32xf32>
    tpu.vector_store %arg12[%c0_15, %c0_16], %26 {strides = array<i32>} : memref<32x32xf32, #tpu.memory_space<vmem>>, vector<32x32xf32>,
    %c0_i32_17 = arith.constant 0 : i32
    %28 = arith.cmpi eq, %arg1, %c0_i32_17 : i32
    %29 = arith.extui %28 : i1 to i32
    %c0_i32_18 = arith.constant 0 : i32
    %30 = arith.cmpi ne, %29, %c0_i32_18 : i32
    scf.if %30 {
      %c0_19 = arith.constant 0 : index
      %c0_20 = arith.constant 0 : index
      %31 = vector.load %arg12[%c0_19, %c0_20] : memref<32x32xf32, #tpu.memory_space<vmem>>, vector<32x32xf32>
      %c0_21 = arith.constant 0 : index
      %c0_22 = arith.constant 0 : index
      %32 = vector.load %arg8[%c0_21, %c0_22] : memref<1x32xf32, #tpu.memory_space<vmem>>, vector<1x32xf32>
      %33 = vector.broadcast %32 : vector<1x32xf32> to vector<32x32xf32>
      %34 = arith.addf %31, %33 : vector<32x32xf32>
      %c0_23 = arith.constant 0 : index
      %c0_24 = arith.constant 0 : index
      %35 = vector.load %arg10[%c0_23, %c0_24] : memref<32x32xf32, #tpu.memory_space<vmem>>, vector<32x32xf32>
      %36 = arith.addf %34, %35 : vector<32x32xf32>
      %37 = vector.shape_cast %36 : vector<32x32xf32> to vector<2x16x32xf32>
      %c0_25 = arith.constant 0 : index
      %c0_26 = arith.constant 0 : index
      %c0_27 = arith.constant 0 : index
      %38 = vector.load %arg9[%c0_25, %c0_26, %c0_27] : memref<2x16x32xf32, #tpu.memory_space<vmem>>, vector<2x16x32xf32>
      tpu.vector_store %arg9[%c0_25, %c0_26, %c0_27], %37 {strides = array<i32>} : memref<2x16x32xf32, #tpu.memory_space<vmem>>, vector<2x16x32xf32>,
    } else {
    }
    return
  }
  func.func @transform_0(%arg0: i32, %arg1: i32) -> (i32, i32, i32) {
    %c0_i32 = arith.constant 0 : i32
    %c0_i32_0 = arith.constant 0 : i32
    %c0_i32_1 = arith.constant 0 : i32
    return %arg0, %c0_i32, %c0_i32_0 : i32, i32, i32
  }
  func.func @transform_1(%arg0: i32, %arg1: i32) -> (i32, i32, i32) {
    %c0_i32 = arith.constant 0 : i32
    %c0_i32_0 = arith.constant 0 : i32
    %c0_i32_1 = arith.constant 0 : i32
    return %arg0, %c0_i32, %c0_i32_0 : i32, i32, i32
  }
  func.func @transform_2(%arg0: i32, %arg1: i32) -> (i32, i32) {
    %c0_i32 = arith.constant 0 : i32
    %c0_i32_0 = arith.constant 0 : i32
    %c0_i32_1 = arith.constant 0 : i32
    return %c0_i32, %c0_i32_0 : i32, i32
  }
  func.func @transform_3(%arg0: i32, %arg1: i32) -> (i32, i32) {
    %c0_i32 = arith.constant 0 : i32
    %c0_i32_0 = arith.constant 0 : i32
    return %c0_i32, %arg1 : i32, i32
  }
  func.func @transform_4(%arg0: i32, %arg1: i32) -> (i32, i32) {
    %c0_i32 = arith.constant 0 : i32
    %c0_i32_0 = arith.constant 0 : i32
    return %c0_i32, %arg1 : i32, i32
  }
  func.func @transform_5(%arg0: i32, %arg1: i32) -> (i32, i32) {
    %c0_i32 = arith.constant 0 : i32
    %c0_i32_0 = arith.constant 0 : i32
    return %arg1, %c0_i32 : i32, i32
  }
  func.func @transform_6(%arg0: i32, %arg1: i32) -> (i32, i32) {
    %c0_i32 = arith.constant 0 : i32
    %c0_i32_0 = arith.constant 0 : i32
    %c0_i32_1 = arith.constant 0 : i32
    return %c0_i32, %c0_i32_0 : i32, i32
  }
  func.func @transform_7(%arg0: i32, %arg1: i32) -> (i32, i32, i32) {
    %c0_i32 = arith.constant 0 : i32
    %c0_i32_0 = arith.constant 0 : i32
    %c0_i32_1 = arith.constant 0 : i32
    return %arg0, %c0_i32, %c0_i32_0 : i32, i32, i32
  }
}

</mosaic_0001>

<llo_original>
// kernel: basic_transformer_block.3
$region0: #{basic_transformer_block.3}
  #allocation0 [shape = 'u32[]', space=smem, size = 0x4, offset = 0x4, fixed_abs, tag = 'smem constant byte address 0x4 - core index']
  #allocation1 [shape = 'u32[144,128]{1,0:T(1,128)}', space=vmem, size = 0x12000, scoped, tag = 'internal scratch']
  #allocation2 [shape = 'f32[32,32]{1,0:T(8,128)}', space=vmem, size = 0x4000, scoped, tag = 'scratch operand']
  #allocation3 [shape = 'bf16[32,32]{1,0:T(16,128)(2,1)}', space=vmem, size = 0x2000, scoped, tag = 'scratch operand']
  #allocation4 [shape = 'f32[32,32]{1,0:T(8,128)}', space=vmem, size = 0x4000, scoped, tag = 'scratch operand']
  %s0 = inlined_call_operand.vmem [shape: f32[2,16,32], index: 0, kind: input, shape index: {}]
  %s1 = inlined_call_operand.vmem [shape: f32[2,16,32], index: 1, kind: input, shape index: {}]
  %s2 = inlined_call_operand.vmem [shape: f32[1,32], index: 2, kind: input, shape index: {}]
  %s3 = inlined_call_operand.vmem [shape: bf16[32,128], index: 3, kind: input, shape index: {}]
  %s4 = inlined_call_operand.vmem [shape: f32[1,128], index: 4, kind: input, shape index: {}]
  %s5 = inlined_call_operand.vmem [shape: bf16[128,32], index: 5, kind: input, shape index: {}]
  %s6 = inlined_call_operand.vmem [shape: f32[1,32], index: 6, kind: input, shape index: {}]
  %s7 = inlined_call_operand.hbm [shape: f32[2,16,32], index: 7, kind: output, shape index: {}]
  %s8 = sld [smem:[#allocation0]]
  $region46: #{basic_transformer_block.3} parent=0
    _
  %s10 = ssub.s32 1, %s8
  %s11 = scalar_select 0, %s10, %s8
  $region1: #{basic_transformer_block.3} parent=0
    #allocation5 [shape = 'u8[16384]{0}', space=vmem, size = 0x4000, scoped, tag = 'output window, operand 0, single buffered']
    #allocation6 [shape = 's32[1]{0}', space=sflag, size = 0x4, scoped, tag = 'scoped memory for basic_transformer_block.3']
    %12 = vsyncpa [#allocation6], 0
    // Predicated region
    $region2: #{basic_transformer_block.3} parent=1 // pred_check
      _
    $region3: #{basic_transformer_block.3} parent=1 // pred_check_branch
      %14 = sbr.rel (0) target = $region5
    $region4: #{basic_transformer_block.3} parent=1 // pred_region
      _
    $region5: #{basic_transformer_block.3} parent=1 // pred_fallthru
      _
    // Predicated region
    $region6: #{basic_transformer_block.3} parent=1 // pred_check
      _
    $region7: #{basic_transformer_block.3} parent=1 // pred_check_branch
      %16 = sbr.rel (0) target = $region9
    $region8: #{basic_transformer_block.3} parent=1 // pred_region
      _
    $region9: #{basic_transformer_block.3} parent=1 // pred_fallthru
      _
    // Predicated region
    $region10: #{basic_transformer_block.3} parent=1 // pred_check
      _
    $region11: #{basic_transformer_block.3} parent=1 // pred_check_branch
      %18 = sbr.rel (0) target = $region13
    $region12: #{basic_transformer_block.3} parent=1 // pred_region
      _
    $region13: #{basic_transformer_block.3} parent=1 // pred_fallthru
      _
    // Predicated region
    $region14: #{basic_transformer_block.3} parent=1 // pred_check
      _
    $region15: #{basic_transformer_block.3} parent=1 // pred_check_branch
      %20 = sbr.rel (0) target = $region17
    $region16: #{basic_transformer_block.3} parent=1 // pred_region
      _
    $region17: #{basic_transformer_block.3} parent=1 // pred_fallthru
      _
    // Predicated region
    $region18: #{basic_transformer_block.3} parent=1 // pred_check
      _
    $region19: #{basic_transformer_block.3} parent=1 // pred_check_branch
      %22 = sbr.rel (0) target = $region21
    $region20: #{basic_transformer_block.3} parent=1 // pred_region
      _
    $region21: #{basic_transformer_block.3} parent=1 // pred_fallthru
      _
    // Predicated region
    $region22: #{basic_transformer_block.3} parent=1 // pred_check
      _
    $region23: #{basic_transformer_block.3} parent=1 // pred_check_branch
      %24 = sbr.rel (0) target = $region25
    $region24: #{basic_transformer_block.3} parent=1 // pred_region
      _
    $region25: #{basic_transformer_block.3} parent=1 // pred_fallthru
      _
    // Predicated region
    $region26: #{basic_transformer_block.3} parent=1 // pred_check
      _
    $region27: #{basic_transformer_block.3} parent=1 // pred_check_branch
      %26 = sbr.rel (0) target = $region29
    $region28: #{basic_transformer_block.3} parent=1 // pred_region
      _
    $region29: #{basic_transformer_block.3} parent=1 // pred_fallthru
      _
    %p28 = scmp.eq.s32.totalorder 0, 0
    // Predicated region
    $region30: #{basic_transformer_block.3} parent=1 // pred_check
      %p29 = pneg %p28
    $region31: #{basic_transformer_block.3} parent=1 // pred_check_branch
      %31 = sbr.rel (%p29) target = $region33
    $region32: #{basic_transformer_block.3} parent=1 // pred_region
      %v32 = vld [vmem:[%s0] sm:$0xff]
      %v33 = vld [vmem:[%s0 + $0x8] sm:$0xff]
      %v34 = vld [vmem:[%s0 + $0x10] sm:$0xff]
      %v35 = vld [vmem:[%s0 + $0x18] sm:$0xff]
      %v36 = vld [vmem:[%s1] sm:$0xff]
      %v37 = vld [vmem:[%s1 + $0x8] sm:$0xff]
      %v38 = vld [vmem:[%s1 + $0x10] sm:$0xff]
      %v39 = vld [vmem:[%s1 + $0x18] sm:$0xff]
      %v40 = vadd.f32 %v32, %v36
      %v41 = vadd.f32 %v33, %v37
      %v42 = vadd.f32 %v34, %v38
      %v43 = vadd.f32 %v35, %v39
      %vm44 = vcmask 261120
      %45 = vst.msk [vmem:[#allocation2] sm:$0xff] %vm44, %v40
      %46 = vst.msk [vmem:[#allocation2 + $0x8] sm:$0xff] %vm44, %v41
      %47 = vst.msk [vmem:[#allocation2 + $0x10] sm:$0xff] %vm44, %v42
      %48 = vst.msk [vmem:[#allocation2 + $0x18] sm:$0xff] %vm44, %v43
      %v49 = vld [vmem:[%s2] sm:$0x1]
      %v50 = vmul.f32 %v40, %v40
      %v51 = vmul.f32 %v41, %v41
      %v52 = vmul.f32 %v42, %v42
      %v53 = vmul.f32 %v43, %v43
      %v54 = vsel %vm44, %v50, 0.0
      %55 = vadd.xlane.f32.xlu0 %v54
      %v56 = vpop.xlane.xlu0 %55
      %v57 = vsel %vm44, %v51, 0.0
      %58 = vadd.xlane.f32.xlu0 %v57
      %v59 = vpop.xlane.xlu0 %58
      %v60 = vsel %vm44, %v52, 0.0
      %61 = vadd.xlane.f32.xlu0 %v60
      %v62 = vpop.xlane.xlu0 %61
      %v63 = vsel %vm44, %v53, 0.0
      %64 = vadd.xlane.f32.xlu0 %v63
      %v65 = vpop.xlane.xlu0 %64
      %v66 = vrcp.pop 32.0
      %v67 = vmul.f32 %v56, %v66
      %v68 = vmul.f32 %v59, %v66
      %v69 = vmul.f32 %v62, %v66
      %v70 = vmul.f32 %v65, %v66
      %v71 = vadd.f32 %v67, 1e-06
      %v72 = vadd.f32 %v68, 1e-06
      %v73 = vadd.f32 %v69, 1e-06
      %v74 = vadd.f32 %v70, 1e-06
      %v75 = vrsqrt.pop %v71
      %v76 = vrsqrt.pop %v72
      %v77 = vrsqrt.pop %v73
      %v78 = vrsqrt.pop %v74
      %v79 = vmul.f32 %v40, %v75
      %v80 = vmul.f32 %v41, %v76
      %v81 = vmul.f32 %v42, %v77
      %v82 = vmul.f32 %v43, %v78
      %v84 = vlaneseq
      %v85 = vshrl.u32 %v84, 7
      %v86 = vsub.s32 0, %v85
      %v87 = vrot.slane %v49, %v86
      %v89 = vmul.f32 %v79, %v87
      %v90 = vmul.f32 %v80, %v87
      %v91 = vmul.f32 %v81, %v87
      %v92 = vmul.f32 %v82, %v87
      %v93 = vpack.c.bf16 %v90, %v89
      %v94 = vpack.c.bf16 %v92, %v91
      %95 = vst.msk [vmem:[#allocation3] sm:$0xff] %vm44, %v93
      %96 = vst.msk [vmem:[#allocation3 + $0x8] sm:$0xff] %vm44, %v94
      %97 = vst.msk [vmem:[#allocation4] sm:$0xff] %vm44, 0.0
      %98 = vst.msk [vmem:[#allocation4 + $0x8] sm:$0xff] %vm44, 0.0
      %99 = vst.msk [vmem:[#allocation4 + $0x10] sm:$0xff] %vm44, 0.0
      %100 = vst.msk [vmem:[#allocation4 + $0x18] sm:$0xff] %vm44, 0.0
    $region33: #{basic_transformer_block.3} parent=1 // pred_fallthru
      _
    %v101 = vld [vmem:[#allocation3] sm:$0xff]
    %v102 = vld [vmem:[#allocation3 + $0x8] sm:$0xff]
    %v103 = vld [vmem:[%s3] sm:$0xf]
    %v104 = vld [vmem:[%s3 + $0x4] sm:$0xf]
    %v105 = vld [vmem:[%s3 + $0x8] sm:$0xf]
    %v106 = vld [vmem:[%s3 + $0xc] sm:$0xf]
    %v107 = vld [vmem:[%s4] sm:$0x1]
    %v109 = vlaneseq
    %v110 = vshrl.u32 %v109, 7
    %v111 = vsub.s32 0, %v110
    %v112 = vrot.slane %v107, %v111
    %v118 = vunpack.c.l.b16 %v103
    %v119 = vunpack.c.l.b16 %v104
    %v120 = vunpack.c.l.b16 %v105
    %v121 = vunpack.c.l.b16 %v106
    %v122 = vpack.c.b16 %v119, %v118
    %v123 = vpack.c.b16 %v121, %v120
    %vm126 = vcmask 261120
    %v128 = vsel %vm126, %v101, 0
    %v131 = vsel %vm126, %v102, 0
    %133 = vmatprep.subr.bf16.mxu0 0
    %134 = vmatpush1.bf16.msra.mxu0 %v122
    %135 = vmatprep.subr.bf16.mxu0 0
    %136 = vmatpush1.bf16.msra.mxu0 %v123
    %137 = vmatprep.subr.bf16.mxu0 0
    %138 = vmatpush1.bf16.msra.mxu0 0
    %139 = vmatprep.subr.bf16.mxu0 0
    %140 = vmatpush1.bf16.msra.mxu0 0
    %141 = vmatprep.subr.bf16.mxu0 0
    %142 = vmatpush1.bf16.msra.mxu0 0
    %143 = vmatprep.subr.bf16.mxu0 0
    %144 = vmatpush1.bf16.msra.mxu0 0
    %145 = vmatprep.subr.bf16.mxu0 0
    %146 = vmatpush1.bf16.msra.mxu0 0
    %147 = vmatprep.subr.bf16.mxu0 0
    %148 = vmatpush1.bf16.msra.mxu0 0
    %149 = vmatprep.subr.bf16.mxu0 0
    %150 = vmatpush1.bf16.msra.mxu0 0
    %151 = vmatprep.subr.bf16.mxu0 0
    %152 = vmatpush1.bf16.msra.mxu0 0
    %153 = vmatprep.subr.bf16.mxu0 0
    %154 = vmatpush1.bf16.msra.mxu0 0
    %155 = vmatprep.subr.bf16.mxu0 0
    %156 = vmatpush1.bf16.msra.mxu0 0
    %157 = vmatprep.subr.bf16.mxu0 0
    %158 = vmatpush1.bf16.msra.mxu0 0
    %159 = vmatprep.subr.bf16.mxu0 0
    %160 = vmatpush1.bf16.msra.mxu0 0
    %161 = vmatprep.subr.bf16.mxu0 0
    %162 = vmatpush1.bf16.msra.mxu0 0
    %163 = vmatprep.subr.bf16.mxu0 0
    %164 = vmatpush1.bf16.msra.mxu0 0
    %165 = vmatprep.mubr.bf16.mxu0 0
    %166 = vmatmul.mubr.bf16.gmra.mrb[0].mxu0 %v128
    %v167 = vpop.f32.mrb[0].mxu0
    %v168 = vadd.f32 %v112, %v167
    %v169 = vpop.f32.mrb[0].mxu0
    %v170 = vpop.f32.mrb[0].mxu0
    %v171 = vadd.f32 %v112, %v170
    %v172 = vpop.f32.mrb[0].mxu0
    %173 = vmatprep.mubr.bf16.mxu0 0
    %174 = vmatmul.mubr.bf16.gmra.mrb[0].mxu0 %v131
    %v175 = vpop.f32.mrb[0].mxu0
    %v176 = vadd.f32 %v112, %v175
    %v177 = vpop.f32.mrb[0].mxu0
    %v178 = vpop.f32.mrb[0].mxu0
    %v179 = vadd.f32 %v112, %v178
    %v180 = vpop.f32.mrb[0].mxu0
    %181 = vdwg.mxu0
    %v182 = vmul.f32 %v168, 0.5
    %v183 = vmul.f32 %v171, 0.5
    %v184 = vmul.f32 %v176, 0.5
    %v185 = vmul.f32 %v179, 0.5
    %v186 = vmul.f32 %v168, 0.044715
    %v187 = vmul.f32 %v171, 0.044715
    %v188 = vmul.f32 %v176, 0.044715
    %v189 = vmul.f32 %v179, 0.044715
    %v190 = vmul.f32 %v186, %v168
    %v191 = vmul.f32 %v187, %v171
    %v192 = vmul.f32 %v188, %v176
    %v193 = vmul.f32 %v189, %v179
    %v194 = vmul.f32 %v190, %v168
    %v195 = vmul.f32 %v191, %v171
    %v196 = vmul.f32 %v192, %v176
    %v197 = vmul.f32 %v193, %v179
    %v198 = vadd.f32 %v168, %v194
    %v199 = vadd.f32 %v171, %v195
    %v200 = vadd.f32 %v176, %v196
    %v201 = vadd.f32 %v179, %v197
    %v202 = vmul.f32 %v198, 0.7978846
    %v203 = vmul.f32 %v199, 0.7978846
    %v204 = vmul.f32 %v200, 0.7978846
    %v205 = vmul.f32 %v201, 0.7978846
    %v206 = vtanh.pop %v202
    %v207 = vtanh.pop %v203
    %v208 = vtanh.pop %v204
    %v209 = vtanh.pop %v205
    %v210 = vadd.f32 %v206, 1.0
    %v211 = vadd.f32 %v207, 1.0
    %v212 = vadd.f32 %v208, 1.0
    %v213 = vadd.f32 %v209, 1.0
    %v214 = vmul.f32 %v182, %v210
    %v215 = vmul.f32 %v183, %v211
    %v216 = vmul.f32 %v184, %v212
    %v217 = vmul.f32 %v185, %v213
    %v218 = vld [vmem:[#allocation4] sm:$0xff]
    %v219 = vld [vmem:[#allocation4 + $0x8] sm:$0xff]
    %v220 = vld [vmem:[#allocation4 + $0x10] sm:$0xff]
    %v221 = vld [vmem:[#allocation4 + $0x18] sm:$0xff]
    %v222 = vpack.c.bf16 %v215, %v214
    %v223 = vpack.c.bf16 %v217, %v216
    %v224 = vld [vmem:[%s5] sm:$0xf]
    %v225 = vld [vmem:[%s5 + $0x4] sm:$0xf]
    %v226 = vld [vmem:[%s5 + $0x8] sm:$0xf]
    %v227 = vld [vmem:[%s5 + $0xc] sm:$0xf]
    %v228 = vld [vmem:[%s5 + $0x10] sm:$0xf]
    %v229 = vld [vmem:[%s5 + $0x14] sm:$0xf]
    %v230 = vld [vmem:[%s5 + $0x18] sm:$0xf]
    %v231 = vld [vmem:[%s5 + $0x1c] sm:$0xf]
    %v232 = vld [vmem:[%s5 + $0x20] sm:$0xf]
    %v233 = vld [vmem:[%s5 + $0x24] sm:$0xf]
    %v234 = vld [vmem:[%s5 + $0x28] sm:$0xf]
    %v235 = vld [vmem:[%s5 + $0x2c] sm:$0xf]
    %v236 = vld [vmem:[%s5 + $0x30] sm:$0xf]
    %v237 = vld [vmem:[%s5 + $0x34] sm:$0xf]
    %v238 = vld [vmem:[%s5 + $0x38] sm:$0xf]
    %v239 = vld [vmem:[%s5 + $0x3c] sm:$0xf]
    %v256 = vunpack.c.l.b16 %v224
    %v257 = vunpack.c.l.b16 %v225
    %v258 = vunpack.c.l.b16 %v226
    %v259 = vunpack.c.l.b16 %v227
    %v260 = vunpack.c.l.b16 %v228
    %v261 = vunpack.c.l.b16 %v229
    %v262 = vunpack.c.l.b16 %v230
    %v263 = vunpack.c.l.b16 %v231
    %v264 = vunpack.c.l.b16 %v232
    %v265 = vunpack.c.l.b16 %v233
    %v266 = vunpack.c.l.b16 %v234
    %v267 = vunpack.c.l.b16 %v235
    %v268 = vunpack.c.l.b16 %v236
    %v269 = vunpack.c.l.b16 %v237
    %v270 = vunpack.c.l.b16 %v238
    %v271 = vunpack.c.l.b16 %v239
    %v272 = vpack.c.b16 %v257, %v256
    %v273 = vpack.c.b16 %v259, %v258
    %v274 = vpack.c.b16 %v261, %v260
    %v275 = vpack.c.b16 %v263, %v262
    %v276 = vpack.c.b16 %v265, %v264
    %v277 = vpack.c.b16 %v267, %v266
    %v278 = vpack.c.b16 %v269, %v268
    %v279 = vpack.c.b16 %v271, %v270
    %288 = vmatprep.subr.bf16.mxu0 0
    %289 = vmatpush1.bf16.msra.mxu0 %v272
    %290 = vmatprep.subr.bf16.mxu0 0
    %291 = vmatpush1.bf16.msra.mxu0 %v273
    %292 = vmatprep.subr.bf16.mxu0 0
    %293 = vmatpush1.bf16.msra.mxu0 %v274
    %294 = vmatprep.subr.bf16.mxu0 0
    %295 = vmatpush1.bf16.msra.mxu0 %v275
    %296 = vmatprep.subr.bf16.mxu0 0
    %297 = vmatpush1.bf16.msra.mxu0 %v276
    %298 = vmatprep.subr.bf16.mxu0 0
    %299 = vmatpush1.bf16.msra.mxu0 %v277
    %300 = vmatprep.subr.bf16.mxu0 0
    %301 = vmatpush1.bf16.msra.mxu0 %v278
    %302 = vmatprep.subr.bf16.mxu0 0
    %303 = vmatpush1.bf16.msra.mxu0 %v279
    %304 = vmatprep.subr.bf16.mxu0 0
    %305 = vmatpush1.bf16.msra.mxu0 0
    %306 = vmatprep.subr.bf16.mxu0 0
    %307 = vmatpush1.bf16.msra.mxu0 0
    %308 = vmatprep.subr.bf16.mxu0 0
    %309 = vmatpush1.bf16.msra.mxu0 0
    %310 = vmatprep.subr.bf16.mxu0 0
    %311 = vmatpush1.bf16.msra.mxu0 0
    %312 = vmatprep.subr.bf16.mxu0 0
    %313 = vmatpush1.bf16.msra.mxu0 0
    %314 = vmatprep.subr.bf16.mxu0 0
    %315 = vmatpush1.bf16.msra.mxu0 0
    %316 = vmatprep.subr.bf16.mxu0 0
    %317 = vmatpush1.bf16.msra.mxu0 0
    %318 = vmatprep.subr.bf16.mxu0 0
    %319 = vmatpush1.bf16.msra.mxu0 0
    %320 = vmatprep.mubr.bf16.mxu0 0
    %321 = vmatmul.mubr.bf16.gmra.mrb[0].mxu0 %v222
    %v322 = vpop.f32.mrb[0].mxu0
    %v323 = vadd.f32 0.0, %v322
    %v324 = vpop.f32.mrb[0].mxu0
    %v325 = vpop.f32.mrb[0].mxu0
    %v326 = vadd.f32 0.0, %v325
    %v327 = vpop.f32.mrb[0].mxu0
    %328 = vmatprep.mubr.bf16.mxu0 0
    %329 = vmatmul.mubr.bf16.gmra.mrb[0].mxu0 %v223
    %v330 = vpop.f32.mrb[0].mxu0
    %v331 = vadd.f32 0.0, %v330
    %v332 = vpop.f32.mrb[0].mxu0
    %v333 = vpop.f32.mrb[0].mxu0
    %v334 = vadd.f32 0.0, %v333
    %v335 = vpop.f32.mrb[0].mxu0
    %336 = vdwg.mxu0
    %v337 = vadd.f32 %v218, %v323
    %v338 = vadd.f32 %v219, %v326
    %v339 = vadd.f32 %v220, %v331
    %v340 = vadd.f32 %v221, %v334
    %341 = vst.msk [vmem:[#allocation4] sm:$0xff] %vm126, %v337
    %342 = vst.msk [vmem:[#allocation4 + $0x8] sm:$0xff] %vm126, %v338
    %343 = vst.msk [vmem:[#allocation4 + $0x10] sm:$0xff] %vm126, %v339
    %344 = vst.msk [vmem:[#allocation4 + $0x18] sm:$0xff] %vm126, %v340
    // Predicated region
    $region34: #{basic_transformer_block.3} parent=1 // pred_check
      %p345 = pneg %p28
    $region35: #{basic_transformer_block.3} parent=1 // pred_check_branch
      %347 = sbr.rel (%p345) target = $region37
    $region36: #{basic_transformer_block.3} parent=1 // pred_region
      %v348 = vld [vmem:[#allocation4] sm:$0xff]
      %v349 = vld [vmem:[#allocation4 + $0x8] sm:$0xff]
      %v350 = vld [vmem:[#allocation4 + $0x10] sm:$0xff]
      %v351 = vld [vmem:[#allocation4 + $0x18] sm:$0xff]
      %v352 = vld [vmem:[%s6] sm:$0x1]
      %v354 = vlaneseq
      %v355 = vshrl.u32 %v354, 7
      %v356 = vsub.s32 0, %v355
      %v357 = vrot.slane %v352, %v356
      %v359 = vadd.f32 %v348, %v357
      %v360 = vadd.f32 %v349, %v357
      %v361 = vadd.f32 %v350, %v357
      %v362 = vadd.f32 %v351, %v357
      %v363 = vld [vmem:[#allocation2] sm:$0xff]
      %v364 = vld [vmem:[#allocation2 + $0x8] sm:$0xff]
      %v365 = vld [vmem:[#allocation2 + $0x10] sm:$0xff]
      %v366 = vld [vmem:[#allocation2 + $0x18] sm:$0xff]
      %v367 = vadd.f32 %v359, %v363
      %v368 = vadd.f32 %v360, %v364
      %v369 = vadd.f32 %v361, %v365
      %v370 = vadd.f32 %v362, %v366
      %371 = vst.msk [vmem:[#allocation5] sm:$0xff] %vm126, %v367
      %372 = vst.msk [vmem:[#allocation5 + $0x8] sm:$0xff] %vm126, %v368
      %373 = vst.msk [vmem:[#allocation5 + $0x10] sm:$0xff] %vm126, %v369
      %374 = vst.msk [vmem:[#allocation5 + $0x18] sm:$0xff] %vm126, %v370
    $region37: #{basic_transformer_block.3} parent=1 // pred_fallthru
      _
    // Predicated region
    $region38: #{basic_transformer_block.3} parent=1 // pred_check
      _
    $region39: #{basic_transformer_block.3} parent=1 // pred_check_branch
      %376 = sbr.rel (0) target = $region41
    $region40: #{basic_transformer_block.3} parent=1 // pred_region
      %s378 = ssub.s32 512, 512
      %379 = vsyncadd [#allocation6], %s378
      %s380 = sshll.u32 [#allocation5], 4
      %s381 = int_to_ptr.vmem [resolvable:$true] %s380
      %386 = dma.vmem_to_hbm [thread:$0]  %s381, 512, %s7, [#allocation6], 128, 128, 8
    $region41: #{basic_transformer_block.3} parent=1 // pred_fallthru
      _
    // Predicated region
    $region42: #{basic_transformer_block.3} parent=1 // pred_check
      _
    $region43: #{basic_transformer_block.3} parent=1 // pred_check_branch
      %388 = sbr.rel (0) target = $region45
    $region44: #{basic_transformer_block.3} parent=1 // pred_region
      %389 = dma.done [#allocation6], 512
    $region45: #{basic_transformer_block.3} parent=1 // pred_fallthru
      _
    %390 = vsyncpa [#allocation6], 1

// kernel: basic_transformer_block.2
$region0: #{basic_transformer_block.2}
  #allocation0 [shape = 'u32[]', space=smem, size = 0x4, offset = 0x4, fixed_abs, tag = 'smem constant byte address 0x4 - core index']
  #allocation1 [shape = 'u32[144,128]{1,0:T(1,128)}', space=vmem, size = 0x12000, scoped, tag = 'internal scratch']
  #allocation2 [shape = 'bf16[2,32,32]{2,1,0:T(16,128)(2,1)}', space=vmem, size = 0x4000, scoped, tag = 'scratch operand']
  #allocation3 [shape = 'bf16[2,16,32]{2,1,0:T(16,128)(2,1)}', space=vmem, size = 0x2000, scoped, tag = 'scratch operand']
  #allocation4 [shape = 'bf16[2,1,16,32]{3,2,1,0:T(16,128)(2,1)}', space=vmem, size = 0x2000, scoped, tag = 'scratch operand']
  %s0 = inlined_call_operand.vmem [shape: f32[2,16,32], index: 0, kind: input, shape index: {}]
  %s1 = inlined_call_operand.vmem [shape: f32[2,16,48], index: 1, kind: input, shape index: {}]
  %s2 = inlined_call_operand.vmem [shape: f32[2,1,32], index: 2, kind: input, shape index: {}]
  %s3 = inlined_call_operand.vmem [shape: f32[1,16,32], index: 3, kind: input, shape index: {}]
  %s4 = inlined_call_operand.vmem [shape: f32[1,32], index: 4, kind: input, shape index: {}]
  %s5 = inlined_call_operand.vmem [shape: bf16[48,32], index: 5, kind: input, shape index: {}]
  %s6 = inlined_call_operand.vmem [shape: f32[1,32], index: 6, kind: input, shape index: {}]
  %s7 = inlined_call_operand.vmem [shape: bf16[1,32,32], index: 7, kind: input, shape index: {}]
  %s8 = inlined_call_operand.vmem [shape: f32[1,1,32], index: 8, kind: input, shape index: {}]
  %s9 = inlined_call_operand.vmem [shape: bf16[1,32,32], index: 9, kind: input, shape index: {}]
  %s10 = inlined_call_operand.hbm [shape: f32[1,1,32], index: 10, kind: input, shape index: {}]
  %s11 = inlined_call_operand.vmem [shape: bf16[1,32,32], index: 11, kind: input, shape index: {}]
  %s12 = inlined_call_operand.vmem [shape: f32[1,1,32], index: 12, kind: input, shape index: {}]
  %s13 = inlined_call_operand.vmem [shape: bf16[1,32,32], index: 13, kind: input, shape index: {}]
  %s14 = inlined_call_operand.hbm [shape: f32[1,32], index: 14, kind: input, shape index: {}]
  %s15 = inlined_call_operand.vmem [shape: f32[1,8], index: 15, kind: input, shape index: {}]
  %s16 = inlined_call_operand.vmem [shape: f32[1,8], index: 16, kind: input, shape index: {}]
  %s17 = inlined_call_operand.vmem [shape: f32[2,16,32], index: 17, kind: output, shape index: {}]
  %s18 = sld [smem:[#allocation0]]
  $region94: #{basic_transformer_block.2} parent=0
    _
  %s20 = ssub.s32 1, %s18
  %s21 = scalar_select 0, %s20, %s18
  $region1: #{basic_transformer_block.2} parent=0
    #allocation5 [shape = 'u8[512]{0}', space=vmem, size = 0x400, scoped, tag = 'input window, operand 10, single buffered']
    #allocation6 [shape = 's32[1]{0}', space=sflag, size = 0x4, scoped, tag = 'scoped memory for basic_transformer_block.2']
    #allocation7 [shape = 'u8[512]{0}', space=vmem, size = 0x400, scoped, tag = 'input window, operand 14, single buffered']
    #allocation8 [shape = 's32[1]{0}', space=sflag, size = 0x4, scoped, tag = 'scoped memory for basic_transformer_block.2']
    %22 = vsyncpa [#allocation6], 0
    %23 = vsyncpa [#allocation8], 0
    // Predicated region
    $region2: #{basic_transformer_block.2} parent=1 // pred_check
      _
    $region3: #{basic_transformer_block.2} parent=1 // pred_check_branch
      %25 = sbr.rel (0) target = $region5
    $region4: #{basic_transformer_block.2} parent=1 // pred_region
      _
    $region5: #{basic_transformer_block.2} parent=1 // pred_fallthru
      _
    // Predicated region
    $region6: #{basic_transformer_block.2} parent=1 // pred_check
      _
    $region7: #{basic_transformer_block.2} parent=1 // pred_check_branch
      %27 = sbr.rel (0) target = $region9
    $region8: #{basic_transformer_block.2} parent=1 // pred_region
      _
    $region9: #{basic_transformer_block.2} parent=1 // pred_fallthru
      _
    // Predicated region
    $region10: #{basic_transformer_block.2} parent=1 // pred_check
      _
    $region11: #{basic_transformer_block.2} parent=1 // pred_check_branch
      %29 = sbr.rel (0) target = $region13
    $region12: #{basic_transformer_block.2} parent=1 // pred_region
      _
    $region13: #{basic_transformer_block.2} parent=1 // pred_fallthru
      _
    // Predicated region
    $region14: #{basic_transformer_block.2} parent=1 // pred_check
      _
    $region15: #{basic_transformer_block.2} parent=1 // pred_check_branch
      %31 = sbr.rel (0) target = $region17
    $region16: #{basic_transformer_block.2} parent=1 // pred_region
      _
    $region17: #{basic_transformer_block.2} parent=1 // pred_fallthru
      _
    // Predicated region
    $region18: #{basic_transformer_block.2} parent=1 // pred_check
      _
    $region19: #{basic_transformer_block.2} parent=1 // pred_check_branch
      %33 = sbr.rel (0) target = $region21
    $region20: #{basic_transformer_block.2} parent=1 // pred_region
      _
    $region21: #{basic_transformer_block.2} parent=1 // pred_fallthru
      _
    // Predicated region
    $region22: #{basic_transformer_block.2} parent=1 // pred_check
      _
    $region23: #{basic_transformer_block.2} parent=1 // pred_check_branch
      %35 = sbr.rel (0) target = $region25
    $region24: #{basic_transformer_block.2} parent=1 // pred_region
      _
    $region25: #{basic_transformer_block.2} parent=1 // pred_fallthru
      _
    // Predicated region
    $region26: #{basic_transformer_block.2} parent=1 // pred_check
      _
    $region27: #{basic_transformer_block.2} parent=1 // pred_check_branch
      %37 = sbr.rel (0) target = $region29
    $region28: #{basic_transformer_block.2} parent=1 // pred_region
      _
    $region29: #{basic_transformer_block.2} parent=1 // pred_fallthru
      _
    // Predicated region
    $region30: #{basic_transformer_block.2} parent=1 // pred_check
      _
    $region31: #{basic_transformer_block.2} parent=1 // pred_check_branch
      %39 = sbr.rel (0) target = $region33
    $region32: #{basic_transformer_block.2} parent=1 // pred_region
      _
    $region33: #{basic_transformer_block.2} parent=1 // pred_fallthru
      _
    // Predicated region
    $region34: #{basic_transformer_block.2} parent=1 // pred_check
      _
    $region35: #{basic_transformer_block.2} parent=1 // pred_check_branch
      %41 = sbr.rel (0) target = $region37
    $region36: #{basic_transformer_block.2} parent=1 // pred_region
      _
    $region37: #{basic_transformer_block.2} parent=1 // pred_fallthru
      _
    // Predicated region
    $region38: #{basic_transformer_block.2} parent=1 // pred_check
      _
    $region39: #{basic_transformer_block.2} parent=1 // pred_check_branch
      %43 = sbr.rel (0) target = $region41
    $region40: #{basic_transformer_block.2} parent=1 // pred_region
      _
    $region41: #{basic_transformer_block.2} parent=1 // pred_fallthru
      _
    // Predicated region
    $region42: #{basic_transformer_block.2} parent=1 // pred_check
      _
    $region43: #{basic_transformer_block.2} parent=1 // pred_check_branch
      %45 = sbr.rel (0) target = $region45
    $region44: #{basic_transformer_block.2} parent=1 // pred_region
      %s47 = ssub.s32 16, 16
      %48 = vsyncadd [#allocation6], %s47
      %s50 = sshll.u32 [#allocation5], 4
      %s51 = int_to_ptr.vmem [resolvable:$true] %s50
      %53 = dma.hbm_to_vmem [thread:$0]  %s10, 16, %s51, [#allocation6]
    $region45: #{basic_transformer_block.2} parent=1 // pred_fallthru
      _
    // Predicated region
    $region46: #{basic_transformer_block.2} parent=1 // pred_check
      _
    $region47: #{basic_transformer_block.2} parent=1 // pred_check_branch
      %55 = sbr.rel (0) target = $region49
    $region48: #{basic_transformer_block.2} parent=1 // pred_region
      _
    $region49: #{basic_transformer_block.2} parent=1 // pred_fallthru
      _
    // Predicated region
    $region50: #{basic_transformer_block.2} parent=1 // pred_check
      _
    $region51: #{basic_transformer_block.2} parent=1 // pred_check_branch
      %57 = sbr.rel (0) target = $region53
    $region52: #{basic_transformer_block.2} parent=1 // pred_region
      _
    $region53: #{basic_transformer_block.2} parent=1 // pred_fallthru
      _
    // Predicated region
    $region54: #{basic_transformer_block.2} parent=1 // pred_check
      _
    $region55: #{basic_transformer_block.2} parent=1 // pred_check_branch
      %59 = sbr.rel (0) target = $region57
    $region56: #{basic_transformer_block.2} parent=1 // pred_region
      _
    $region57: #{basic_transformer_block.2} parent=1 // pred_fallthru
      _
    // Predicated region
    $region58: #{basic_transformer_block.2} parent=1 // pred_check
      _
    $region59: #{basic_transformer_block.2} parent=1 // pred_check_branch
      %61 = sbr.rel (0) target = $region61
    $region60: #{basic_transformer_block.2} parent=1 // pred_region
      %s63 = ssub.s32 16, 16
      %64 = vsyncadd [#allocation8], %s63
      %s66 = sshll.u32 [#allocation7], 4
      %s67 = int_to_ptr.vmem [resolvable:$true] %s66
      %69 = dma.hbm_to_vmem [thread:$0]  %s14, 16, %s67, [#allocation8]
    $region61: #{basic_transformer_block.2} parent=1 // pred_fallthru
      _
    // Predicated region
    $region62: #{basic_transformer_block.2} parent=1 // pred_check
      _
    $region63: #{basic_transformer_block.2} parent=1 // pred_check_branch
      %71 = sbr.rel (0) target = $region65
    $region64: #{basic_transformer_block.2} parent=1 // pred_region
      _
    $region65: #{basic_transformer_block.2} parent=1 // pred_fallthru
      _
    // Predicated region
    $region66: #{basic_transformer_block.2} parent=1 // pred_check
      _
    $region67: #{basic_transformer_block.2} parent=1 // pred_check_branch
      %73 = sbr.rel (0) target = $region69
    $region68: #{basic_transformer_block.2} parent=1 // pred_region
      _
    $region69: #{basic_transformer_block.2} parent=1 // pred_fallthru
      _
    // Predicated region
    $region70: #{basic_transformer_block.2} parent=1 // pred_check
      _
    $region71: #{basic_transformer_block.2} parent=1 // pred_check_branch
      %75 = sbr.rel (0) target = $region73
    $region72: #{basic_transformer_block.2} parent=1 // pred_region
      %76 = dma.done [#allocation6], 16
    $region73: #{basic_transformer_block.2} parent=1 // pred_fallthru
      _
    // Predicated region
    $region74: #{basic_transformer_block.2} parent=1 // pred_check
      _
    $region75: #{basic_transformer_block.2} parent=1 // pred_check_branch
      %78 = sbr.rel (0) target = $region77
    $region76: #{basic_transformer_block.2} parent=1 // pred_region
      %79 = dma.done [#allocation8], 16
    $region77: #{basic_transformer_block.2} parent=1 // pred_fallthru
      _
    %p81 = scmp.eq.s32.totalorder 0, 0
    // Predicated region
    $region78: #{basic_transformer_block.2} parent=1 // pred_check
      %p82 = pneg %p81
    $region79: #{basic_transformer_block.2} parent=1 // pred_check_branch
      %84 = sbr.rel (%p82) target = $region81
    $region80: #{basic_transformer_block.2} parent=1 // pred_region
      %v85 = vlaneseq
      %v86 = vand.u32 %v85, 127
      %v87 = vlaneseq
      %v88 = vshrl.u32 %v87, 7
      %v89 = vadd.s32 %v88, 8
      %v90 = vadd.s32 %v88, 16
      %v91 = vadd.s32 %v89, 16
      %vm92 = vcmp.le.s32.totalorder %v86, %v90
      %vm93 = vcmp.le.s32.totalorder %v86, %v91
      %v94 = vld [vmem:[%s0] sm:$0xff]
      %v95 = vld [vmem:[%s0 + $0x8] sm:$0xff]
      %v96 = vld [vmem:[%s4] sm:$0x1]
      %v97 = vmul.f32 %v94, %v94
      %v98 = vmul.f32 %v95, %v95
      %vm99 = vcmask 261120
      %v100 = vsel %vm99, %v97, 0.0
      %101 = vadd.xlane.f32.xlu0 %v100
      %v102 = vpop.xlane.xlu0 %101
      %v103 = vsel %vm99, %v98, 0.0
      %104 = vadd.xlane.f32.xlu0 %v103
      %v105 = vpop.xlane.xlu0 %104
      %v106 = vrcp.pop 32.0
      %v107 = vmul.f32 %v102, %v106
      %v108 = vmul.f32 %v105, %v106
      %v109 = vadd.f32 %v107, 1e-06
      %v110 = vadd.f32 %v108, 1e-06
      %v111 = vrsqrt.pop %v109
      %v112 = vrsqrt.pop %v110
      %v113 = vmul.f32 %v94, %v111
      %v114 = vmul.f32 %v95, %v112
      %v116 = vlaneseq
      %v117 = vshrl.u32 %v116, 7
      %v118 = vsub.s32 0, %v117
      %v119 = vrot.slane %v96, %v118
      %v121 = vmul.f32 %v113, %v119
      %v122 = vmul.f32 %v114, %v119
      %v123 = vld [vmem:[%s3] sm:$0xff]
      %v124 = vld [vmem:[%s3 + $0x8] sm:$0xff]
      %v125 = vadd.f32 %v121, %v123
      %v126 = vadd.f32 %v122, %v124
      %v127 = vld [vmem:[%s1] sm:$0xff]
      %v128 = vld [vmem:[%s1 + $0x8] sm:$0xff]
      %v129 = vpack.c.bf16 %v128, %v127
      %v130 = vld [vmem:[%s5] sm:$0xf]
      %v131 = vld [vmem:[%s5 + $0x4] sm:$0xf]
      %v132 = vld [vmem:[%s5 + $0x8] sm:$0xf]
      %v133 = vld [vmem:[%s5 + $0xc] sm:$0xf]
      %v134 = vld [vmem:[%s5 + $0x10] sm:$0xf]
      %v135 = vld [vmem:[%s5 + $0x14] sm:$0xf]
      %v136 = vld [vmem:[%s6] sm:$0x1]
      %v138 = vlaneseq
      %v139 = vshrl.u32 %v138, 7
      %v140 = vsub.s32 0, %v139
      %v141 = vrot.slane %v136, %v140
      %v149 = vunpack.c.l.b16 %v130
      %v150 = vunpack.c.l.b16 %v131
      %v151 = vunpack.c.l.b16 %v132
      %v152 = vunpack.c.l.b16 %v133
      %v153 = vunpack.c.l.b16 %v134
      %v154 = vunpack.c.l.b16 %v135
      %v155 = vpack.c.b16 %v150, %v149
      %v156 = vpack.c.b16 %v152, %v151
      %v157 = vpack.c.b16 %v154, %v153
      %vm161 = vcmask 392192
      %v163 = vsel %vm161, %v129, 0
      %165 = vmatprep.subr.bf16.mxu0 0
      %166 = vmatpush1.bf16.msra.mxu0 %v155
      %167 = vmatprep.subr.bf16.mxu0 0
      %168 = vmatpush1.bf16.msra.mxu0 %v156
      %169 = vmatprep.subr.bf16.mxu0 0
      %170 = vmatpush1.bf16.msra.mxu0 %v157
      %171 = vmatprep.subr.bf16.mxu0 0
      %172 = vmatpush1.bf16.msra.mxu0 0
      %173 = vmatprep.subr.bf16.mxu0 0
      %174 = vmatpush1.bf16.msra.mxu0 0
      %175 = vmatprep.subr.bf16.mxu0 0
      %176 = vmatpush1.bf16.msra.mxu0 0
      %177 = vmatprep.subr.bf16.mxu0 0
      %178 = vmatpush1.bf16.msra.mxu0 0
      %179 = vmatprep.subr.bf16.mxu0 0
      %180 = vmatpush1.bf16.msra.mxu0 0
      %181 = vmatprep.subr.bf16.mxu0 0
      %182 = vmatpush1.bf16.msra.mxu0 0
      %183 = vmatprep.subr.bf16.mxu0 0
      %184 = vmatpush1.bf16.msra.mxu0 0
      %185 = vmatprep.subr.bf16.mxu0 0
      %186 = vmatpush1.bf16.msra.mxu0 0
      %187 = vmatprep.subr.bf16.mxu0 0
      %188 = vmatpush1.bf16.msra.mxu0 0
      %189 = vmatprep.subr.bf16.mxu0 0
      %190 = vmatpush1.bf16.msra.mxu0 0
      %191 = vmatprep.subr.bf16.mxu0 0
      %192 = vmatpush1.bf16.msra.mxu0 0
      %193 = vmatprep.subr.bf16.mxu0 0
      %194 = vmatpush1.bf16.msra.mxu0 0
      %195 = vmatprep.subr.bf16.mxu0 0
      %196 = vmatpush1.bf16.msra.mxu0 0
      %197 = vmatprep.mubr.bf16.mxu0 0
      %198 = vmatmul.mubr.bf16.gmra.mrb[0].mxu0 %v163
      %v199 = vpop.f32.mrb[0].mxu0
      %v200 = vadd.f32 %v141, %v199
      %v201 = vpop.f32.mrb[0].mxu0
      %v202 = vpop.f32.mrb[0].mxu0
      %v203 = vadd.f32 %v141, %v202
      %v204 = vpop.f32.mrb[0].mxu0
      %205 = vdwg.mxu0
      %v206 = vpack.c.bf16 %v203, %v200
      %207 = vst.msk [vmem:[#allocation2] sm:$0xff] %vm99, %v206
      %v208 = vpack.c.bf16 %v126, %v125
      %209 = vst.msk [vmem:[#allocation2 + $0x8] sm:$0xff] %vm99, %v208
      %v210 = vld [vmem:[%s2] sm:$0x1]
      %vm211 = vcmp.gt.f32.partialorder %v210, 0.5
      %v212 = vsel %vm211, 1, 0
      %v213 = vlaneseq
      %v214 = vshrl.u32 %v213, 7
      %v215 = vsub.s32 0, %v214
      %v216 = vrot.slane %v212, %v215
      %vm217 = vcmp.eq.s32.totalorder %v216, 1
      %vm218 = vmand %vm92, %vm217
      %vm219 = vmand %vm93, %vm217
      %v220 = vsel %vm218, 0.0, -1e+30
      %v221 = vsel %vm219, 0.0, -1e+30
      %v222 = vpack.c.bf16 %v221, %v220
      %223 = vst.msk [vmem:[#allocation3] sm:$0xff] %vm99, %v222
      %s224 = scalar_lea.vmem %s0, 16
      %v225 = vld [vmem:[%s224] sm:$0xff]
      %v226 = vld [vmem:[%s224 + $0x8] sm:$0xff]
      %v227 = vld [vmem:[%s4] sm:$0x1]
      %v228 = vmul.f32 %v225, %v225
      %v229 = vmul.f32 %v226, %v226
      %v230 = vsel %vm99, %v228, 0.0
      %231 = vadd.xlane.f32.xlu0 %v230
      %v232 = vpop.xlane.xlu0 %231
      %v233 = vsel %vm99, %v229, 0.0
      %234 = vadd.xlane.f32.xlu0 %v233
      %v235 = vpop.xlane.xlu0 %234
      %v236 = vmul.f32 %v232, %v106
      %v237 = vmul.f32 %v235, %v106
      %v238 = vadd.f32 %v236, 1e-06
      %v239 = vadd.f32 %v237, 1e-06
      %v240 = vrsqrt.pop %v238
      %v241 = vrsqrt.pop %v239
      %v242 = vmul.f32 %v225, %v240
      %v243 = vmul.f32 %v226, %v241
      %v245 = vlaneseq
      %v246 = vshrl.u32 %v245, 7
      %v247 = vsub.s32 0, %v246
      %v248 = vrot.slane %v227, %v247
      %v250 = vmul.f32 %v242, %v248
      %v251 = vmul.f32 %v243, %v248
      %v252 = vld [vmem:[%s3] sm:$0xff]
      %v253 = vld [vmem:[%s3 + $0x8] sm:$0xff]
      %v254 = vadd.f32 %v250, %v252
      %v255 = vadd.f32 %v251, %v253
      %s256 = scalar_lea.vmem %s1, 16
      %v257 = vld [vmem:[%s256] sm:$0xff]
      %v258 = vld [vmem:[%s256 + $0x8] sm:$0xff]
      %v259 = vpack.c.bf16 %v258, %v257
      %v260 = vld [vmem:[%s5] sm:$0xf]
      %v261 = vld [vmem:[%s5 + $0x4] sm:$0xf]
      %v262 = vld [vmem:[%s5 + $0x8] sm:$0xf]
      %v263 = vld [vmem:[%s5 + $0xc] sm:$0xf]
      %v264 = vld [vmem:[%s5 + $0x10] sm:$0xf]
      %v265 = vld [vmem:[%s5 + $0x14] sm:$0xf]
      %v266 = vld [vmem:[%s6] sm:$0x1]
      %v268 = vlaneseq
      %v269 = vshrl.u32 %v268, 7
      %v270 = vsub.s32 0, %v269
      %v271 = vrot.slane %v266, %v270
      %v279 = vunpack.c.l.b16 %v260
      %v280 = vunpack.c.l.b16 %v261
      %v281 = vunpack.c.l.b16 %v262
      %v282 = vunpack.c.l.b16 %v263
      %v283 = vunpack.c.l.b16 %v264
      %v284 = vunpack.c.l.b16 %v265
      %v285 = vpack.c.b16 %v280, %v279
      %v286 = vpack.c.b16 %v282, %v281
      %v287 = vpack.c.b16 %v284, %v283
      %v292 = vsel %vm161, %v259, 0
      %294 = vmatprep.subr.bf16.mxu0 0
      %295 = vmatpush1.bf16.msra.mxu0 %v285
      %296 = vmatprep.subr.bf16.mxu0 0
      %297 = vmatpush1.bf16.msra.mxu0 %v286
      %298 = vmatprep.subr.bf16.mxu0 0
      %299 = vmatpush1.bf16.msra.mxu0 %v287
      %300 = vmatprep.subr.bf16.mxu0 0
      %301 = vmatpush1.bf16.msra.mxu0 0
      %302 = vmatprep.subr.bf16.mxu0 0
      %303 = vmatpush1.bf16.msra.mxu0 0
      %304 = vmatprep.subr.bf16.mxu0 0
      %305 = vmatpush1.bf16.msra.mxu0 0
      %306 = vmatprep.subr.bf16.mxu0 0
      %307 = vmatpush1.bf16.msra.mxu0 0
      %308 = vmatprep.subr.bf16.mxu0 0
      %309 = vmatpush1.bf16.msra.mxu0 0
      %310 = vmatprep.subr.bf16.mxu0 0
      %311 = vmatpush1.bf16.msra.mxu0 0
      %312 = vmatprep.subr.bf16.mxu0 0
      %313 = vmatpush1.bf16.msra.mxu0 0
      %314 = vmatprep.subr.bf16.mxu0 0
      %315 = vmatpush1.bf16.msra.mxu0 0
      %316 = vmatprep.subr.bf16.mxu0 0
      %317 = vmatpush1.bf16.msra.mxu0 0
      %318 = vmatprep.subr.bf16.mxu0 0
      %319 = vmatpush1.bf16.msra.mxu0 0
      %320 = vmatprep.subr.bf16.mxu0 0
      %321 = vmatpush1.bf16.msra.mxu0 0
      %322 = vmatprep.subr.bf16.mxu0 0
      %323 = vmatpush1.bf16.msra.mxu0 0
      %324 = vmatprep.subr.bf16.mxu0 0
      %325 = vmatpush1.bf16.msra.mxu0 0
      %326 = vmatprep.mubr.bf16.mxu0 0
      %327 = vmatmul.mubr.bf16.gmra.mrb[0].mxu0 %v292
      %v328 = vpop.f32.mrb[0].mxu0
      %v329 = vadd.f32 %v271, %v328
      %v330 = vpop.f32.mrb[0].mxu0
      %v331 = vpop.f32.mrb[0].mxu0
      %v332 = vadd.f32 %v271, %v331
      %v333 = vpop.f32.mrb[0].mxu0
      %334 = vdwg.mxu0
      %v335 = vpack.c.bf16 %v332, %v329
      %s336 = scalar_lea.vmem [#allocation2], 16
      %337 = vst.msk [vmem:[%s336] sm:$0xff] %vm99, %v335
      %v338 = vpack.c.bf16 %v255, %v254
      %339 = vst.msk [vmem:[%s336 + $0x8] sm:$0xff] %vm99, %v338
      %s340 = scalar_lea.vmem %s2, 1
      %v341 = vld [vmem:[%s340] sm:$0x1]
      %vm342 = vcmp.gt.f32.partialorder %v341, 0.5
      %v343 = vsel %vm342, 1, 0
      %v344 = vlaneseq
      %v345 = vshrl.u32 %v344, 7
      %v346 = vsub.s32 0, %v345
      %v347 = vrot.slane %v343, %v346
      %vm348 = vcmp.eq.s32.totalorder %v347, 1
      %vm349 = vmand %vm92, %vm348
      %vm350 = vmand %vm93, %vm348
      %v351 = vsel %vm349, 0.0, -1e+30
      %v352 = vsel %vm350, 0.0, -1e+30
      %v353 = vpack.c.bf16 %v352, %v351
      %s354 = scalar_lea.vmem [#allocation3], 8
      %355 = vst.msk [vmem:[%s354] sm:$0xff] %vm99, %v353
    $region81: #{basic_transformer_block.2} parent=1 // pred_fallthru
      _
    %v356 = vld [vmem:[%s7] sm:$0xf]
    %v357 = vld [vmem:[%s7 + $0x4] sm:$0xf]
    %v358 = vld [vmem:[%s7 + $0x8] sm:$0xf]
    %v359 = vld [vmem:[%s7 + $0xc] sm:$0xf]
    %v360 = vld [vmem:[%s9] sm:$0xf]
    %v361 = vld [vmem:[%s9 + $0x4] sm:$0xf]
    %v362 = vld [vmem:[%s9 + $0x8] sm:$0xf]
    %v363 = vld [vmem:[%s9 + $0xc] sm:$0xf]
    %v364 = vld [vmem:[%s11] sm:$0xf]
    %v365 = vld [vmem:[%s11 + $0x4] sm:$0xf]
    %v366 = vld [vmem:[%s11 + $0x8] sm:$0xf]
    %v367 = vld [vmem:[%s11 + $0xc] sm:$0xf]
    %v368 = vld [vmem:[%s8] sm:$0x1]
    %v369 = vld [vmem:[#allocation5] sm:$0x1]
    %v370 = vld [vmem:[%s12] sm:$0x1]
    %v371 = vld [vmem:[#allocation2] sm:$0xff]
    %v372 = vld [vmem:[#allocation2 + $0x8] sm:$0xff]
    %v374 = vlaneseq
    %v375 = vshrl.u32 %v374, 7
    %v376 = vsub.s32 0, %v375
    %v377 = vrot.slane %v368, %v376
    %v383 = vunpack.c.l.b16 %v356
    %v384 = vunpack.c.l.b16 %v357
    %v385 = vunpack.c.l.b16 %v358
    %v386 = vunpack.c.l.b16 %v359
    %v387 = vpack.c.b16 %v384, %v383
    %v388 = vpack.c.b16 %v386, %v385
    %vm391 = vcmask 261120
    %v393 = vsel %vm391, %v372, 0
    %395 = vmatprep.subr.bf16.mxu0 0
    %396 = vmatpush1.bf16.msra.mxu0 %v387
    %397 = vmatprep.subr.bf16.mxu0 0
    %398 = vmatpush1.bf16.msra.mxu0 %v388
    %399 = vmatprep.subr.bf16.mxu0 0
    %400 = vmatpush1.bf16.msra.mxu0 0
    %401 = vmatprep.subr.bf16.mxu0 0
    %402 = vmatpush1.bf16.msra.mxu0 0
    %403 = vmatprep.subr.bf16.mxu0 0
    %404 = vmatpush1.bf16.msra.mxu0 0
    %405 = vmatprep.subr.bf16.mxu0 0
    %406 = vmatpush1.bf16.msra.mxu0 0
    %407 = vmatprep.subr.bf16.mxu0 0
    %408 = vmatpush1.bf16.msra.mxu0 0
    %409 = vmatprep.subr.bf16.mxu0 0
    %410 = vmatpush1.bf16.msra.mxu0 0
    %411 = vmatprep.subr.bf16.mxu0 0
    %412 = vmatpush1.bf16.msra.mxu0 0
    %413 = vmatprep.subr.bf16.mxu0 0
    %414 = vmatpush1.bf16.msra.mxu0 0
    %415 = vmatprep.subr.bf16.mxu0 0
    %416 = vmatpush1.bf16.msra.mxu0 0
    %417 = vmatprep.subr.bf16.mxu0 0
    %418 = vmatpush1.bf16.msra.mxu0 0
    %419 = vmatprep.subr.bf16.mxu0 0
    %420 = vmatpush1.bf16.msra.mxu0 0
    %421 = vmatprep.subr.bf16.mxu0 0
    %422 = vmatpush1.bf16.msra.mxu0 0
    %423 = vmatprep.subr.bf16.mxu0 0
    %424 = vmatpush1.bf16.msra.mxu0 0
    %425 = vmatprep.subr.bf16.mxu0 0
    %426 = vmatpush1.bf16.msra.mxu0 0
    %427 = vmatprep.mubr.bf16.mxu0 0
    %428 = vmatmul.mubr.bf16.gmra.mrb[0].mxu0 %v393
    %v429 = vpop.f32.mrb[0].mxu0
    %v430 = vadd.f32 %v377, %v429
    %v431 = vpop.f32.mrb[0].mxu0
    %v432 = vpop.f32.mrb[0].mxu0
    %v433 = vadd.f32 %v377, %v432
    %v434 = vpop.f32.mrb[0].mxu0
    %435 = vdwg.mxu0
    %v437 = vlaneseq
    %v438 = vshrl.u32 %v437, 7
    %v439 = vsub.s32 0, %v438
    %v440 = vrot.slane %v369, %v439
    %v446 = vunpack.c.l.b16 %v360
    %v447 = vunpack.c.l.b16 %v361
    %v448 = vunpack.c.l.b16 %v362
    %v449 = vunpack.c.l.b16 %v363
    %v450 = vpack.c.b16 %v447, %v446
    %v451 = vpack.c.b16 %v449, %v448
    %v455 = vsel %vm391, %v371, 0
    %457 = vmatprep.subr.bf16.mxu0 0
    %458 = vmatpush1.bf16.msra.mxu0 %v450
    %459 = vmatprep.subr.bf16.mxu0 0
    %460 = vmatpush1.bf16.msra.mxu0 %v451
    %461 = vmatprep.subr.bf16.mxu0 0
    %462 = vmatpush1.bf16.msra.mxu0 0
    %463 = vmatprep.subr.bf16.mxu0 0
    %464 = vmatpush1.bf16.msra.mxu0 0
    %465 = vmatprep.subr.bf16.mxu0 0
    %466 = vmatpush1.bf16.msra.mxu0 0
    %467 = vmatprep.subr.bf16.mxu0 0
    %468 = vmatpush1.bf16.msra.mxu0 0
    %469 = vmatprep.subr.bf16.mxu0 0
    %470 = vmatpush1.bf16.msra.mxu0 0
    %471 = vmatprep.subr.bf16.mxu0 0
    %472 = vmatpush1.bf16.msra.mxu0 0
    %473 = vmatprep.subr.bf16.mxu0 0
    %474 = vmatpush1.bf16.msra.mxu0 0
    %475 = vmatprep.subr.bf16.mxu0 0
    %476 = vmatpush1.bf16.msra.mxu0 0
    %477 = vmatprep.subr.bf16.mxu0 0
    %478 = vmatpush1.bf16.msra.mxu0 0
    %479 = vmatprep.subr.bf16.mxu0 0
    %480 = vmatpush1.bf16.msra.mxu0 0
    %481 = vmatprep.subr.bf16.mxu0 0
    %482 = vmatpush1.bf16.msra.mxu0 0
    %483 = vmatprep.subr.bf16.mxu0 0
    %484 = vmatpush1.bf16.msra.mxu0 0
    %485 = vmatprep.subr.bf16.mxu0 0
    %486 = vmatpush1.bf16.msra.mxu0 0
    %487 = vmatprep.subr.bf16.mxu0 0
    %488 = vmatpush1.bf16.msra.mxu0 0
    %489 = vmatprep.mubr.bf16.mxu0 0
    %490 = vmatmul.mubr.bf16.gmra.mrb[0].mxu0 %v455
    %v491 = vpop.f32.mrb[0].mxu0
    %v492 = vadd.f32 %v440, %v491
    %v493 = vpop.f32.mrb[0].mxu0
    %v494 = vpop.f32.mrb[0].mxu0
    %v495 = vadd.f32 %v440, %v494
    %v496 = vpop.f32.mrb[0].mxu0
    %497 = vmatprep.mubr.bf16.mxu0 0
    %498 = vmatmul.mubr.bf16.gmra.mrb[0].mxu0 %v393
    %v499 = vpop.f32.mrb[0].mxu0
    %v500 = vadd.f32 %v440, %v499
    %v501 = vpop.f32.mrb[0].mxu0
    %v502 = vpop.f32.mrb[0].mxu0
    %v503 = vadd.f32 %v440, %v502
    %v504 = vpop.f32.mrb[0].mxu0
    %505 = vdwg.mxu0
    %v507 = vlaneseq
    %v508 = vshrl.u32 %v507, 7
    %v509 = vsub.s32 0, %v508
    %v510 = vrot.slane %v370, %v509
    %v516 = vunpack.c.l.b16 %v364
    %v517 = vunpack.c.l.b16 %v365
    %v518 = vunpack.c.l.b16 %v366
    %v519 = vunpack.c.l.b16 %v367
    %v520 = vpack.c.b16 %v517, %v516
    %v521 = vpack.c.b16 %v519, %v518
    %524 = vmatprep.subr.bf16.mxu0 0
    %525 = vmatpush1.bf16.msra.mxu0 %v520
    %526 = vmatprep.subr.bf16.mxu0 0
    %527 = vmatpush1.bf16.msra.mxu0 %v521
    %528 = vmatprep.subr.bf16.mxu0 0
    %529 = vmatpush1.bf16.msra.mxu0 0
    %530 = vmatprep.subr.bf16.mxu0 0
    %531 = vmatpush1.bf16.msra.mxu0 0
    %532 = vmatprep.subr.bf16.mxu0 0
    %533 = vmatpush1.bf16.msra.mxu0 0
    %534 = vmatprep.subr.bf16.mxu0 0
    %535 = vmatpush1.bf16.msra.mxu0 0
    %536 = vmatprep.subr.bf16.mxu0 0
    %537 = vmatpush1.bf16.msra.mxu0 0
    %538 = vmatprep.subr.bf16.mxu0 0
    %539 = vmatpush1.bf16.msra.mxu0 0
    %540 = vmatprep.subr.bf16.mxu0 0
    %541 = vmatpush1.bf16.msra.mxu0 0
    %542 = vmatprep.subr.bf16.mxu0 0
    %543 = vmatpush1.bf16.msra.mxu0 0
    %544 = vmatprep.subr.bf16.mxu0 0
    %545 = vmatpush1.bf16.msra.mxu0 0
    %546 = vmatprep.subr.bf16.mxu0 0
    %547 = vmatpush1.bf16.msra.mxu0 0
    %548 = vmatprep.subr.bf16.mxu0 0
    %549 = vmatpush1.bf16.msra.mxu0 0
    %550 = vmatprep.subr.bf16.mxu0 0
    %551 = vmatpush1.bf16.msra.mxu0 0
    %552 = vmatprep.subr.bf16.mxu0 0
    %553 = vmatpush1.bf16.msra.mxu0 0
    %554 = vmatprep.subr.bf16.mxu0 0
    %555 = vmatpush1.bf16.msra.mxu0 0
    %556 = vmatprep.mubr.bf16.mxu0 0
    %557 = vmatmul.mubr.bf16.gmra.mrb[0].mxu0 %v455
    %v558 = vpop.f32.mrb[0].mxu0
    %v559 = vadd.f32 %v510, %v558
    %v560 = vpop.f32.mrb[0].mxu0
    %v561 = vpop.f32.mrb[0].mxu0
    %v562 = vadd.f32 %v510, %v561
    %v563 = vpop.f32.mrb[0].mxu0
    %564 = vmatprep.mubr.bf16.mxu0 0
    %565 = vmatmul.mubr.bf16.gmra.mrb[0].mxu0 %v393
    %v566 = vpop.f32.mrb[0].mxu0
    %v567 = vadd.f32 %v510, %v566
    %v568 = vpop.f32.mrb[0].mxu0
    %v569 = vpop.f32.mrb[0].mxu0
    %v570 = vadd.f32 %v510, %v569
    %v571 = vpop.f32.mrb[0].mxu0
    %572 = vdwg.mxu0
    %v573 = vld [vmem:[#allocation3] sm:$0xff]
    %v574 = vunpack.c.l.bf16 %v573
    %v575 = vunpack.c.h.bf16 %v573
    %v576 = vld [vmem:[%s15] sm:$0x1]
    %v577 = vmul.f32 %v430, %v430
    %v578 = vmul.f32 %v433, %v433
    %vm579 = vcmask 64512
    %v580 = vsel %vm579, %v577, 0.0
    %581 = vadd.xlane.f32.xlu0 %v580
    %v582 = vpop.xlane.xlu0 %581
    %v583 = vsel %vm579, %v578, 0.0
    %584 = vadd.xlane.f32.xlu0 %v583
    %v585 = vpop.xlane.xlu0 %584
    %v586 = vrcp.pop 8.0
    %v587 = vmul.f32 %v582, %v586
    %v588 = vmul.f32 %v585, %v586
    %v589 = vadd.f32 %v587, 1e-06
    %v590 = vadd.f32 %v588, 1e-06
    %v591 = vrsqrt.pop %v589
    %v592 = vrsqrt.pop %v590
    %v593 = vmul.f32 %v430, %v591
    %v594 = vmul.f32 %v433, %v592
    %v596 = vlaneseq
    %v597 = vshrl.u32 %v596, 7
    %v598 = vsub.s32 0, %v597
    %v599 = vrot.slane %v576, %v598
    %v601 = vmul.f32 %v593, %v599
    %v602 = vmul.f32 %v594, %v599
    %v603 = vmul.f32 %v601, 0.35355338
    %v604 = vmul.f32 %v602, 0.35355338
    %v605 = vpack.c.bf16 %v604, %v603
    %v606 = vld [vmem:[%s16] sm:$0x1]
    %v607 = vmul.f32 %v492, %v492
    %v608 = vmul.f32 %v495, %v495
    %v609 = vmul.f32 %v500, %v500
    %v610 = vmul.f32 %v503, %v503
    %v611 = vsel %vm579, %v607, 0.0
    %612 = vadd.xlane.f32.xlu0 %v611
    %v613 = vpop.xlane.xlu0 %612
    %v614 = vsel %vm579, %v608, 0.0
    %615 = vadd.xlane.f32.xlu0 %v614
    %v616 = vpop.xlane.xlu0 %615
    %v617 = vsel %vm579, %v609, 0.0
    %618 = vadd.xlane.f32.xlu0 %v617
    %v619 = vpop.xlane.xlu0 %618
    %v620 = vsel %vm579, %v610, 0.0
    %621 = vadd.xlane.f32.xlu0 %v620
    %v622 = vpop.xlane.xlu0 %621
    %v623 = vmul.f32 %v613, %v586
    %v624 = vmul.f32 %v616, %v586
    %v625 = vmul.f32 %v619, %v586
    %v626 = vmul.f32 %v622, %v586
    %v627 = vadd.f32 %v623, 1e-06
    %v628 = vadd.f32 %v624, 1e-06
    %v629 = vadd.f32 %v625, 1e-06
    %v630 = vadd.f32 %v626, 1e-06
    %v631 = vrsqrt.pop %v627
    %v632 = vrsqrt.pop %v628
    %v633 = vrsqrt.pop %v629
    %v634 = vrsqrt.pop %v630
    %v635 = vmul.f32 %v492, %v631
    %v636 = vmul.f32 %v495, %v632
    %v637 = vmul.f32 %v500, %v633
    %v638 = vmul.f32 %v503, %v634
    %v640 = vlaneseq
    %v641 = vshrl.u32 %v640, 7
    %v642 = vsub.s32 0, %v641
    %v643 = vrot.slane %v606, %v642
    %v645 = vmul.f32 %v635, %v643
    %v646 = vmul.f32 %v636, %v643
    %v647 = vmul.f32 %v637, %v643
    %v648 = vmul.f32 %v638, %v643
    %v649 = vpack.c.bf16 %v646, %v645
    %v650 = vpack.c.bf16 %v648, %v647
    %v652 = vsel %vm579, %v605, 0
    %v655 = vsel %vm579, %v649, 0
    %v658 = vsel %vm579, %v650, 0
    %660 = vmatprep.subr.bf16.mxu0 0
    %661 = vmatpush1.bf16.xpose.msra.mxu0 %v655
    %662 = vmatprep.subr.bf16.mxu0 0
    %663 = vmatpush1.bf16.xpose.msra.mxu0 %v658
    %664 = vmatprep.subr.bf16.mxu0 0
    %665 = vmatpush1.bf16.xpose.msra.mxu0 0
    %666 = vmatprep.subr.bf16.mxu0 0
    %667 = vmatpush1.bf16.xpose.msra.mxu0 0
    %668 = vmatprep.subr.bf16.mxu0 0
    %669 = vmatpush1.bf16.xpose.msra.mxu0 0
    %670 = vmatprep.subr.bf16.mxu0 0
    %671 = vmatpush1.bf16.xpose.msra.mxu0 0
    %672 = vmatprep.subr.bf16.mxu0 0
    %673 = vmatpush1.bf16.xpose.msra.mxu0 0
    %674 = vmatprep.subr.bf16.mxu0 0
    %675 = vmatpush1.bf16.xpose.msra.mxu0 0
    %676 = vmatprep.subr.bf16.mxu0 0
    %677 = vmatpush1.bf16.xpose.msra.mxu0 0
    %678 = vmatprep.subr.bf16.mxu0 0
    %679 = vmatpush1.bf16.xpose.msra.mxu0 0
    %680 = vmatprep.subr.bf16.mxu0 0
    %681 = vmatpush1.bf16.xpose.msra.mxu0 0
    %682 = vmatprep.subr.bf16.mxu0 0
    %683 = vmatpush1.bf16.xpose.msra.mxu0 0
    %684 = vmatprep.subr.bf16.mxu0 0
    %685 = vmatpush1.bf16.xpose.msra.mxu0 0
    %686 = vmatprep.subr.bf16.mxu0 0
    %687 = vmatpush1.bf16.xpose.msra.mxu0 0
    %688 = vmatprep.subr.bf16.mxu0 0
    %689 = vmatpush1.bf16.xpose.msra.mxu0 0
    %690 = vmatprep.subr.bf16.mxu0 0
    %691 = vmatpush1.bf16.xpose.msra.mxu0 0
    %692 = vmatprep.mubr.bf16.mxu0 0
    %693 = vmatmul.mubr.bf16.gmra.mrb[0].mxu0 %v652
    %v694 = vpop.f32.mrb[0].mxu0
    %v695 = vadd.f32 %v574, %v694
    %v696 = vpop.f32.mrb[0].mxu0
    %v697 = vpop.f32.mrb[0].mxu0
    %v698 = vadd.f32 %v575, %v697
    %v699 = vpop.f32.mrb[0].mxu0
    %700 = vdwg.mxu0
    %v701 = vsel %vm391, %v695, -inf
    %702 = vmax.xlane.f32.xlu0 %v701
    %v703 = vpop.xlane.xlu0 %702
    %v704 = vsel %vm391, %v698, -inf
    %705 = vmax.xlane.f32.xlu0 %v704
    %v706 = vpop.xlane.xlu0 %705
    %v707 = vsub.f32 %v695, %v703
    %v708 = vsub.f32 %v698, %v706
    %v709 = vmul.f32 %v707, 1.442695
    %v710 = vpow.pop %v709
    %v711 = vmul.f32 %v708, 1.442695
    %v712 = vpow.pop %v711
    %v713 = vsel %vm391, %v710, 0.0
    %714 = vadd.xlane.f32.xlu0 %v713
    %v715 = vpop.xlane.xlu0 %714
    %v716 = vsel %vm391, %v712, 0.0
    %717 = vadd.xlane.f32.xlu0 %v716
    %v718 = vpop.xlane.xlu0 %717
    %v719 = vrcp.pop %v715
    %v720 = vrcp.pop %v718
    %v721 = vmul.f32 %v710, %v719
    %v722 = vmul.f32 %v712, %v720
    %v723 = vpack.c.bf16 %v722, %v721
    %v724 = vpack.c.bf16 %v562, %v559
    %v725 = vpack.c.bf16 %v570, %v567
    %v727 = vsel %vm391, %v723, 0
    %729 = vmatprep.subr.bf16.mxu0 0
    %730 = vmatpush1.bf16.msra.mxu0 %v724
    %731 = vmatprep.subr.bf16.mxu0 0
    %732 = vmatpush1.bf16.msra.mxu0 %v725
    %733 = vmatprep.subr.bf16.mxu0 0
    %734 = vmatpush1.bf16.msra.mxu0 0
    %735 = vmatprep.subr.bf16.mxu0 0
    %736 = vmatpush1.bf16.msra.mxu0 0
    %737 = vmatprep.subr.bf16.mxu0 0
    %738 = vmatpush1.bf16.msra.mxu0 0
    %739 = vmatprep.subr.bf16.mxu0 0
    %740 = vmatpush1.bf16.msra.mxu0 0
    %741 = vmatprep.subr.bf16.mxu0 0
    %742 = vmatpush1.bf16.msra.mxu0 0
    %743 = vmatprep.subr.bf16.mxu0 0
    %744 = vmatpush1.bf16.msra.mxu0 0
    %745 = vmatprep.subr.bf16.mxu0 0
    %746 = vmatpush1.bf16.msra.mxu0 0
    %747 = vmatprep.subr.bf16.mxu0 0
    %748 = vmatpush1.bf16.msra.mxu0 0
    %749 = vmatprep.subr.bf16.mxu0 0
    %750 = vmatpush1.bf16.msra.mxu0 0
    %751 = vmatprep.subr.bf16.mxu0 0
    %752 = vmatpush1.bf16.msra.mxu0 0
    %753 = vmatprep.subr.bf16.mxu0 0
    %754 = vmatpush1.bf16.msra.mxu0 0
    %755 = vmatprep.subr.bf16.mxu0 0
    %756 = vmatpush1.bf16.msra.mxu0 0
    %757 = vmatprep.subr.bf16.mxu0 0
    %758 = vmatpush1.bf16.msra.mxu0 0
    %759 = vmatprep.subr.bf16.mxu0 0
    %760 = vmatpush1.bf16.msra.mxu0 0
    %761 = vmatprep.mubr.bf16.mxu0 0
    %762 = vmatmul.mubr.bf16.gmra.mrb[0].mxu0 %v727
    %v763 = vpop.f32.mrb[0].mxu0
    %v764 = vadd.f32 0.0, %v763
    %v765 = vpop.f32.mrb[0].mxu0
    %v766 = vpop.f32.mrb[0].mxu0
    %v767 = vadd.f32 0.0, %v766
    %v768 = vpop.f32.mrb[0].mxu0
    %769 = vdwg.mxu0
    %772 = vrot.lane.b32.xlu0 %v577, 120
    %v773 = vpop.permute.xlu0 %772
    %774 = vrot.lane.b32.xlu0 %v578, 120
    %v775 = vpop.permute.xlu0 %774
    %v778 = vsel %vm579, %v773, 0.0
    %779 = vadd.xlane.f32.xlu0 %v778
    %v780 = vpop.xlane.xlu0 %779
    %v781 = vsel %vm579, %v775, 0.0
    %782 = vadd.xlane.f32.xlu0 %v781
    %v783 = vpop.xlane.xlu0 %782
    %v784 = vmul.f32 %v780, %v586
    %v785 = vmul.f32 %v783, %v586
    %v786 = vadd.f32 %v784, 1e-06
    %v787 = vadd.f32 %v785, 1e-06
    %v788 = vrsqrt.pop %v786
    %v789 = vrsqrt.pop %v787
    %v790 = vmul.f32 %v430, %v788
    %v791 = vmul.f32 %v433, %v789
    %792 = vrot.lane.b32.xlu0 %v599, 8
    %v793 = vpop.permute.xlu0 %792
    %v795 = vmul.f32 %v790, %v793
    %v796 = vmul.f32 %v791, %v793
    %v797 = vmul.f32 %v795, 0.35355338
    %v798 = vmul.f32 %v796, 0.35355338
    %v799 = vpack.c.bf16 %v798, %v797
    %804 = vrot.lane.b32.xlu0 %v607, 120
    %v805 = vpop.permute.xlu0 %804
    %806 = vrot.lane.b32.xlu0 %v608, 120
    %v807 = vpop.permute.xlu0 %806
    %808 = vrot.lane.b32.xlu0 %v609, 120
    %v809 = vpop.permute.xlu0 %808
    %810 = vrot.lane.b32.xlu0 %v610, 120
    %v811 = vpop.permute.xlu0 %810
    %v816 = vsel %vm579, %v805, 0.0
    %817 = vadd.xlane.f32.xlu0 %v816
    %v818 = vpop.xlane.xlu0 %817
    %v819 = vsel %vm579, %v807, 0.0
    %820 = vadd.xlane.f32.xlu0 %v819
    %v821 = vpop.xlane.xlu0 %820
    %v822 = vsel %vm579, %v809, 0.0
    %823 = vadd.xlane.f32.xlu0 %v822
    %v824 = vpop.xlane.xlu0 %823
    %v825 = vsel %vm579, %v811, 0.0
    %826 = vadd.xlane.f32.xlu0 %v825
    %v827 = vpop.xlane.xlu0 %826
    %v828 = vmul.f32 %v818, %v586
    %v829 = vmul.f32 %v821, %v586
    %v830 = vmul.f32 %v824, %v586
    %v831 = vmul.f32 %v827, %v586
    %v832 = vadd.f32 %v828, 1e-06
    %v833 = vadd.f32 %v829, 1e-06
    %v834 = vadd.f32 %v830, 1e-06
    %v835 = vadd.f32 %v831, 1e-06
    %v836 = vrsqrt.pop %v832
    %v837 = vrsqrt.pop %v833
    %v838 = vrsqrt.pop %v834
    %v839 = vrsqrt.pop %v835
    %v840 = vmul.f32 %v492, %v836
    %v841 = vmul.f32 %v495, %v837
    %v842 = vmul.f32 %v500, %v838
    %v843 = vmul.f32 %v503, %v839
    %844 = vrot.lane.b32.xlu0 %v643, 8
    %v845 = vpop.permute.xlu0 %844
    %v847 = vmul.f32 %v840, %v845
    %v848 = vmul.f32 %v841, %v845
    %v849 = vmul.f32 %v842, %v845
    %v850 = vmul.f32 %v843, %v845
    %v851 = vpack.c.bf16 %v848, %v847
    %v852 = vpack.c.bf16 %v850, %v849
    %854 = vrot.lane.b32.xlu0 %v799, 120
    %v855 = vpop.permute.xlu0 %854
    %858 = vrot.lane.b32.xlu0 %v851, 120
    %v859 = vpop.permute.xlu0 %858
    %860 = vrot.lane.b32.xlu0 %v852, 120
    %v861 = vpop.permute.xlu0 %860
    %v863 = vsel %vm579, %v855, 0
    %v866 = vsel %vm579, %v859, 0
    %v869 = vsel %vm579, %v861, 0
    %871 = vmatprep.subr.bf16.mxu0 0
    %872 = vmatpush1.bf16.xpose.msra.mxu0 %v866
    %873 = vmatprep.subr.bf16.mxu0 0
    %874 = vmatpush1.bf16.xpose.msra.mxu0 %v869
    %875 = vmatprep.subr.bf16.mxu0 0
    %876 = vmatpush1.bf16.xpose.msra.mxu0 0
    %877 = vmatprep.subr.bf16.mxu0 0
    %878 = vmatpush1.bf16.xpose.msra.mxu0 0
    %879 = vmatprep.subr.bf16.mxu0 0
    %880 = vmatpush1.bf16.xpose.msra.mxu0 0
    %881 = vmatprep.subr.bf16.mxu0 0
    %882 = vmatpush1.bf16.xpose.msra.mxu0 0
    %883 = vmatprep.subr.bf16.mxu0 0
    %884 = vmatpush1.bf16.xpose.msra.mxu0 0
    %885 = vmatprep.subr.bf16.mxu0 0
    %886 = vmatpush1.bf16.xpose.msra.mxu0 0
    %887 = vmatprep.subr.bf16.mxu0 0
    %888 = vmatpush1.bf16.xpose.msra.mxu0 0
    %889 = vmatprep.subr.bf16.mxu0 0
    %890 = vmatpush1.bf16.xpose.msra.mxu0 0
    %891 = vmatprep.subr.bf16.mxu0 0
    %892 = vmatpush1.bf16.xpose.msra.mxu0 0
    %893 = vmatprep.subr.bf16.mxu0 0
    %894 = vmatpush1.bf16.xpose.msra.mxu0 0
    %895 = vmatprep.subr.bf16.mxu0 0
    %896 = vmatpush1.bf16.xpose.msra.mxu0 0
    %897 = vmatprep.subr.bf16.mxu0 0
    %898 = vmatpush1.bf16.xpose.msra.mxu0 0
    %899 = vmatprep.subr.bf16.mxu0 0
    %900 = vmatpush1.bf16.xpose.msra.mxu0 0
    %901 = vmatprep.subr.bf16.mxu0 0
    %902 = vmatpush1.bf16.xpose.msra.mxu0 0
    %903 = vmatprep.mubr.bf16.mxu0 0
    %904 = vmatmul.mubr.bf16.gmra.mrb[0].mxu0 %v863
    %v905 = vpop.f32.mrb[0].mxu0
    %v906 = vadd.f32 %v574, %v905
    %v907 = vpop.f32.mrb[0].mxu0
    %v908 = vpop.f32.mrb[0].mxu0
    %v909 = vadd.f32 %v575, %v908
    %v910 = vpop.f32.mrb[0].mxu0
    %911 = vdwg.mxu0
    %v912 = vsel %vm391, %v906, -inf
    %913 = vmax.xlane.f32.xlu0 %v912
    %v914 = vpop.xlane.xlu0 %913
    %v915 = vsel %vm391, %v909, -inf
    %916 = vmax.xlane.f32.xlu0 %v915
    %v917 = vpop.xlane.xlu0 %916
    %v918 = vsub.f32 %v906, %v914
    %v919 = vsub.f32 %v909, %v917
    %v920 = vmul.f32 %v918, 1.442695
    %v921 = vpow.pop %v920
    %v922 = vmul.f32 %v919, 1.442695
    %v923 = vpow.pop %v922
    %v924 = vsel %vm391, %v921, 0.0
    %925 = vadd.xlane.f32.xlu0 %v924
    %v926 = vpop.xlane.xlu0 %925
    %v927 = vsel %vm391, %v923, 0.0
    %928 = vadd.xlane.f32.xlu0 %v927
    %v929 = vpop.xlane.xlu0 %928
    %v930 = vrcp.pop %v926
    %v931 = vrcp.pop %v929
    %v932 = vmul.f32 %v921, %v930
    %v933 = vmul.f32 %v923, %v931
    %v934 = vpack.c.bf16 %v933, %v932
    %937 = vrot.lane.b32.xlu0 %v724, 120
    %v938 = vpop.permute.xlu0 %937
    %939 = vrot.lane.b32.xlu0 %v725, 120
    %v940 = vpop.permute.xlu0 %939
    %v944 = vsel %vm391, %v934, 0
    %946 = vmatprep.subr.bf16.mxu0 0
    %947 = vmatpush1.bf16.msra.mxu0 %v938
    %948 = vmatprep.subr.bf16.mxu0 0
    %949 = vmatpush1.bf16.msra.mxu0 %v940
    %950 = vmatprep.subr.bf16.mxu0 0
    %951 = vmatpush1.bf16.msra.mxu0 0
    %952 = vmatprep.subr.bf16.mxu0 0
    %953 = vmatpush1.bf16.msra.mxu0 0
    %954 = vmatprep.subr.bf16.mxu0 0
    %955 = vmatpush1.bf16.msra.mxu0 0
    %956 = vmatprep.subr.bf16.mxu0 0
    %957 = vmatpush1.bf16.msra.mxu0 0
    %958 = vmatprep.subr.bf16.mxu0 0
    %959 = vmatpush1.bf16.msra.mxu0 0
    %960 = vmatprep.subr.bf16.mxu0 0
    %961 = vmatpush1.bf16.msra.mxu0 0
    %962 = vmatprep.subr.bf16.mxu0 0
    %963 = vmatpush1.bf16.msra.mxu0 0
    %964 = vmatprep.subr.bf16.mxu0 0
    %965 = vmatpush1.bf16.msra.mxu0 0
    %966 = vmatprep.subr.bf16.mxu0 0
    %967 = vmatpush1.bf16.msra.mxu0 0
    %968 = vmatprep.subr.bf16.mxu0 0
    %969 = vmatpush1.bf16.msra.mxu0 0
    %970 = vmatprep.subr.bf16.mxu0 0
    %971 = vmatpush1.bf16.msra.mxu0 0
    %972 = vmatprep.subr.bf16.mxu0 0
    %973 = vmatpush1.bf16.msra.mxu0 0
    %974 = vmatprep.subr.bf16.mxu0 0
    %975 = vmatpush1.bf16.msra.mxu0 0
    %976 = vmatprep.subr.bf16.mxu0 0
    %977 = vmatpush1.bf16.msra.mxu0 0
    %978 = vmatprep.mubr.bf16.mxu0 0
    %979 = vmatmul.mubr.bf16.gmra.mrb[0].mxu0 %v944
    %v980 = vpop.f32.mrb[0].mxu0
    %v981 = vadd.f32 0.0, %v980
    %v982 = vpop.f32.mrb[0].mxu0
    %v983 = vpop.f32.mrb[0].mxu0
    %v984 = vadd.f32 0.0, %v983
    %v985 = vpop.f32.mrb[0].mxu0
    %986 = vdwg.mxu0
    %987 = vrot.lane.b32.xlu0 %v577, 112
    %v988 = vpop.permute.xlu0 %987
    %989 = vrot.lane.b32.xlu0 %v578, 112
    %v990 = vpop.permute.xlu0 %989
    %v993 = vsel %vm579, %v988, 0.0
    %994 = vadd.xlane.f32.xlu0 %v993
    %v995 = vpop.xlane.xlu0 %994
    %v996 = vsel %vm579, %v990, 0.0
    %997 = vadd.xlane.f32.xlu0 %v996
    %v998 = vpop.xlane.xlu0 %997
    %v999 = vmul.f32 %v995, %v586
    %v1000 = vmul.f32 %v998, %v586
    %v1001 = vadd.f32 %v999, 1e-06
    %v1002 = vadd.f32 %v1000, 1e-06
    %v1003 = vrsqrt.pop %v1001
    %v1004 = vrsqrt.pop %v1002
    %v1005 = vmul.f32 %v430, %v1003
    %v1006 = vmul.f32 %v433, %v1004
    %1007 = vrot.lane.b32.xlu0 %v599, 16
    %v1008 = vpop.permute.xlu0 %1007
    %v1010 = vmul.f32 %v1005, %v1008
    %v1011 = vmul.f32 %v1006, %v1008
    %v1012 = vmul.f32 %v1010, 0.35355338
    %v1013 = vmul.f32 %v1011, 0.35355338
    %v1014 = vpack.c.bf16 %v1013, %v1012
    %1015 = vrot.lane.b32.xlu0 %v607, 112
    %v1016 = vpop.permute.xlu0 %1015
    %1017 = vrot.lane.b32.xlu0 %v608, 112
    %v1018 = vpop.permute.xlu0 %1017
    %1019 = vrot.lane.b32.xlu0 %v609, 112
    %v1020 = vpop.permute.xlu0 %1019
    %1021 = vrot.lane.b32.xlu0 %v610, 112
    %v1022 = vpop.permute.xlu0 %1021
    %v1027 = vsel %vm579, %v1016, 0.0
    %1028 = vadd.xlane.f32.xlu0 %v1027
    %v1029 = vpop.xlane.xlu0 %1028
    %v1030 = vsel %vm579, %v1018, 0.0
    %1031 = vadd.xlane.f32.xlu0 %v1030
    %v1032 = vpop.xlane.xlu0 %1031
    %v1033 = vsel %vm579, %v1020, 0.0
    %1034 = vadd.xlane.f32.xlu0 %v1033
    %v1035 = vpop.xlane.xlu0 %1034
    %v1036 = vsel %vm579, %v1022, 0.0
    %1037 = vadd.xlane.f32.xlu0 %v1036
    %v1038 = vpop.xlane.xlu0 %1037
    %v1039 = vmul.f32 %v1029, %v586
    %v1040 = vmul.f32 %v1032, %v586
    %v1041 = vmul.f32 %v1035, %v586
    %v1042 = vmul.f32 %v1038, %v586
    %v1043 = vadd.f32 %v1039, 1e-06
    %v1044 = vadd.f32 %v1040, 1e-06
    %v1045 = vadd.f32 %v1041, 1e-06
    %v1046 = vadd.f32 %v1042, 1e-06
    %v1047 = vrsqrt.pop %v1043
    %v1048 = vrsqrt.pop %v1044
    %v1049 = vrsqrt.pop %v1045
    %v1050 = vrsqrt.pop %v1046
    %v1051 = vmul.f32 %v492, %v1047
    %v1052 = vmul.f32 %v495, %v1048
    %v1053 = vmul.f32 %v500, %v1049
    %v1054 = vmul.f32 %v503, %v1050
    %1055 = vrot.lane.b32.xlu0 %v643, 16
    %v1056 = vpop.permute.xlu0 %1055
    %v1058 = vmul.f32 %v1051, %v1056
    %v1059 = vmul.f32 %v1052, %v1056
    %v1060 = vmul.f32 %v1053, %v1056
    %v1061 = vmul.f32 %v1054, %v1056
    %v1062 = vpack.c.bf16 %v1059, %v1058
    %v1063 = vpack.c.bf16 %v1061, %v1060
    %1065 = vrot.lane.b32.xlu0 %v1014, 112
    %v1066 = vpop.permute.xlu0 %1065
    %1069 = vrot.lane.b32.xlu0 %v1062, 112
    %v1070 = vpop.permute.xlu0 %1069
    %1071 = vrot.lane.b32.xlu0 %v1063, 112
    %v1072 = vpop.permute.xlu0 %1071
    %v1074 = vsel %vm579, %v1066, 0
    %v1077 = vsel %vm579, %v1070, 0
    %v1080 = vsel %vm579, %v1072, 0
    %1082 = vmatprep.subr.bf16.mxu0 0
    %1083 = vmatpush1.bf16.xpose.msra.mxu0 %v1077
    %1084 = vmatprep.subr.bf16.mxu0 0
    %1085 = vmatpush1.bf16.xpose.msra.mxu0 %v1080
    %1086 = vmatprep.subr.bf16.mxu0 0
    %1087 = vmatpush1.bf16.xpose.msra.mxu0 0
    %1088 = vmatprep.subr.bf16.mxu0 0
    %1089 = vmatpush1.bf16.xpose.msra.mxu0 0
    %1090 = vmatprep.subr.bf16.mxu0 0
    %1091 = vmatpush1.bf16.xpose.msra.mxu0 0
    %1092 = vmatprep.subr.bf16.mxu0 0
    %1093 = vmatpush1.bf16.xpose.msra.mxu0 0
    %1094 = vmatprep.subr.bf16.mxu0 0
    %1095 = vmatpush1.bf16.xpose.msra.mxu0 0
    %1096 = vmatprep.subr.bf16.mxu0 0
    %1097 = vmatpush1.bf16.xpose.msra.mxu0 0
    %1098 = vmatprep.subr.bf16.mxu0 0
    %1099 = vmatpush1.bf16.xpose.msra.mxu0 0
    %1100 = vmatprep.subr.bf16.mxu0 0
    %1101 = vmatpush1.bf16.xpose.msra.mxu0 0
    %1102 = vmatprep.subr.bf16.mxu0 0
    %1103 = vmatpush1.bf16.xpose.msra.mxu0 0
    %1104 = vmatprep.subr.bf16.mxu0 0
    %1105 = vmatpush1.bf16.xpose.msra.mxu0 0
    %1106 = vmatprep.subr.bf16.mxu0 0
    %1107 = vmatpush1.bf16.xpose.msra.mxu0 0
    %1108 = vmatprep.subr.bf16.mxu0 0
    %1109 = vmatpush1.bf16.xpose.msra.mxu0 0
    %1110 = vmatprep.subr.bf16.mxu0 0
    %1111 = vmatpush1.bf16.xpose.msra.mxu0 0
    %1112 = vmatprep.subr.bf16.mxu0 0
    %1113 = vmatpush1.bf16.xpose.msra.mxu0 0
    %1114 = vmatprep.mubr.bf16.mxu0 0
    %1115 = vmatmul.mubr.bf16.gmra.mrb[0].mxu0 %v1074
    %v1116 = vpop.f32.mrb[0].mxu0
    %v1117 = vadd.f32 %v574, %v1116
    %v1118 = vpop.f32.mrb[0].mxu0
    %v1119 = vpop.f32.mrb[0].mxu0
    %v1120 = vadd.f32 %v575, %v1119
    %v1121 = vpop.f32.mrb[0].mxu0
    %1122 = vdwg.mxu0
    %v1123 = vsel %vm391, %v1117, -inf
    %1124 = vmax.xlane.f32.xlu0 %v1123
    %v1125 = vpop.xlane.xlu0 %1124
    %v1126 = vsel %vm391, %v1120, -inf
    %1127 = vmax.xlane.f32.xlu0 %v1126
    %v1128 = vpop.xlane.xlu0 %1127
    %v1129 = vsub.f32 %v1117, %v1125
    %v1130 = vsub.f32 %v1120, %v1128
    %v1131 = vmul.f32 %v1129, 1.442695
    %v1132 = vpow.pop %v1131
    %v1133 = vmul.f32 %v1130, 1.442695
    %v1134 = vpow.pop %v1133
    %v1135 = vsel %vm391, %v1132, 0.0
    %1136 = vadd.xlane.f32.xlu0 %v1135
    %v1137 = vpop.xlane.xlu0 %1136
    %v1138 = vsel %vm391, %v1134, 0.0
    %1139 = vadd.xlane.f32.xlu0 %v1138
    %v1140 = vpop.xlane.xlu0 %1139
    %v1141 = vrcp.pop %v1137
    %v1142 = vrcp.pop %v1140
    %v1143 = vmul.f32 %v1132, %v1141
    %v1144 = vmul.f32 %v1134, %v1142
    %v1145 = vpack.c.bf16 %v1144, %v1143
    %1146 = vrot.lane.b32.xlu0 %v724, 112
    %v1147 = vpop.permute.xlu0 %1146
    %1148 = vrot.lane.b32.xlu0 %v725, 112
    %v1149 = vpop.permute.xlu0 %1148
    %v1153 = vsel %vm391, %v1145, 0
    %1155 = vmatprep.subr.bf16.mxu0 0
    %1156 = vmatpush1.bf16.msra.mxu0 %v1147
    %1157 = vmatprep.subr.bf16.mxu0 0
    %1158 = vmatpush1.bf16.msra.mxu0 %v1149
    %1159 = vmatprep.subr.bf16.mxu0 0
    %1160 = vmatpush1.bf16.msra.mxu0 0
    %1161 = vmatprep.subr.bf16.mxu0 0
    %1162 = vmatpush1.bf16.msra.mxu0 0
    %1163 = vmatprep.subr.bf16.mxu0 0
    %1164 = vmatpush1.bf16.msra.mxu0 0
    %1165 = vmatprep.subr.bf16.mxu0 0
    %1166 = vmatpush1.bf16.msra.mxu0 0
    %1167 = vmatprep.subr.bf16.mxu0 0
    %1168 = vmatpush1.bf16.msra.mxu0 0
    %1169 = vmatprep.subr.bf16.mxu0 0
    %1170 = vmatpush1.bf16.msra.mxu0 0
    %1171 = vmatprep.subr.bf16.mxu0 0
    %1172 = vmatpush1.bf16.msra.mxu0 0
    %1173 = vmatprep.subr.bf16.mxu0 0
    %1174 = vmatpush1.bf16.msra.mxu0 0
    %1175 = vmatprep.subr.bf16.mxu0 0
    %1176 = vmatpush1.bf16.msra.mxu0 0
    %1177 = vmatprep.subr.bf16.mxu0 0
    %1178 = vmatpush1.bf16.msra.mxu0 0
    %1179 = vmatprep.subr.bf16.mxu0 0
    %1180 = vmatpush1.bf16.msra.mxu0 0
    %1181 = vmatprep.subr.bf16.mxu0 0
    %1182 = vmatpush1.bf16.msra.mxu0 0
    %1183 = vmatprep.subr.bf16.mxu0 0
    %1184 = vmatpush1.bf16.msra.mxu0 0
    %1185 = vmatprep.subr.bf16.mxu0 0
    %1186 = vmatpush1.bf16.msra.mxu0 0
    %1187 = vmatprep.mubr.bf16.mxu0 0
    %1188 = vmatmul.mubr.bf16.gmra.mrb[0].mxu0 %v1153
    %v1189 = vpop.f32.mrb[0].mxu0
    %v1190 = vadd.f32 0.0, %v1189
    %v1191 = vpop.f32.mrb[0].mxu0
    %v1192 = vpop.f32.mrb[0].mxu0
    %v1193 = vadd.f32 0.0, %v1192
    %v1194 = vpop.f32.mrb[0].mxu0
    %1195 = vdwg.mxu0
    %1196 = vrot.lane.b32.xlu0 %v577, 104
    %v1197 = vpop.permute.xlu0 %1196
    %1198 = vrot.lane.b32.xlu0 %v578, 104
    %v1199 = vpop.permute.xlu0 %1198
    %v1202 = vsel %vm579, %v1197, 0.0
    %1203 = vadd.xlane.f32.xlu0 %v1202
    %v1204 = vpop.xlane.xlu0 %1203
    %v1205 = vsel %vm579, %v1199, 0.0
    %1206 = vadd.xlane.f32.xlu0 %v1205
    %v1207 = vpop.xlane.xlu0 %1206
    %v1208 = vmul.f32 %v1204, %v586
    %v1209 = vmul.f32 %v1207, %v586
    %v1210 = vadd.f32 %v1208, 1e-06
    %v1211 = vadd.f32 %v1209, 1e-06
    %v1212 = vrsqrt.pop %v1210
    %v1213 = vrsqrt.pop %v1211
    %v1214 = vmul.f32 %v430, %v1212
    %v1215 = vmul.f32 %v433, %v1213
    %1216 = vrot.lane.b32.xlu0 %v599, 24
    %v1217 = vpop.permute.xlu0 %1216
    %v1219 = vmul.f32 %v1214, %v1217
    %v1220 = vmul.f32 %v1215, %v1217
    %v1221 = vmul.f32 %v1219, 0.35355338
    %v1222 = vmul.f32 %v1220, 0.35355338
    %v1223 = vpack.c.bf16 %v1222, %v1221
    %1224 = vrot.lane.b32.xlu0 %v607, 104
    %v1225 = vpop.permute.xlu0 %1224
    %1226 = vrot.lane.b32.xlu0 %v608, 104
    %v1227 = vpop.permute.xlu0 %1226
    %1228 = vrot.lane.b32.xlu0 %v609, 104
    %v1229 = vpop.permute.xlu0 %1228
    %1230 = vrot.lane.b32.xlu0 %v610, 104
    %v1231 = vpop.permute.xlu0 %1230
    %v1236 = vsel %vm579, %v1225, 0.0
    %1237 = vadd.xlane.f32.xlu0 %v1236
    %v1238 = vpop.xlane.xlu0 %1237
    %v1239 = vsel %vm579, %v1227, 0.0
    %1240 = vadd.xlane.f32.xlu0 %v1239
    %v1241 = vpop.xlane.xlu0 %1240
    %v1242 = vsel %vm579, %v1229, 0.0
    %1243 = vadd.xlane.f32.xlu0 %v1242
    %v1244 = vpop.xlane.xlu0 %1243
    %v1245 = vsel %vm579, %v1231, 0.0
    %1246 = vadd.xlane.f32.xlu0 %v1245
    %v1247 = vpop.xlane.xlu0 %1246
    %v1248 = vmul.f32 %v1238, %v586
    %v1249 = vmul.f32 %v1241, %v586
    %v1250 = vmul.f32 %v1244, %v586
    %v1251 = vmul.f32 %v1247, %v586
    %v1252 = vadd.f32 %v1248, 1e-06
    %v1253 = vadd.f32 %v1249, 1e-06
    %v1254 = vadd.f32 %v1250, 1e-06
    %v1255 = vadd.f32 %v1251, 1e-06
    %v1256 = vrsqrt.pop %v1252
    %v1257 = vrsqrt.pop %v1253
    %v1258 = vrsqrt.pop %v1254
    %v1259 = vrsqrt.pop %v1255
    %v1260 = vmul.f32 %v492, %v1256
    %v1261 = vmul.f32 %v495, %v1257
    %v1262 = vmul.f32 %v500, %v1258
    %v1263 = vmul.f32 %v503, %v1259
    %1264 = vrot.lane.b32.xlu0 %v643, 24
    %v1265 = vpop.permute.xlu0 %1264
    %v1267 = vmul.f32 %v1260, %v1265
    %v1268 = vmul.f32 %v1261, %v1265
    %v1269 = vmul.f32 %v1262, %v1265
    %v1270 = vmul.f32 %v1263, %v1265
    %v1271 = vpack.c.bf16 %v1268, %v1267
    %v1272 = vpack.c.bf16 %v1270, %v1269
    %1274 = vrot.lane.b32.xlu0 %v1223, 104
    %v1275 = vpop.permute.xlu0 %1274
    %1278 = vrot.lane.b32.xlu0 %v1271, 104
    %v1279 = vpop.permute.xlu0 %1278
    %1280 = vrot.lane.b32.xlu0 %v1272, 104
    %v1281 = vpop.permute.xlu0 %1280
    %v1283 = vsel %vm579, %v1275, 0
    %v1286 = vsel %vm579, %v1279, 0
    %v1289 = vsel %vm579, %v1281, 0
    %1291 = vmatprep.subr.bf16.mxu0 0
    %1292 = vmatpush1.bf16.xpose.msra.mxu0 %v1286
    %1293 = vmatprep.subr.bf16.mxu0 0
    %1294 = vmatpush1.bf16.xpose.msra.mxu0 %v1289
    %1295 = vmatprep.subr.bf16.mxu0 0
    %1296 = vmatpush1.bf16.xpose.msra.mxu0 0
    %1297 = vmatprep.subr.bf16.mxu0 0
    %1298 = vmatpush1.bf16.xpose.msra.mxu0 0
    %1299 = vmatprep.subr.bf16.mxu0 0
    %1300 = vmatpush1.bf16.xpose.msra.mxu0 0
    %1301 = vmatprep.subr.bf16.mxu0 0
    %1302 = vmatpush1.bf16.xpose.msra.mxu0 0
    %1303 = vmatprep.subr.bf16.mxu0 0
    %1304 = vmatpush1.bf16.xpose.msra.mxu0 0
    %1305 = vmatprep.subr.bf16.mxu0 0
    %1306 = vmatpush1.bf16.xpose.msra.mxu0 0
    %1307 = vmatprep.subr.bf16.mxu0 0
    %1308 = vmatpush1.bf16.xpose.msra.mxu0 0
    %1309 = vmatprep.subr.bf16.mxu0 0
    %1310 = vmatpush1.bf16.xpose.msra.mxu0 0
    %1311 = vmatprep.subr.bf16.mxu0 0
    %1312 = vmatpush1.bf16.xpose.msra.mxu0 0
    %1313 = vmatprep.subr.bf16.mxu0 0
    %1314 = vmatpush1.bf16.xpose.msra.mxu0 0
    %1315 = vmatprep.subr.bf16.mxu0 0
    %1316 = vmatpush1.bf16.xpose.msra.mxu0 0
    %1317 = vmatprep.subr.bf16.mxu0 0
    %1318 = vmatpush1.bf16.xpose.msra.mxu0 0
    %1319 = vmatprep.subr.bf16.mxu0 0
    %1320 = vmatpush1.bf16.xpose.msra.mxu0 0
    %1321 = vmatprep.subr.bf16.mxu0 0
    %1322 = vmatpush1.bf16.xpose.msra.mxu0 0
    %1323 = vmatprep.mubr.bf16.mxu0 0
    %1324 = vmatmul.mubr.bf16.gmra.mrb[0].mxu0 %v1283
    %v1325 = vpop.f32.mrb[0].mxu0
    %v1326 = vadd.f32 %v574, %v1325
    %v1327 = vpop.f32.mrb[0].mxu0
    %v1328 = vpop.f32.mrb[0].mxu0
    %v1329 = vadd.f32 %v575, %v1328
    %v1330 = vpop.f32.mrb[0].mxu0
    %1331 = vdwg.mxu0
    %v1332 = vsel %vm391, %v1326, -inf
    %1333 = vmax.xlane.f32.xlu0 %v1332
    %v1334 = vpop.xlane.xlu0 %1333
    %v1335 = vsel %vm391, %v1329, -inf
    %1336 = vmax.xlane.f32.xlu0 %v1335
    %v1337 = vpop.xlane.xlu0 %1336
    %v1338 = vsub.f32 %v1326, %v1334
    %v1339 = vsub.f32 %v1329, %v1337
    %v1340 = vmul.f32 %v1338, 1.442695
    %v1341 = vpow.pop %v1340
    %v1342 = vmul.f32 %v1339, 1.442695
    %v1343 = vpow.pop %v1342
    %v1344 = vsel %vm391, %v1341, 0.0
    %1345 = vadd.xlane.f32.xlu0 %v1344
    %v1346 = vpop.xlane.xlu0 %1345
    %v1347 = vsel %vm391, %v1343, 0.0
    %1348 = vadd.xlane.f32.xlu0 %v1347
    %v1349 = vpop.xlane.xlu0 %1348
    %v1350 = vrcp.pop %v1346
    %v1351 = vrcp.pop %v1349
    %v1352 = vmul.f32 %v1341, %v1350
    %v1353 = vmul.f32 %v1343, %v1351
    %v1354 = vpack.c.bf16 %v1353, %v1352
    %1355 = vrot.lane.b32.xlu0 %v724, 104
    %v1356 = vpop.permute.xlu0 %1355
    %1357 = vrot.lane.b32.xlu0 %v725, 104
    %v1358 = vpop.permute.xlu0 %1357
    %v1362 = vsel %vm391, %v1354, 0
    %1364 = vmatprep.subr.bf16.mxu0 0
    %1365 = vmatpush1.bf16.msra.mxu0 %v1356
    %1366 = vmatprep.subr.bf16.mxu0 0
    %1367 = vmatpush1.bf16.msra.mxu0 %v1358
    %1368 = vmatprep.subr.bf16.mxu0 0
    %1369 = vmatpush1.bf16.msra.mxu0 0
    %1370 = vmatprep.subr.bf16.mxu0 0
    %1371 = vmatpush1.bf16.msra.mxu0 0
    %1372 = vmatprep.subr.bf16.mxu0 0
    %1373 = vmatpush1.bf16.msra.mxu0 0
    %1374 = vmatprep.subr.bf16.mxu0 0
    %1375 = vmatpush1.bf16.msra.mxu0 0
    %1376 = vmatprep.subr.bf16.mxu0 0
    %1377 = vmatpush1.bf16.msra.mxu0 0
    %1378 = vmatprep.subr.bf16.mxu0 0
    %1379 = vmatpush1.bf16.msra.mxu0 0
    %1380 = vmatprep.subr.bf16.mxu0 0
    %1381 = vmatpush1.bf16.msra.mxu0 0
    %1382 = vmatprep.subr.bf16.mxu0 0
    %1383 = vmatpush1.bf16.msra.mxu0 0
    %1384 = vmatprep.subr.bf16.mxu0 0
    %1385 = vmatpush1.bf16.msra.mxu0 0
    %1386 = vmatprep.subr.bf16.mxu0 0
    %1387 = vmatpush1.bf16.msra.mxu0 0
    %1388 = vmatprep.subr.bf16.mxu0 0
    %1389 = vmatpush1.bf16.msra.mxu0 0
    %1390 = vmatprep.subr.bf16.mxu0 0
    %1391 = vmatpush1.bf16.msra.mxu0 0
    %1392 = vmatprep.subr.bf16.mxu0 0
    %1393 = vmatpush1.bf16.msra.mxu0 0
    %1394 = vmatprep.subr.bf16.mxu0 0
    %1395 = vmatpush1.bf16.msra.mxu0 0
    %1396 = vmatprep.mubr.bf16.mxu0 0
    %1397 = vmatmul.mubr.bf16.gmra.mrb[0].mxu0 %v1362
    %v1398 = vpop.f32.mrb[0].mxu0
    %v1399 = vadd.f32 0.0, %v1398
    %v1400 = vpop.f32.mrb[0].mxu0
    %v1401 = vpop.f32.mrb[0].mxu0
    %v1402 = vadd.f32 0.0, %v1401
    %v1403 = vpop.f32.mrb[0].mxu0
    %1404 = vdwg.mxu0
    %1407 = vrot.lane.b32.xlu0 %v981, 8
    %v1408 = vpop.permute.xlu0 %1407
    %1409 = vrot.lane.b32.xlu0 %v984, 8
    %v1410 = vpop.permute.xlu0 %1409
    %1415 = vrot.lane.b32.xlu0 %v1190, 16
    %v1416 = vpop.permute.xlu0 %1415
    %1417 = vrot.lane.b32.xlu0 %v1193, 16
    %v1418 = vpop.permute.xlu0 %1417
    %1423 = vrot.lane.b32.xlu0 %v1399, 24
    %v1424 = vpop.permute.xlu0 %1423
    %1425 = vrot.lane.b32.xlu0 %v1402, 24
    %v1426 = vpop.permute.xlu0 %1425
    %v1429 = vsel %vm579, %v764, %v1408
    %v1430 = vsel %vm579, %v767, %v1410
    %vm1431 = vcmask 130048
    %v1432 = vsel %vm1431, %v1429, %v1416
    %v1433 = vsel %vm1431, %v1430, %v1418
    %vm1434 = vcmask 195584
    %v1435 = vsel %vm1434, %v1432, %v1424
    %v1436 = vsel %vm1434, %v1433, %v1426
    %v1437 = vpack.c.bf16 %v1436, %v1435
    %1438 = vst.msk [vmem:[#allocation4] sm:$0xff] %vm391, %v1437
    %s1439 = scalar_lea.vmem [#allocation2], 16
    %v1440 = vld [vmem:[%s1439] sm:$0xff]
    %v1441 = vld [vmem:[%s1439 + $0x8] sm:$0xff]
    %v1443 = vsel %vm391, %v1441, 0
    %1445 = vmatprep.subr.bf16.mxu0 0
    %1446 = vmatpush1.bf16.msra.mxu0 %v387
    %1447 = vmatprep.subr.bf16.mxu0 0
    %1448 = vmatpush1.bf16.msra.mxu0 %v388
    %1449 = vmatprep.subr.bf16.mxu0 0
    %1450 = vmatpush1.bf16.msra.mxu0 0
    %1451 = vmatprep.subr.bf16.mxu0 0
    %1452 = vmatpush1.bf16.msra.mxu0 0
    %1453 = vmatprep.subr.bf16.mxu0 0
    %1454 = vmatpush1.bf16.msra.mxu0 0
    %1455 = vmatprep.subr.bf16.mxu0 0
    %1456 = vmatpush1.bf16.msra.mxu0 0
    %1457 = vmatprep.subr.bf16.mxu0 0
    %1458 = vmatpush1.bf16.msra.mxu0 0
    %1459 = vmatprep.subr.bf16.mxu0 0
    %1460 = vmatpush1.bf16.msra.mxu0 0
    %1461 = vmatprep.subr.bf16.mxu0 0
    %1462 = vmatpush1.bf16.msra.mxu0 0
    %1463 = vmatprep.subr.bf16.mxu0 0
    %1464 = vmatpush1.bf16.msra.mxu0 0
    %1465 = vmatprep.subr.bf16.mxu0 0
    %1466 = vmatpush1.bf16.msra.mxu0 0
    %1467 = vmatprep.subr.bf16.mxu0 0
    %1468 = vmatpush1.bf16.msra.mxu0 0
    %1469 = vmatprep.subr.bf16.mxu0 0
    %1470 = vmatpush1.bf16.msra.mxu0 0
    %1471 = vmatprep.subr.bf16.mxu0 0
    %1472 = vmatpush1.bf16.msra.mxu0 0
    %1473 = vmatprep.subr.bf16.mxu0 0
    %1474 = vmatpush1.bf16.msra.mxu0 0
    %1475 = vmatprep.subr.bf16.mxu0 0
    %1476 = vmatpush1.bf16.msra.mxu0 0
    %1477 = vmatprep.mubr.bf16.mxu0 0
    %1478 = vmatmul.mubr.bf16.gmra.mrb[0].mxu0 %v1443
    %v1479 = vpop.f32.mrb[0].mxu0
    %v1480 = vadd.f32 %v377, %v1479
    %v1481 = vpop.f32.mrb[0].mxu0
    %v1482 = vpop.f32.mrb[0].mxu0
    %v1483 = vadd.f32 %v377, %v1482
    %v1484 = vpop.f32.mrb[0].mxu0
    %1485 = vdwg.mxu0
    %v1487 = vsel %vm391, %v1440, 0
    %1489 = vmatprep.subr.bf16.mxu0 0
    %1490 = vmatpush1.bf16.msra.mxu0 %v450
    %1491 = vmatprep.subr.bf16.mxu0 0
    %1492 = vmatpush1.bf16.msra.mxu0 %v451
    %1493 = vmatprep.subr.bf16.mxu0 0
    %1494 = vmatpush1.bf16.msra.mxu0 0
    %1495 = vmatprep.subr.bf16.mxu0 0
    %1496 = vmatpush1.bf16.msra.mxu0 0
    %1497 = vmatprep.subr.bf16.mxu0 0
    %1498 = vmatpush1.bf16.msra.mxu0 0
    %1499 = vmatprep.subr.bf16.mxu0 0
    %1500 = vmatpush1.bf16.msra.mxu0 0
    %1501 = vmatprep.subr.bf16.mxu0 0
    %1502 = vmatpush1.bf16.msra.mxu0 0
    %1503 = vmatprep.subr.bf16.mxu0 0
    %1504 = vmatpush1.bf16.msra.mxu0 0
    %1505 = vmatprep.subr.bf16.mxu0 0
    %1506 = vmatpush1.bf16.msra.mxu0 0
    %1507 = vmatprep.subr.bf16.mxu0 0
    %1508 = vmatpush1.bf16.msra.mxu0 0
    %1509 = vmatprep.subr.bf16.mxu0 0
    %1510 = vmatpush1.bf16.msra.mxu0 0
    %1511 = vmatprep.subr.bf16.mxu0 0
    %1512 = vmatpush1.bf16.msra.mxu0 0
    %1513 = vmatprep.subr.bf16.mxu0 0
    %1514 = vmatpush1.bf16.msra.mxu0 0
    %1515 = vmatprep.subr.bf16.mxu0 0
    %1516 = vmatpush1.bf16.msra.mxu0 0
    %1517 = vmatprep.subr.bf16.mxu0 0
    %1518 = vmatpush1.bf16.msra.mxu0 0
    %1519 = vmatprep.subr.bf16.mxu0 0
    %1520 = vmatpush1.bf16.msra.mxu0 0
    %1521 = vmatprep.mubr.bf16.mxu0 0
    %1522 = vmatmul.mubr.bf16.gmra.mrb[0].mxu0 %v1487
    %v1523 = vpop.f32.mrb[0].mxu0
    %v1524 = vadd.f32 %v440, %v1523
    %v1525 = vpop.f32.mrb[0].mxu0
    %v1526 = vpop.f32.mrb[0].mxu0
    %v1527 = vadd.f32 %v440, %v1526
    %v1528 = vpop.f32.mrb[0].mxu0
    %1529 = vmatprep.mubr.bf16.mxu0 0
    %1530 = vmatmul.mubr.bf16.gmra.mrb[0].mxu0 %v1443
    %v1531 = vpop.f32.mrb[0].mxu0
    %v1532 = vadd.f32 %v440, %v1531
    %v1533 = vpop.f32.mrb[0].mxu0
    %v1534 = vpop.f32.mrb[0].mxu0
    %v1535 = vadd.f32 %v440, %v1534
    %v1536 = vpop.f32.mrb[0].mxu0
    %1537 = vdwg.mxu0
    %1538 = vmatprep.subr.bf16.mxu0 0
    %1539 = vmatpush1.bf16.msra.mxu0 %v520
    %1540 = vmatprep.subr.bf16.mxu0 0
    %1541 = vmatpush1.bf16.msra.mxu0 %v521
    %1542 = vmatprep.subr.bf16.mxu0 0
    %1543 = vmatpush1.bf16.msra.mxu0 0
    %1544 = vmatprep.subr.bf16.mxu0 0
    %1545 = vmatpush1.bf16.msra.mxu0 0
    %1546 = vmatprep.subr.bf16.mxu0 0
    %1547 = vmatpush1.bf16.msra.mxu0 0
    %1548 = vmatprep.subr.bf16.mxu0 0
    %1549 = vmatpush1.bf16.msra.mxu0 0
    %1550 = vmatprep.subr.bf16.mxu0 0
    %1551 = vmatpush1.bf16.msra.mxu0 0
    %1552 = vmatprep.subr.bf16.mxu0 0
    %1553 = vmatpush1.bf16.msra.mxu0 0
    %1554 = vmatprep.subr.bf16.mxu0 0
    %1555 = vmatpush1.bf16.msra.mxu0 0
    %1556 = vmatprep.subr.bf16.mxu0 0
    %1557 = vmatpush1.bf16.msra.mxu0 0
    %1558 = vmatprep.subr.bf16.mxu0 0
    %1559 = vmatpush1.bf16.msra.mxu0 0
    %1560 = vmatprep.subr.bf16.mxu0 0
    %1561 = vmatpush1.bf16.msra.mxu0 0
    %1562 = vmatprep.subr.bf16.mxu0 0
    %1563 = vmatpush1.bf16.msra.mxu0 0
    %1564 = vmatprep.subr.bf16.mxu0 0
    %1565 = vmatpush1.bf16.msra.mxu0 0
    %1566 = vmatprep.subr.bf16.mxu0 0
    %1567 = vmatpush1.bf16.msra.mxu0 0
    %1568 = vmatprep.subr.bf16.mxu0 0
    %1569 = vmatpush1.bf16.msra.mxu0 0
    %1570 = vmatprep.mubr.bf16.mxu0 0
    %1571 = vmatmul.mubr.bf16.gmra.mrb[0].mxu0 %v1487
    %v1572 = vpop.f32.mrb[0].mxu0
    %v1573 = vadd.f32 %v510, %v1572
    %v1574 = vpop.f32.mrb[0].mxu0
    %v1575 = vpop.f32.mrb[0].mxu0
    %v1576 = vadd.f32 %v510, %v1575
    %v1577 = vpop.f32.mrb[0].mxu0
    %1578 = vmatprep.mubr.bf16.mxu0 0
    %1579 = vmatmul.mubr.bf16.gmra.mrb[0].mxu0 %v1443
    %v1580 = vpop.f32.mrb[0].mxu0
    %v1581 = vadd.f32 %v510, %v1580
    %v1582 = vpop.f32.mrb[0].mxu0
    %v1583 = vpop.f32.mrb[0].mxu0
    %v1584 = vadd.f32 %v510, %v1583
    %v1585 = vpop.f32.mrb[0].mxu0
    %1586 = vdwg.mxu0
    %s1587 = scalar_lea.vmem [#allocation3], 8
    %v1588 = vld [vmem:[%s1587] sm:$0xff]
    %v1589 = vunpack.c.l.bf16 %v1588
    %v1590 = vunpack.c.h.bf16 %v1588
    %v1591 = vld [vmem:[%s15] sm:$0x1]
    %v1592 = vmul.f32 %v1480, %v1480
    %v1593 = vmul.f32 %v1483, %v1483
    %v1594 = vsel %vm579, %v1592, 0.0
    %1595 = vadd.xlane.f32.xlu0 %v1594
    %v1596 = vpop.xlane.xlu0 %1595
    %v1597 = vsel %vm579, %v1593, 0.0
    %1598 = vadd.xlane.f32.xlu0 %v1597
    %v1599 = vpop.xlane.xlu0 %1598
    %v1600 = vmul.f32 %v1596, %v586
    %v1601 = vmul.f32 %v1599, %v586
    %v1602 = vadd.f32 %v1600, 1e-06
    %v1603 = vadd.f32 %v1601, 1e-06
    %v1604 = vrsqrt.pop %v1602
    %v1605 = vrsqrt.pop %v1603
    %v1606 = vmul.f32 %v1480, %v1604
    %v1607 = vmul.f32 %v1483, %v1605
    %v1609 = vlaneseq
    %v1610 = vshrl.u32 %v1609, 7
    %v1611 = vsub.s32 0, %v1610
    %v1612 = vrot.slane %v1591, %v1611
    %v1614 = vmul.f32 %v1606, %v1612
    %v1615 = vmul.f32 %v1607, %v1612
    %v1616 = vmul.f32 %v1614, 0.35355338
    %v1617 = vmul.f32 %v1615, 0.35355338
    %v1618 = vpack.c.bf16 %v1617, %v1616
    %v1619 = vld [vmem:[%s16] sm:$0x1]
    %v1620 = vmul.f32 %v1524, %v1524
    %v1621 = vmul.f32 %v1527, %v1527
    %v1622 = vmul.f32 %v1532, %v1532
    %v1623 = vmul.f32 %v1535, %v1535
    %v1624 = vsel %vm579, %v1620, 0.0
    %1625 = vadd.xlane.f32.xlu0 %v1624
    %v1626 = vpop.xlane.xlu0 %1625
    %v1627 = vsel %vm579, %v1621, 0.0
    %1628 = vadd.xlane.f32.xlu0 %v1627
    %v1629 = vpop.xlane.xlu0 %1628
    %v1630 = vsel %vm579, %v1622, 0.0
    %1631 = vadd.xlane.f32.xlu0 %v1630
    %v1632 = vpop.xlane.xlu0 %1631
    %v1633 = vsel %vm579, %v1623, 0.0
    %1634 = vadd.xlane.f32.xlu0 %v1633
    %v1635 = vpop.xlane.xlu0 %1634
    %v1636 = vmul.f32 %v1626, %v586
    %v1637 = vmul.f32 %v1629, %v586
    %v1638 = vmul.f32 %v1632, %v586
    %v1639 = vmul.f32 %v1635, %v586
    %v1640 = vadd.f32 %v1636, 1e-06
    %v1641 = vadd.f32 %v1637, 1e-06
    %v1642 = vadd.f32 %v1638, 1e-06
    %v1643 = vadd.f32 %v1639, 1e-06
    %v1644 = vrsqrt.pop %v1640
    %v1645 = vrsqrt.pop %v1641
    %v1646 = vrsqrt.pop %v1642
    %v1647 = vrsqrt.pop %v1643
    %v1648 = vmul.f32 %v1524, %v1644
    %v1649 = vmul.f32 %v1527, %v1645
    %v1650 = vmul.f32 %v1532, %v1646
    %v1651 = vmul.f32 %v1535, %v1647
    %v1653 = vlaneseq
    %v1654 = vshrl.u32 %v1653, 7
    %v1655 = vsub.s32 0, %v1654
    %v1656 = vrot.slane %v1619, %v1655
    %v1658 = vmul.f32 %v1648, %v1656
    %v1659 = vmul.f32 %v1649, %v1656
    %v1660 = vmul.f32 %v1650, %v1656
    %v1661 = vmul.f32 %v1651, %v1656
    %v1662 = vpack.c.bf16 %v1659, %v1658
    %v1663 = vpack.c.bf16 %v1661, %v1660
    %v1665 = vsel %vm579, %v1618, 0
    %v1668 = vsel %vm579, %v1662, 0
    %v1671 = vsel %vm579, %v1663, 0
    %1673 = vmatprep.subr.bf16.mxu0 0
    %1674 = vmatpush1.bf16.xpose.msra.mxu0 %v1668
    %1675 = vmatprep.subr.bf16.mxu0 0
    %1676 = vmatpush1.bf16.xpose.msra.mxu0 %v1671
    %1677 = vmatprep.subr.bf16.mxu0 0
    %1678 = vmatpush1.bf16.xpose.msra.mxu0 0
    %1679 = vmatprep.subr.bf16.mxu0 0
    %1680 = vmatpush1.bf16.xpose.msra.mxu0 0
    %1681 = vmatprep.subr.bf16.mxu0 0
    %1682 = vmatpush1.bf16.xpose.msra.mxu0 0
    %1683 = vmatprep.subr.bf16.mxu0 0
    %1684 = vmatpush1.bf16.xpose.msra.mxu0 0
    %1685 = vmatprep.subr.bf16.mxu0 0
    %1686 = vmatpush1.bf16.xpose.msra.mxu0 0
    %1687 = vmatprep.subr.bf16.mxu0 0
    %1688 = vmatpush1.bf16.xpose.msra.mxu0 0
    %1689 = vmatprep.subr.bf16.mxu0 0
    %1690 = vmatpush1.bf16.xpose.msra.mxu0 0
    %1691 = vmatprep.subr.bf16.mxu0 0
    %1692 = vmatpush1.bf16.xpose.msra.mxu0 0
    %1693 = vmatprep.subr.bf16.mxu0 0
    %1694 = vmatpush1.bf16.xpose.msra.mxu0 0
    %1695 = vmatprep.subr.bf16.mxu0 0
    %1696 = vmatpush1.bf16.xpose.msra.mxu0 0
    %1697 = vmatprep.subr.bf16.mxu0 0
    %1698 = vmatpush1.bf16.xpose.msra.mxu0 0
    %1699 = vmatprep.subr.bf16.mxu0 0
    %1700 = vmatpush1.bf16.xpose.msra.mxu0 0
    %1701 = vmatprep.subr.bf16.mxu0 0
    %1702 = vmatpush1.bf16.xpose.msra.mxu0 0
    %1703 = vmatprep.subr.bf16.mxu0 0
    %1704 = vmatpush1.bf16.xpose.msra.mxu0 0
    %1705 = vmatprep.mubr.bf16.mxu0 0
    %1706 = vmatmul.mubr.bf16.gmra.mrb[0].mxu0 %v1665
    %v1707 = vpop.f32.mrb[0].mxu0
    %v1708 = vadd.f32 %v1589, %v1707
    %v1709 = vpop.f32.mrb[0].mxu0
    %v1710 = vpop.f32.mrb[0].mxu0
    %v1711 = vadd.f32 %v1590, %v1710
    %v1712 = vpop.f32.mrb[0].mxu0
    %1713 = vdwg.mxu0
    %v1714 = vsel %vm391, %v1708, -inf
    %1715 = vmax.xlane.f32.xlu0 %v1714
    %v1716 = vpop.xlane.xlu0 %1715
    %v1717 = vsel %vm391, %v1711, -inf
    %1718 = vmax.xlane.f32.xlu0 %v1717
    %v1719 = vpop.xlane.xlu0 %1718
    %v1720 = vsub.f32 %v1708, %v1716
    %v1721 = vsub.f32 %v1711, %v1719
    %v1722 = vmul.f32 %v1720, 1.442695
    %v1723 = vpow.pop %v1722
    %v1724 = vmul.f32 %v1721, 1.442695
    %v1725 = vpow.pop %v1724
    %v1726 = vsel %vm391, %v1723, 0.0
    %1727 = vadd.xlane.f32.xlu0 %v1726
    %v1728 = vpop.xlane.xlu0 %1727
    %v1729 = vsel %vm391, %v1725, 0.0
    %1730 = vadd.xlane.f32.xlu0 %v1729
    %v1731 = vpop.xlane.xlu0 %1730
    %v1732 = vrcp.pop %v1728
    %v1733 = vrcp.pop %v1731
    %v1734 = vmul.f32 %v1723, %v1732
    %v1735 = vmul.f32 %v1725, %v1733
    %v1736 = vpack.c.bf16 %v1735, %v1734
    %v1737 = vpack.c.bf16 %v1576, %v1573
    %v1738 = vpack.c.bf16 %v1584, %v1581
    %v1740 = vsel %vm391, %v1736, 0
    %1742 = vmatprep.subr.bf16.mxu0 0
    %1743 = vmatpush1.bf16.msra.mxu0 %v1737
    %1744 = vmatprep.subr.bf16.mxu0 0
    %1745 = vmatpush1.bf16.msra.mxu0 %v1738
    %1746 = vmatprep.subr.bf16.mxu0 0
    %1747 = vmatpush1.bf16.msra.mxu0 0
    %1748 = vmatprep.subr.bf16.mxu0 0
    %1749 = vmatpush1.bf16.msra.mxu0 0
    %1750 = vmatprep.subr.bf16.mxu0 0
    %1751 = vmatpush1.bf16.msra.mxu0 0
    %1752 = vmatprep.subr.bf16.mxu0 0
    %1753 = vmatpush1.bf16.msra.mxu0 0
    %1754 = vmatprep.subr.bf16.mxu0 0
    %1755 = vmatpush1.bf16.msra.mxu0 0
    %1756 = vmatprep.subr.bf16.mxu0 0
    %1757 = vmatpush1.bf16.msra.mxu0 0
    %1758 = vmatprep.subr.bf16.mxu0 0
    %1759 = vmatpush1.bf16.msra.mxu0 0
    %1760 = vmatprep.subr.bf16.mxu0 0
    %1761 = vmatpush1.bf16.msra.mxu0 0
    %1762 = vmatprep.subr.bf16.mxu0 0
    %1763 = vmatpush1.bf16.msra.mxu0 0
    %1764 = vmatprep.subr.bf16.mxu0 0
    %1765 = vmatpush1.bf16.msra.mxu0 0
    %1766 = vmatprep.subr.bf16.mxu0 0
    %1767 = vmatpush1.bf16.msra.mxu0 0
    %1768 = vmatprep.subr.bf16.mxu0 0
    %1769 = vmatpush1.bf16.msra.mxu0 0
    %1770 = vmatprep.subr.bf16.mxu0 0
    %1771 = vmatpush1.bf16.msra.mxu0 0
    %1772 = vmatprep.subr.bf16.mxu0 0
    %1773 = vmatpush1.bf16.msra.mxu0 0
    %1774 = vmatprep.mubr.bf16.mxu0 0
    %1775 = vmatmul.mubr.bf16.gmra.mrb[0].mxu0 %v1740
    %v1776 = vpop.f32.mrb[0].mxu0
    %v1777 = vadd.f32 0.0, %v1776
    %v1778 = vpop.f32.mrb[0].mxu0
    %v1779 = vpop.f32.mrb[0].mxu0
    %v1780 = vadd.f32 0.0, %v1779
    %v1781 = vpop.f32.mrb[0].mxu0
    %1782 = vdwg.mxu0
    %1785 = vrot.lane.b32.xlu0 %v1592, 120
    %v1786 = vpop.permute.xlu0 %1785
    %1787 = vrot.lane.b32.xlu0 %v1593, 120
    %v1788 = vpop.permute.xlu0 %1787
    %v1791 = vsel %vm579, %v1786, 0.0
    %1792 = vadd.xlane.f32.xlu0 %v1791
    %v1793 = vpop.xlane.xlu0 %1792
    %v1794 = vsel %vm579, %v1788, 0.0
    %1795 = vadd.xlane.f32.xlu0 %v1794
    %v1796 = vpop.xlane.xlu0 %1795
    %v1797 = vmul.f32 %v1793, %v586
    %v1798 = vmul.f32 %v1796, %v586
    %v1799 = vadd.f32 %v1797, 1e-06
    %v1800 = vadd.f32 %v1798, 1e-06
    %v1801 = vrsqrt.pop %v1799
    %v1802 = vrsqrt.pop %v1800
    %v1803 = vmul.f32 %v1480, %v1801
    %v1804 = vmul.f32 %v1483, %v1802
    %1805 = vrot.lane.b32.xlu0 %v1612, 8
    %v1806 = vpop.permute.xlu0 %1805
    %v1808 = vmul.f32 %v1803, %v1806
    %v1809 = vmul.f32 %v1804, %v1806
    %v1810 = vmul.f32 %v1808, 0.35355338
    %v1811 = vmul.f32 %v1809, 0.35355338
    %v1812 = vpack.c.bf16 %v1811, %v1810
    %1817 = vrot.lane.b32.xlu0 %v1620, 120
    %v1818 = vpop.permute.xlu0 %1817
    %1819 = vrot.lane.b32.xlu0 %v1621, 120
    %v1820 = vpop.permute.xlu0 %1819
    %1821 = vrot.lane.b32.xlu0 %v1622, 120
    %v1822 = vpop.permute.xlu0 %1821
    %1823 = vrot.lane.b32.xlu0 %v1623, 120
    %v1824 = vpop.permute.xlu0 %1823
    %v1829 = vsel %vm579, %v1818, 0.0
    %1830 = vadd.xlane.f32.xlu0 %v1829
    %v1831 = vpop.xlane.xlu0 %1830
    %v1832 = vsel %vm579, %v1820, 0.0
    %1833 = vadd.xlane.f32.xlu0 %v1832
    %v1834 = vpop.xlane.xlu0 %1833
    %v1835 = vsel %vm579, %v1822, 0.0
    %1836 = vadd.xlane.f32.xlu0 %v1835
    %v1837 = vpop.xlane.xlu0 %1836
    %v1838 = vsel %vm579, %v1824, 0.0
    %1839 = vadd.xlane.f32.xlu0 %v1838
    %v1840 = vpop.xlane.xlu0 %1839
    %v1841 = vmul.f32 %v1831, %v586
    %v1842 = vmul.f32 %v1834, %v586
    %v1843 = vmul.f32 %v1837, %v586
    %v1844 = vmul.f32 %v1840, %v586
    %v1845 = vadd.f32 %v1841, 1e-06
    %v1846 = vadd.f32 %v1842, 1e-06
    %v1847 = vadd.f32 %v1843, 1e-06
    %v1848 = vadd.f32 %v1844, 1e-06
    %v1849 = vrsqrt.pop %v1845
    %v1850 = vrsqrt.pop %v1846
    %v1851 = vrsqrt.pop %v1847
    %v1852 = vrsqrt.pop %v1848
    %v1853 = vmul.f32 %v1524, %v1849
    %v1854 = vmul.f32 %v1527, %v1850
    %v1855 = vmul.f32 %v1532, %v1851
    %v1856 = vmul.f32 %v1535, %v1852
    %1857 = vrot.lane.b32.xlu0 %v1656, 8
    %v1858 = vpop.permute.xlu0 %1857
    %v1860 = vmul.f32 %v1853, %v1858
    %v1861 = vmul.f32 %v1854, %v1858
    %v1862 = vmul.f32 %v1855, %v1858
    %v1863 = vmul.f32 %v1856, %v1858
    %v1864 = vpack.c.bf16 %v1861, %v1860
    %v1865 = vpack.c.bf16 %v1863, %v1862
    %1867 = vrot.lane.b32.xlu0 %v1812, 120
    %v1868 = vpop.permute.xlu0 %1867
    %1871 = vrot.lane.b32.xlu0 %v1864, 120
    %v1872 = vpop.permute.xlu0 %1871
    %1873 = vrot.lane.b32.xlu0 %v1865, 120
    %v1874 = vpop.permute.xlu0 %1873
    %v1876 = vsel %vm579, %v1868, 0
    %v1879 = vsel %vm579, %v1872, 0
    %v1882 = vsel %vm579, %v1874, 0
    %1884 = vmatprep.subr.bf16.mxu0 0
    %1885 = vmatpush1.bf16.xpose.msra.mxu0 %v1879
    %1886 = vmatprep.subr.bf16.mxu0 0
    %1887 = vmatpush1.bf16.xpose.msra.mxu0 %v1882
    %1888 = vmatprep.subr.bf16.mxu0 0
    %1889 = vmatpush1.bf16.xpose.msra.mxu0 0
    %1890 = vmatprep.subr.bf16.mxu0 0
    %1891 = vmatpush1.bf16.xpose.msra.mxu0 0
    %1892 = vmatprep.subr.bf16.mxu0 0
    %1893 = vmatpush1.bf16.xpose.msra.mxu0 0
    %1894 = vmatprep.subr.bf16.mxu0 0
    %1895 = vmatpush1.bf16.xpose.msra.mxu0 0
    %1896 = vmatprep.subr.bf16.mxu0 0
    %1897 = vmatpush1.bf16.xpose.msra.mxu0 0
    %1898 = vmatprep.subr.bf16.mxu0 0
    %1899 = vmatpush1.bf16.xpose.msra.mxu0 0
    %1900 = vmatprep.subr.bf16.mxu0 0
    %1901 = vmatpush1.bf16.xpose.msra.mxu0 0
    %1902 = vmatprep.subr.bf16.mxu0 0
    %1903 = vmatpush1.bf16.xpose.msra.mxu0 0
    %1904 = vmatprep.subr.bf16.mxu0 0
    %1905 = vmatpush1.bf16.xpose.msra.mxu0 0
    %1906 = vmatprep.subr.bf16.mxu0 0
    %1907 = vmatpush1.bf16.xpose.msra.mxu0 0
    %1908 = vmatprep.subr.bf16.mxu0 0
    %1909 = vmatpush1.bf16.xpose.msra.mxu0 0
    %1910 = vmatprep.subr.bf16.mxu0 0
    %1911 = vmatpush1.bf16.xpose.msra.mxu0 0
    %1912 = vmatprep.subr.bf16.mxu0 0
    %1913 = vmatpush1.bf16.xpose.msra.mxu0 0
    %1914 = vmatprep.subr.bf16.mxu0 0
    %1915 = vmatpush1.bf16.xpose.msra.mxu0 0
    %1916 = vmatprep.mubr.bf16.mxu0 0
    %1917 = vmatmul.mubr.bf16.gmra.mrb[0].mxu0 %v1876
    %v1918 = vpop.f32.mrb[0].mxu0
    %v1919 = vadd.f32 %v1589, %v1918
    %v1920 = vpop.f32.mrb[0].mxu0
    %v1921 = vpop.f32.mrb[0].mxu0
    %v1922 = vadd.f32 %v1590, %v1921
    %v1923 = vpop.f32.mrb[0].mxu0
    %1924 = vdwg.mxu0
    %v1925 = vsel %vm391, %v1919, -inf
    %1926 = vmax.xlane.f32.xlu0 %v1925
    %v1927 = vpop.xlane.xlu0 %1926
    %v1928 = vsel %vm391, %v1922, -inf
    %1929 = vmax.xlane.f32.xlu0 %v1928
    %v1930 = vpop.xlane.xlu0 %1929
    %v1931 = vsub.f32 %v1919, %v1927
    %v1932 = vsub.f32 %v1922, %v1930
    %v1933 = vmul.f32 %v1931, 1.442695
    %v1934 = vpow.pop %v1933
    %v1935 = vmul.f32 %v1932, 1.442695
    %v1936 = vpow.pop %v1935
    %v1937 = vsel %vm391, %v1934, 0.0
    %1938 = vadd.xlane.f32.xlu0 %v1937
    %v1939 = vpop.xlane.xlu0 %1938
    %v1940 = vsel %vm391, %v1936, 0.0
    %1941 = vadd.xlane.f32.xlu0 %v1940
    %v1942 = vpop.xlane.xlu0 %1941
    %v1943 = vrcp.pop %v1939
    %v1944 = vrcp.pop %v1942
    %v1945 = vmul.f32 %v1934, %v1943
    %v1946 = vmul.f32 %v1936, %v1944
    %v1947 = vpack.c.bf16 %v1946, %v1945
    %1950 = vrot.lane.b32.xlu0 %v1737, 120
    %v1951 = vpop.permute.xlu0 %1950
    %1952 = vrot.lane.b32.xlu0 %v1738, 120
    %v1953 = vpop.permute.xlu0 %1952
    %v1957 = vsel %vm391, %v1947, 0
    %1959 = vmatprep.subr.bf16.mxu0 0
    %1960 = vmatpush1.bf16.msra.mxu0 %v1951
    %1961 = vmatprep.subr.bf16.mxu0 0
    %1962 = vmatpush1.bf16.msra.mxu0 %v1953
    %1963 = vmatprep.subr.bf16.mxu0 0
    %1964 = vmatpush1.bf16.msra.mxu0 0
    %1965 = vmatprep.subr.bf16.mxu0 0
    %1966 = vmatpush1.bf16.msra.mxu0 0
    %1967 = vmatprep.subr.bf16.mxu0 0
    %1968 = vmatpush1.bf16.msra.mxu0 0
    %1969 = vmatprep.subr.bf16.mxu0 0
    %1970 = vmatpush1.bf16.msra.mxu0 0
    %1971 = vmatprep.subr.bf16.mxu0 0
    %1972 = vmatpush1.bf16.msra.mxu0 0
    %1973 = vmatprep.subr.bf16.mxu0 0
    %1974 = vmatpush1.bf16.msra.mxu0 0
    %1975 = vmatprep.subr.bf16.mxu0 0
    %1976 = vmatpush1.bf16.msra.mxu0 0
    %1977 = vmatprep.subr.bf16.mxu0 0
    %1978 = vmatpush1.bf16.msra.mxu0 0
    %1979 = vmatprep.subr.bf16.mxu0 0
    %1980 = vmatpush1.bf16.msra.mxu0 0
    %1981 = vmatprep.subr.bf16.mxu0 0
    %1982 = vmatpush1.bf16.msra.mxu0 0
    %1983 = vmatprep.subr.bf16.mxu0 0
    %1984 = vmatpush1.bf16.msra.mxu0 0
    %1985 = vmatprep.subr.bf16.mxu0 0
    %1986 = vmatpush1.bf16.msra.mxu0 0
    %1987 = vmatprep.subr.bf16.mxu0 0
    %1988 = vmatpush1.bf16.msra.mxu0 0
    %1989 = vmatprep.subr.bf16.mxu0 0
    %1990 = vmatpush1.bf16.msra.mxu0 0
    %1991 = vmatprep.mubr.bf16.mxu0 0
    %1992 = vmatmul.mubr.bf16.gmra.mrb[0].mxu0 %v1957
    %v1993 = vpop.f32.mrb[0].mxu0
    %v1994 = vadd.f32 0.0, %v1993
    %v1995 = vpop.f32.mrb[0].mxu0
    %v1996 = vpop.f32.mrb[0].mxu0
    %v1997 = vadd.f32 0.0, %v1996
    %v1998 = vpop.f32.mrb[0].mxu0
    %1999 = vdwg.mxu0
    %2000 = vrot.lane.b32.xlu0 %v1592, 112
    %v2001 = vpop.permute.xlu0 %2000
    %2002 = vrot.lane.b32.xlu0 %v1593, 112
    %v2003 = vpop.permute.xlu0 %2002
    %v2006 = vsel %vm579, %v2001, 0.0
    %2007 = vadd.xlane.f32.xlu0 %v2006
    %v2008 = vpop.xlane.xlu0 %2007
    %v2009 = vsel %vm579, %v2003, 0.0
    %2010 = vadd.xlane.f32.xlu0 %v2009
    %v2011 = vpop.xlane.xlu0 %2010
    %v2012 = vmul.f32 %v2008, %v586
    %v2013 = vmul.f32 %v2011, %v586
    %v2014 = vadd.f32 %v2012, 1e-06
    %v2015 = vadd.f32 %v2013, 1e-06
    %v2016 = vrsqrt.pop %v2014
    %v2017 = vrsqrt.pop %v2015
    %v2018 = vmul.f32 %v1480, %v2016
    %v2019 = vmul.f32 %v1483, %v2017
    %2020 = vrot.lane.b32.xlu0 %v1612, 16
    %v2021 = vpop.permute.xlu0 %2020
    %v2023 = vmul.f32 %v2018, %v2021
    %v2024 = vmul.f32 %v2019, %v2021
    %v2025 = vmul.f32 %v2023, 0.35355338
    %v2026 = vmul.f32 %v2024, 0.35355338
    %v2027 = vpack.c.bf16 %v2026, %v2025
    %2028 = vrot.lane.b32.xlu0 %v1620, 112
    %v2029 = vpop.permute.xlu0 %2028
    %2030 = vrot.lane.b32.xlu0 %v1621, 112
    %v2031 = vpop.permute.xlu0 %2030
    %2032 = vrot.lane.b32.xlu0 %v1622, 112
    %v2033 = vpop.permute.xlu0 %2032
    %2034 = vrot.lane.b32.xlu0 %v1623, 112
    %v2035 = vpop.permute.xlu0 %2034
    %v2040 = vsel %vm579, %v2029, 0.0
    %2041 = vadd.xlane.f32.xlu0 %v2040
    %v2042 = vpop.xlane.xlu0 %2041
    %v2043 = vsel %vm579, %v2031, 0.0
    %2044 = vadd.xlane.f32.xlu0 %v2043
    %v2045 = vpop.xlane.xlu0 %2044
    %v2046 = vsel %vm579, %v2033, 0.0
    %2047 = vadd.xlane.f32.xlu0 %v2046
    %v2048 = vpop.xlane.xlu0 %2047
    %v2049 = vsel %vm579, %v2035, 0.0
    %2050 = vadd.xlane.f32.xlu0 %v2049
    %v2051 = vpop.xlane.xlu0 %2050
    %v2052 = vmul.f32 %v2042, %v586
    %v2053 = vmul.f32 %v2045, %v586
    %v2054 = vmul.f32 %v2048, %v586
    %v2055 = vmul.f32 %v2051, %v586
    %v2056 = vadd.f32 %v2052, 1e-06
    %v2057 = vadd.f32 %v2053, 1e-06
    %v2058 = vadd.f32 %v2054, 1e-06
    %v2059 = vadd.f32 %v2055, 1e-06
    %v2060 = vrsqrt.pop %v2056
    %v2061 = vrsqrt.pop %v2057
    %v2062 = vrsqrt.pop %v2058
    %v2063 = vrsqrt.pop %v2059
    %v2064 = vmul.f32 %v1524, %v2060
    %v2065 = vmul.f32 %v1527, %v2061
    %v2066 = vmul.f32 %v1532, %v2062
    %v2067 = vmul.f32 %v1535, %v2063
    %2068 = vrot.lane.b32.xlu0 %v1656, 16
    %v2069 = vpop.permute.xlu0 %2068
    %v2071 = vmul.f32 %v2064, %v2069
    %v2072 = vmul.f32 %v2065, %v2069
    %v2073 = vmul.f32 %v2066, %v2069
    %v2074 = vmul.f32 %v2067, %v2069
    %v2075 = vpack.c.bf16 %v2072, %v2071
    %v2076 = vpack.c.bf16 %v2074, %v2073
    %2078 = vrot.lane.b32.xlu0 %v2027, 112
    %v2079 = vpop.permute.xlu0 %2078
    %2082 = vrot.lane.b32.xlu0 %v2075, 112
    %v2083 = vpop.permute.xlu0 %2082
    %2084 = vrot.lane.b32.xlu0 %v2076, 112
    %v2085 = vpop.permute.xlu0 %2084
    %v2087 = vsel %vm579, %v2079, 0
    %v2090 = vsel %vm579, %v2083, 0
    %v2093 = vsel %vm579, %v2085, 0
    %2095 = vmatprep.subr.bf16.mxu0 0
    %2096 = vmatpush1.bf16.xpose.msra.mxu0 %v2090
    %2097 = vmatprep.subr.bf16.mxu0 0
    %2098 = vmatpush1.bf16.xpose.msra.mxu0 %v2093
    %2099 = vmatprep.subr.bf16.mxu0 0
    %2100 = vmatpush1.bf16.xpose.msra.mxu0 0
    %2101 = vmatprep.subr.bf16.mxu0 0
    %2102 = vmatpush1.bf16.xpose.msra.mxu0 0
    %2103 = vmatprep.subr.bf16.mxu0 0
    %2104 = vmatpush1.bf16.xpose.msra.mxu0 0
    %2105 = vmatprep.subr.bf16.mxu0 0
    %2106 = vmatpush1.bf16.xpose.msra.mxu0 0
    %2107 = vmatprep.subr.bf16.mxu0 0
    %2108 = vmatpush1.bf16.xpose.msra.mxu0 0
    %2109 = vmatprep.subr.bf16.mxu0 0
    %2110 = vmatpush1.bf16.xpose.msra.mxu0 0
    %2111 = vmatprep.subr.bf16.mxu0 0
    %2112 = vmatpush1.bf16.xpose.msra.mxu0 0
    %2113 = vmatprep.subr.bf16.mxu0 0
    %2114 = vmatpush1.bf16.xpose.msra.mxu0 0
    %2115 = vmatprep.subr.bf16.mxu0 0
    %2116 = vmatpush1.bf16.xpose.msra.mxu0 0
    %2117 = vmatprep.subr.bf16.mxu0 0
    %2118 = vmatpush1.bf16.xpose.msra.mxu0 0
    %2119 = vmatprep.subr.bf16.mxu0 0
    %2120 = vmatpush1.bf16.xpose.msra.mxu0 0
    %2121 = vmatprep.subr.bf16.mxu0 0
    %2122 = vmatpush1.bf16.xpose.msra.mxu0 0
    %2123 = vmatprep.subr.bf16.mxu0 0
    %2124 = vmatpush1.bf16.xpose.msra.mxu0 0
    %2125 = vmatprep.subr.bf16.mxu0 0
    %2126 = vmatpush1.bf16.xpose.msra.mxu0 0
    %2127 = vmatprep.mubr.bf16.mxu0 0
    %2128 = vmatmul.mubr.bf16.gmra.mrb[0].mxu0 %v2087
    %v2129 = vpop.f32.mrb[0].mxu0
    %v2130 = vadd.f32 %v1589, %v2129
    %v2131 = vpop.f32.mrb[0].mxu0
    %v2132 = vpop.f32.mrb[0].mxu0
    %v2133 = vadd.f32 %v1590, %v2132
    %v2134 = vpop.f32.mrb[0].mxu0
    %2135 = vdwg.mxu0
    %v2136 = vsel %vm391, %v2130, -inf
    %2137 = vmax.xlane.f32.xlu0 %v2136
    %v2138 = vpop.xlane.xlu0 %2137
    %v2139 = vsel %vm391, %v2133, -inf
    %2140 = vmax.xlane.f32.xlu0 %v2139
    %v2141 = vpop.xlane.xlu0 %2140
    %v2142 = vsub.f32 %v2130, %v2138
    %v2143 = vsub.f32 %v2133, %v2141
    %v2144 = vmul.f32 %v2142, 1.442695
    %v2145 = vpow.pop %v2144
    %v2146 = vmul.f32 %v2143, 1.442695
    %v2147 = vpow.pop %v2146
    %v2148 = vsel %vm391, %v2145, 0.0
    %2149 = vadd.xlane.f32.xlu0 %v2148
    %v2150 = vpop.xlane.xlu0 %2149
    %v2151 = vsel %vm391, %v2147, 0.0
    %2152 = vadd.xlane.f32.xlu0 %v2151
    %v2153 = vpop.xlane.xlu0 %2152
    %v2154 = vrcp.pop %v2150
    %v2155 = vrcp.pop %v2153
    %v2156 = vmul.f32 %v2145, %v2154
    %v2157 = vmul.f32 %v2147, %v2155
    %v2158 = vpack.c.bf16 %v2157, %v2156
    %2159 = vrot.lane.b32.xlu0 %v1737, 112
    %v2160 = vpop.permute.xlu0 %2159
    %2161 = vrot.lane.b32.xlu0 %v1738, 112
    %v2162 = vpop.permute.xlu0 %2161
    %v2166 = vsel %vm391, %v2158, 0
    %2168 = vmatprep.subr.bf16.mxu0 0
    %2169 = vmatpush1.bf16.msra.mxu0 %v2160
    %2170 = vmatprep.subr.bf16.mxu0 0
    %2171 = vmatpush1.bf16.msra.mxu0 %v2162
    %2172 = vmatprep.subr.bf16.mxu0 0
    %2173 = vmatpush1.bf16.msra.mxu0 0
    %2174 = vmatprep.subr.bf16.mxu0 0
    %2175 = vmatpush1.bf16.msra.mxu0 0
    %2176 = vmatprep.subr.bf16.mxu0 0
    %2177 = vmatpush1.bf16.msra.mxu0 0
    %2178 = vmatprep.subr.bf16.mxu0 0
    %2179 = vmatpush1.bf16.msra.mxu0 0
    %2180 = vmatprep.subr.bf16.mxu0 0
    %2181 = vmatpush1.bf16.msra.mxu0 0
    %2182 = vmatprep.subr.bf16.mxu0 0
    %2183 = vmatpush1.bf16.msra.mxu0 0
    %2184 = vmatprep.subr.bf16.mxu0 0
    %2185 = vmatpush1.bf16.msra.mxu0 0
    %2186 = vmatprep.subr.bf16.mxu0 0
    %2187 = vmatpush1.bf16.msra.mxu0 0
    %2188 = vmatprep.subr.bf16.mxu0 0
    %2189 = vmatpush1.bf16.msra.mxu0 0
    %2190 = vmatprep.subr.bf16.mxu0 0
    %2191 = vmatpush1.bf16.msra.mxu0 0
    %2192 = vmatprep.subr.bf16.mxu0 0
    %2193 = vmatpush1.bf16.msra.mxu0 0
    %2194 = vmatprep.subr.bf16.mxu0 0
    %2195 = vmatpush1.bf16.msra.mxu0 0
    %2196 = vmatprep.subr.bf16.mxu0 0
    %2197 = vmatpush1.bf16.msra.mxu0 0
    %2198 = vmatprep.subr.bf16.mxu0 0
    %2199 = vmatpush1.bf16.msra.mxu0 0
    %2200 = vmatprep.mubr.bf16.mxu0 0
    %2201 = vmatmul.mubr.bf16.gmra.mrb[0].mxu0 %v2166
    %v2202 = vpop.f32.mrb[0].mxu0
    %v2203 = vadd.f32 0.0, %v2202
    %v2204 = vpop.f32.mrb[0].mxu0
    %v2205 = vpop.f32.mrb[0].mxu0
    %v2206 = vadd.f32 0.0, %v2205
    %v2207 = vpop.f32.mrb[0].mxu0
    %2208 = vdwg.mxu0
    %2209 = vrot.lane.b32.xlu0 %v1592, 104
    %v2210 = vpop.permute.xlu0 %2209
    %2211 = vrot.lane.b32.xlu0 %v1593, 104
    %v2212 = vpop.permute.xlu0 %2211
    %v2215 = vsel %vm579, %v2210, 0.0
    %2216 = vadd.xlane.f32.xlu0 %v2215
    %v2217 = vpop.xlane.xlu0 %2216
    %v2218 = vsel %vm579, %v2212, 0.0
    %2219 = vadd.xlane.f32.xlu0 %v2218
    %v2220 = vpop.xlane.xlu0 %2219
    %v2221 = vmul.f32 %v2217, %v586
    %v2222 = vmul.f32 %v2220, %v586
    %v2223 = vadd.f32 %v2221, 1e-06
    %v2224 = vadd.f32 %v2222, 1e-06
    %v2225 = vrsqrt.pop %v2223
    %v2226 = vrsqrt.pop %v2224
    %v2227 = vmul.f32 %v1480, %v2225
    %v2228 = vmul.f32 %v1483, %v2226
    %2229 = vrot.lane.b32.xlu0 %v1612, 24
    %v2230 = vpop.permute.xlu0 %2229
    %v2232 = vmul.f32 %v2227, %v2230
    %v2233 = vmul.f32 %v2228, %v2230
    %v2234 = vmul.f32 %v2232, 0.35355338
    %v2235 = vmul.f32 %v2233, 0.35355338
    %v2236 = vpack.c.bf16 %v2235, %v2234
    %2237 = vrot.lane.b32.xlu0 %v1620, 104
    %v2238 = vpop.permute.xlu0 %2237
    %2239 = vrot.lane.b32.xlu0 %v1621, 104
    %v2240 = vpop.permute.xlu0 %2239
    %2241 = vrot.lane.b32.xlu0 %v1622, 104
    %v2242 = vpop.permute.xlu0 %2241
    %2243 = vrot.lane.b32.xlu0 %v1623, 104
    %v2244 = vpop.permute.xlu0 %2243
    %v2249 = vsel %vm579, %v2238, 0.0
    %2250 = vadd.xlane.f32.xlu0 %v2249
    %v2251 = vpop.xlane.xlu0 %2250
    %v2252 = vsel %vm579, %v2240, 0.0
    %2253 = vadd.xlane.f32.xlu0 %v2252
    %v2254 = vpop.xlane.xlu0 %2253
    %v2255 = vsel %vm579, %v2242, 0.0
    %2256 = vadd.xlane.f32.xlu0 %v2255
    %v2257 = vpop.xlane.xlu0 %2256
    %v2258 = vsel %vm579, %v2244, 0.0
    %2259 = vadd.xlane.f32.xlu0 %v2258
    %v2260 = vpop.xlane.xlu0 %2259
    %v2261 = vmul.f32 %v2251, %v586
    %v2262 = vmul.f32 %v2254, %v586
    %v2263 = vmul.f32 %v2257, %v586
    %v2264 = vmul.f32 %v2260, %v586
    %v2265 = vadd.f32 %v2261, 1e-06
    %v2266 = vadd.f32 %v2262, 1e-06
    %v2267 = vadd.f32 %v2263, 1e-06
    %v2268 = vadd.f32 %v2264, 1e-06
    %v2269 = vrsqrt.pop %v2265
    %v2270 = vrsqrt.pop %v2266
    %v2271 = vrsqrt.pop %v2267
    %v2272 = vrsqrt.pop %v2268
    %v2273 = vmul.f32 %v1524, %v2269
    %v2274 = vmul.f32 %v1527, %v2270
    %v2275 = vmul.f32 %v1532, %v2271
    %v2276 = vmul.f32 %v1535, %v2272
    %2277 = vrot.lane.b32.xlu0 %v1656, 24
    %v2278 = vpop.permute.xlu0 %2277
    %v2280 = vmul.f32 %v2273, %v2278
    %v2281 = vmul.f32 %v2274, %v2278
    %v2282 = vmul.f32 %v2275, %v2278
    %v2283 = vmul.f32 %v2276, %v2278
    %v2284 = vpack.c.bf16 %v2281, %v2280
    %v2285 = vpack.c.bf16 %v2283, %v2282
    %2287 = vrot.lane.b32.xlu0 %v2236, 104
    %v2288 = vpop.permute.xlu0 %2287
    %2291 = vrot.lane.b32.xlu0 %v2284, 104
    %v2292 = vpop.permute.xlu0 %2291
    %2293 = vrot.lane.b32.xlu0 %v2285, 104
    %v2294 = vpop.permute.xlu0 %2293
    %v2296 = vsel %vm579, %v2288, 0
    %v2299 = vsel %vm579, %v2292, 0
    %v2302 = vsel %vm579, %v2294, 0
    %2304 = vmatprep.subr.bf16.mxu0 0
    %2305 = vmatpush1.bf16.xpose.msra.mxu0 %v2299
    %2306 = vmatprep.subr.bf16.mxu0 0
    %2307 = vmatpush1.bf16.xpose.msra.mxu0 %v2302
    %2308 = vmatprep.subr.bf16.mxu0 0
    %2309 = vmatpush1.bf16.xpose.msra.mxu0 0
    %2310 = vmatprep.subr.bf16.mxu0 0
    %2311 = vmatpush1.bf16.xpose.msra.mxu0 0
    %2312 = vmatprep.subr.bf16.mxu0 0
    %2313 = vmatpush1.bf16.xpose.msra.mxu0 0
    %2314 = vmatprep.subr.bf16.mxu0 0
    %2315 = vmatpush1.bf16.xpose.msra.mxu0 0
    %2316 = vmatprep.subr.bf16.mxu0 0
    %2317 = vmatpush1.bf16.xpose.msra.mxu0 0
    %2318 = vmatprep.subr.bf16.mxu0 0
    %2319 = vmatpush1.bf16.xpose.msra.mxu0 0
    %2320 = vmatprep.subr.bf16.mxu0 0
    %2321 = vmatpush1.bf16.xpose.msra.mxu0 0
    %2322 = vmatprep.subr.bf16.mxu0 0
    %2323 = vmatpush1.bf16.xpose.msra.mxu0 0
    %2324 = vmatprep.subr.bf16.mxu0 0
    %2325 = vmatpush1.bf16.xpose.msra.mxu0 0
    %2326 = vmatprep.subr.bf16.mxu0 0
    %2327 = vmatpush1.bf16.xpose.msra.mxu0 0
    %2328 = vmatprep.subr.bf16.mxu0 0
    %2329 = vmatpush1.bf16.xpose.msra.mxu0 0
    %2330 = vmatprep.subr.bf16.mxu0 0
    %2331 = vmatpush1.bf16.xpose.msra.mxu0 0
    %2332 = vmatprep.subr.bf16.mxu0 0
    %2333 = vmatpush1.bf16.xpose.msra.mxu0 0
    %2334 = vmatprep.subr.bf16.mxu0 0
    %2335 = vmatpush1.bf16.xpose.msra.mxu0 0
    %2336 = vmatprep.mubr.bf16.mxu0 0
    %2337 = vmatmul.mubr.bf16.gmra.mrb[0].mxu0 %v2296
    %v2338 = vpop.f32.mrb[0].mxu0
    %v2339 = vadd.f32 %v1589, %v2338
    %v2340 = vpop.f32.mrb[0].mxu0
    %v2341 = vpop.f32.mrb[0].mxu0
    %v2342 = vadd.f32 %v1590, %v2341
    %v2343 = vpop.f32.mrb[0].mxu0
    %2344 = vdwg.mxu0
    %v2345 = vsel %vm391, %v2339, -inf
    %2346 = vmax.xlane.f32.xlu0 %v2345
    %v2347 = vpop.xlane.xlu0 %2346
    %v2348 = vsel %vm391, %v2342, -inf
    %2349 = vmax.xlane.f32.xlu0 %v2348
    %v2350 = vpop.xlane.xlu0 %2349
    %v2351 = vsub.f32 %v2339, %v2347
    %v2352 = vsub.f32 %v2342, %v2350
    %v2353 = vmul.f32 %v2351, 1.442695
    %v2354 = vpow.pop %v2353
    %v2355 = vmul.f32 %v2352, 1.442695
    %v2356 = vpow.pop %v2355
    %v2357 = vsel %vm391, %v2354, 0.0
    %2358 = vadd.xlane.f32.xlu0 %v2357
    %v2359 = vpop.xlane.xlu0 %2358
    %v2360 = vsel %vm391, %v2356, 0.0
    %2361 = vadd.xlane.f32.xlu0 %v2360
    %v2362 = vpop.xlane.xlu0 %2361
    %v2363 = vrcp.pop %v2359
    %v2364 = vrcp.pop %v2362
    %v2365 = vmul.f32 %v2354, %v2363
    %v2366 = vmul.f32 %v2356, %v2364
    %v2367 = vpack.c.bf16 %v2366, %v2365
    %2368 = vrot.lane.b32.xlu0 %v1737, 104
    %v2369 = vpop.permute.xlu0 %2368
    %2370 = vrot.lane.b32.xlu0 %v1738, 104
    %v2371 = vpop.permute.xlu0 %2370
    %v2375 = vsel %vm391, %v2367, 0
    %2377 = vmatprep.subr.bf16.mxu0 0
    %2378 = vmatpush1.bf16.msra.mxu0 %v2369
    %2379 = vmatprep.subr.bf16.mxu0 0
    %2380 = vmatpush1.bf16.msra.mxu0 %v2371
    %2381 = vmatprep.subr.bf16.mxu0 0
    %2382 = vmatpush1.bf16.msra.mxu0 0
    %2383 = vmatprep.subr.bf16.mxu0 0
    %2384 = vmatpush1.bf16.msra.mxu0 0
    %2385 = vmatprep.subr.bf16.mxu0 0
    %2386 = vmatpush1.bf16.msra.mxu0 0
    %2387 = vmatprep.subr.bf16.mxu0 0
    %2388 = vmatpush1.bf16.msra.mxu0 0
    %2389 = vmatprep.subr.bf16.mxu0 0
    %2390 = vmatpush1.bf16.msra.mxu0 0
    %2391 = vmatprep.subr.bf16.mxu0 0
    %2392 = vmatpush1.bf16.msra.mxu0 0
    %2393 = vmatprep.subr.bf16.mxu0 0
    %2394 = vmatpush1.bf16.msra.mxu0 0
    %2395 = vmatprep.subr.bf16.mxu0 0
    %2396 = vmatpush1.bf16.msra.mxu0 0
    %2397 = vmatprep.subr.bf16.mxu0 0
    %2398 = vmatpush1.bf16.msra.mxu0 0
    %2399 = vmatprep.subr.bf16.mxu0 0
    %2400 = vmatpush1.bf16.msra.mxu0 0
    %2401 = vmatprep.subr.bf16.mxu0 0
    %2402 = vmatpush1.bf16.msra.mxu0 0
    %2403 = vmatprep.subr.bf16.mxu0 0
    %2404 = vmatpush1.bf16.msra.mxu0 0
    %2405 = vmatprep.subr.bf16.mxu0 0
    %2406 = vmatpush1.bf16.msra.mxu0 0
    %2407 = vmatprep.subr.bf16.mxu0 0
    %2408 = vmatpush1.bf16.msra.mxu0 0
    %2409 = vmatprep.mubr.bf16.mxu0 0
    %2410 = vmatmul.mubr.bf16.gmra.mrb[0].mxu0 %v2375
    %v2411 = vpop.f32.mrb[0].mxu0
    %v2412 = vadd.f32 0.0, %v2411
    %v2413 = vpop.f32.mrb[0].mxu0
    %v2414 = vpop.f32.mrb[0].mxu0
    %v2415 = vadd.f32 0.0, %v2414
    %v2416 = vpop.f32.mrb[0].mxu0
    %2417 = vdwg.mxu0
    %2420 = vrot.lane.b32.xlu0 %v1994, 8
    %v2421 = vpop.permute.xlu0 %2420
    %2422 = vrot.lane.b32.xlu0 %v1997, 8
    %v2423 = vpop.permute.xlu0 %2422
    %2428 = vrot.lane.b32.xlu0 %v2203, 16
    %v2429 = vpop.permute.xlu0 %2428
    %2430 = vrot.lane.b32.xlu0 %v2206, 16
    %v2431 = vpop.permute.xlu0 %2430
    %2436 = vrot.lane.b32.xlu0 %v2412, 24
    %v2437 = vpop.permute.xlu0 %2436
    %2438 = vrot.lane.b32.xlu0 %v2415, 24
    %v2439 = vpop.permute.xlu0 %2438
    %v2442 = vsel %vm579, %v1777, %v2421
    %v2443 = vsel %vm579, %v1780, %v2423
    %v2444 = vsel %vm1431, %v2442, %v2429
    %v2445 = vsel %vm1431, %v2443, %v2431
    %v2446 = vsel %vm1434, %v2444, %v2437
    %v2447 = vsel %vm1434, %v2445, %v2439
    %v2448 = vpack.c.bf16 %v2447, %v2446
    %s2449 = sadd.s32 0, 1
    %s2450 = smul.addr %s2449, 8
    %s2451 = scalar_lea.vmem [#allocation4], %s2450
    %2452 = vst.msk [vmem:[%s2451] sm:$0xff] %vm391, %v2448
    // Predicated region
    $region82: #{basic_transformer_block.2} parent=1 // pred_check
      %p2453 = pneg %p81
    $region83: #{basic_transformer_block.2} parent=1 // pred_check_branch
      %2455 = sbr.rel (%p2453) target = $region85
    $region84: #{basic_transformer_block.2} parent=1 // pred_region
      %v2456 = vld [vmem:[#allocation4] sm:$0xff]
      %v2457 = vld [vmem:[%s13] sm:$0xf]
      %v2458 = vld [vmem:[%s13 + $0x4] sm:$0xf]
      %v2459 = vld [vmem:[%s13 + $0x8] sm:$0xf]
      %v2460 = vld [vmem:[%s13 + $0xc] sm:$0xf]
      %v2461 = vld [vmem:[#allocation7] sm:$0x1]
      %v2463 = vlaneseq
      %v2464 = vshrl.u32 %v2463, 7
      %v2465 = vsub.s32 0, %v2464
      %v2466 = vrot.slane %v2461, %v2465
      %v2472 = vunpack.c.l.b16 %v2457
      %v2473 = vunpack.c.l.b16 %v2458
      %v2474 = vunpack.c.l.b16 %v2459
      %v2475 = vunpack.c.l.b16 %v2460
      %v2476 = vpack.c.b16 %v2473, %v2472
      %v2477 = vpack.c.b16 %v2475, %v2474
      %v2481 = vsel %vm391, %v2456, 0
      %2483 = vmatprep.subr.bf16.mxu0 0
      %2484 = vmatpush1.bf16.msra.mxu0 %v2476
      %2485 = vmatprep.subr.bf16.mxu0 0
      %2486 = vmatpush1.bf16.msra.mxu0 %v2477
      %2487 = vmatprep.subr.bf16.mxu0 0
      %2488 = vmatpush1.bf16.msra.mxu0 0
      %2489 = vmatprep.subr.bf16.mxu0 0
      %2490 = vmatpush1.bf16.msra.mxu0 0
      %2491 = vmatprep.subr.bf16.mxu0 0
      %2492 = vmatpush1.bf16.msra.mxu0 0
      %2493 = vmatprep.subr.bf16.mxu0 0
      %2494 = vmatpush1.bf16.msra.mxu0 0
      %2495 = vmatprep.subr.bf16.mxu0 0
      %2496 = vmatpush1.bf16.msra.mxu0 0
      %2497 = vmatprep.subr.bf16.mxu0 0
      %2498 = vmatpush1.bf16.msra.mxu0 0
      %2499 = vmatprep.subr.bf16.mxu0 0
      %2500 = vmatpush1.bf16.msra.mxu0 0
      %2501 = vmatprep.subr.bf16.mxu0 0
      %2502 = vmatpush1.bf16.msra.mxu0 0
      %2503 = vmatprep.subr.bf16.mxu0 0
      %2504 = vmatpush1.bf16.msra.mxu0 0
      %2505 = vmatprep.subr.bf16.mxu0 0
      %2506 = vmatpush1.bf16.msra.mxu0 0
      %2507 = vmatprep.subr.bf16.mxu0 0
      %2508 = vmatpush1.bf16.msra.mxu0 0
      %2509 = vmatprep.subr.bf16.mxu0 0
      %2510 = vmatpush1.bf16.msra.mxu0 0
      %2511 = vmatprep.subr.bf16.mxu0 0
      %2512 = vmatpush1.bf16.msra.mxu0 0
      %2513 = vmatprep.subr.bf16.mxu0 0
      %2514 = vmatpush1.bf16.msra.mxu0 0
      %2515 = vmatprep.mubr.bf16.mxu0 0
      %2516 = vmatmul.mubr.bf16.gmra.mrb[0].mxu0 %v2481
      %v2517 = vpop.f32.mrb[0].mxu0
      %v2518 = vadd.f32 %v2466, %v2517
      %v2519 = vpop.f32.mrb[0].mxu0
      %v2520 = vpop.f32.mrb[0].mxu0
      %v2521 = vadd.f32 %v2466, %v2520
      %v2522 = vpop.f32.mrb[0].mxu0
      %2523 = vdwg.mxu0
      %2524 = vst.msk [vmem:[%s17] sm:$0xff] %vm391, %v2518
      %2525 = vst.msk [vmem:[%s17 + $0x8] sm:$0xff] %vm391, %v2521
      %s2526 = scalar_lea.vmem [#allocation4], 8
      %v2527 = vld [vmem:[%s2526] sm:$0xff]
      %v2528 = vld [vmem:[%s13] sm:$0xf]
      %v2529 = vld [vmem:[%s13 + $0x4] sm:$0xf]
      %v2530 = vld [vmem:[%s13 + $0x8] sm:$0xf]
      %v2531 = vld [vmem:[%s13 + $0xc] sm:$0xf]
      %v2532 = vld [vmem:[#allocation7] sm:$0x1]
      %v2534 = vlaneseq
      %v2535 = vshrl.u32 %v2534, 7
      %v2536 = vsub.s32 0, %v2535
      %v2537 = vrot.slane %v2532, %v2536
      %v2543 = vunpack.c.l.b16 %v2528
      %v2544 = vunpack.c.l.b16 %v2529
      %v2545 = vunpack.c.l.b16 %v2530
      %v2546 = vunpack.c.l.b16 %v2531
      %v2547 = vpack.c.b16 %v2544, %v2543
      %v2548 = vpack.c.b16 %v2546, %v2545
      %v2552 = vsel %vm391, %v2527, 0
      %2554 = vmatprep.subr.bf16.mxu0 0
      %2555 = vmatpush1.bf16.msra.mxu0 %v2547
      %2556 = vmatprep.subr.bf16.mxu0 0
      %2557 = vmatpush1.bf16.msra.mxu0 %v2548
      %2558 = vmatprep.subr.bf16.mxu0 0
      %2559 = vmatpush1.bf16.msra.mxu0 0
      %2560 = vmatprep.subr.bf16.mxu0 0
      %2561 = vmatpush1.bf16.msra.mxu0 0
      %2562 = vmatprep.subr.bf16.mxu0 0
      %2563 = vmatpush1.bf16.msra.mxu0 0
      %2564 = vmatprep.subr.bf16.mxu0 0
      %2565 = vmatpush1.bf16.msra.mxu0 0
      %2566 = vmatprep.subr.bf16.mxu0 0
      %2567 = vmatpush1.bf16.msra.mxu0 0
      %2568 = vmatprep.subr.bf16.mxu0 0
      %2569 = vmatpush1.bf16.msra.mxu0 0
      %2570 = vmatprep.subr.bf16.mxu0 0
      %2571 = vmatpush1.bf16.msra.mxu0 0
      %2572 = vmatprep.subr.bf16.mxu0 0
      %2573 = vmatpush1.bf16.msra.mxu0 0
      %2574 = vmatprep.subr.bf16.mxu0 0
      %2575 = vmatpush1.bf16.msra.mxu0 0
      %2576 = vmatprep.subr.bf16.mxu0 0
      %2577 = vmatpush1.bf16.msra.mxu0 0
      %2578 = vmatprep.subr.bf16.mxu0 0
      %2579 = vmatpush1.bf16.msra.mxu0 0
      %2580 = vmatprep.subr.bf16.mxu0 0
      %2581 = vmatpush1.bf16.msra.mxu0 0
      %2582 = vmatprep.subr.bf16.mxu0 0
      %2583 = vmatpush1.bf16.msra.mxu0 0
      %2584 = vmatprep.subr.bf16.mxu0 0
      %2585 = vmatpush1.bf16.msra.mxu0 0
      %2586 = vmatprep.mubr.bf16.mxu0 0
      %2587 = vmatmul.mubr.bf16.gmra.mrb[0].mxu0 %v2552
      %v2588 = vpop.f32.mrb[0].mxu0
      %v2589 = vadd.f32 %v2537, %v2588
      %v2590 = vpop.f32.mrb[0].mxu0
      %v2591 = vpop.f32.mrb[0].mxu0
      %v2592 = vadd.f32 %v2537, %v2591
      %v2593 = vpop.f32.mrb[0].mxu0
      %2594 = vdwg.mxu0
      %s2595 = scalar_lea.vmem %s17, 16
      %2596 = vst.msk [vmem:[%s2595] sm:$0xff] %vm391, %v2589
      %2597 = vst.msk [vmem:[%s2595 + $0x8] sm:$0xff] %vm391, %v2592
    $region85: #{basic_transformer_block.2} parent=1 // pred_fallthru
      _
    // Predicated region
    $region86: #{basic_transformer_block.2} parent=1 // pred_check
      _
    $region87: #{basic_transformer_block.2} parent=1 // pred_check_branch
      %2599 = sbr.rel (0) target = $region89
    $region88: #{basic_transformer_block.2} parent=1 // pred_region
      _
    $region89: #{basic_transformer_block.2} parent=1 // pred_fallthru
      _
    // Predicated region
    $region90: #{basic_transformer_block.2} parent=1 // pred_check
      _
    $region91: #{basic_transformer_block.2} parent=1 // pred_check_branch
      %2601 = sbr.rel (0) target = $region93
    $region92: #{basic_transformer_block.2} parent=1 // pred_region
      _
    $region93: #{basic_transformer_block.2} parent=1 // pred_fallthru
      _
    %2602 = vsyncpa [#allocation6], 1
    %2603 = vsyncpa [#allocation8], 1

</llo_original>
